<compile_context>
chip_gen: v6e
topology: v6e:2x2x1
jax: 0.10.0
libtpu: 0.0.40
codegen_flags: <defaults>
</compile_context>

<pallas_src>
import functools
import numpy as np
import jax
import jax.numpy as jnp
from jax.experimental import pallas as pl
from jax.experimental.pallas import tpu as pltpu


# ------------------------------- config -------------------------------------
class Args:
    n_layer = 2
    n_embd = 32
    dim_att = 32
    dim_ffn = 64
    head_size_a = 16          # == HEAD_SIZE (RWKV_HEAD_SIZE_A)
    head_size_divisor = 8
    dropout = 0.0


LAYER_ID = 0
LN_EPS = 1e-5


# --------------------------- parameter init ----------------------------------
def init_params(args, layer_id, key):
    C, A, F = args.n_embd, args.dim_att, args.dim_ffn
    H = A // args.head_size_a
    N = args.head_size_a
    f32 = jnp.float32
    keys = jax.random.split(key, 12)

    ratio_0_to_1 = layer_id / (args.n_layer - 1)
    ratio_1_to_almost0 = 1.0 - layer_id / args.n_layer
    ddd = (jnp.arange(C, dtype=f32) / C).reshape(1, 1, C)

    def lin(k, fan_in, fan_out):
        # nn.Linear weight, stored transposed as (in, out) so y = x @ W
        bound = 1.0 / float(np.sqrt(fan_in))
        return jax.random.uniform(k, (fan_in, fan_out), f32, -bound, bound)

    D_MIX, D_DECAY = 32, 64

    n = jnp.arange(A, dtype=f32)
    decay_speed = -6.0 + 5.0 * (n / (A - 1)) ** (0.7 + 1.3 * ratio_0_to_1)
    zigzag = (jnp.mod(n + 1, 3) - 1) * 0.1
    time_faaaa = (ratio_0_to_1 * (1.0 - n / (A - 1)) + zigzag).reshape(H, N)

    return dict(
        ln0_w=jnp.ones((C,), f32), ln0_b=jnp.zeros((C,), f32),
        ln1_w=jnp.ones((C,), f32), ln1_b=jnp.zeros((C,), f32),
        ln2_w=jnp.ones((C,), f32), ln2_b=jnp.zeros((C,), f32),
        # ---- att: RWKV_Tmix_x060 ----
        time_maa_x=1.0 - ddd ** ratio_1_to_almost0,
        time_maa_w=1.0 - ddd ** ratio_1_to_almost0,
        time_maa_k=1.0 - ddd ** ratio_1_to_almost0,
        time_maa_v=1.0 - (ddd ** ratio_1_to_almost0 + 0.3 * ratio_0_to_1),
        time_maa_r=1.0 - ddd ** (0.5 * ratio_1_to_almost0),
        time_maa_g=1.0 - ddd ** (0.5 * ratio_1_to_almost0),
        # module inits *_w1 to zeros; small uniform so the LoRA path is exercised
        time_maa_w1=jax.random.uniform(keys[0], (C, D_MIX * 5), f32, -0.01, 0.01),
        time_maa_w2=jax.random.uniform(keys[1], (5, D_MIX, C), f32, -0.01, 0.01),
        time_decay=decay_speed.reshape(1, 1, A),
        time_decay_w1=jax.random.uniform(keys[2], (C, D_DECAY), f32, -0.01, 0.01),
        time_decay_w2=jax.random.uniform(keys[3], (D_DECAY, A), f32, -0.01, 0.01),
        time_faaaa=time_faaaa,
        att_receptance=lin(keys[4], C, A),
        att_key=lin(keys[5], C, A),
        att_value=lin(keys[6], C, A),
        att_output=lin(keys[7], A, C),
        att_gate=lin(keys[8], C, A),
        ln_x_w=jnp.ones((A,), f32), ln_x_b=jnp.zeros((A,), f32),
        # ---- ffn: RWKV_CMix_x060 ----
        ffn_time_maa_k=1.0 - ddd ** ratio_1_to_almost0,
        ffn_time_maa_r=1.0 - ddd ** ratio_1_to_almost0,
        ffn_key=lin(keys[9], C, F),
        ffn_receptance=lin(keys[10], C, C),
        ffn_value=lin(keys[11], F, C),
    )


# --------------------------- small in-kernel helpers --------------------------
def _sigmoid(x):
    return 1.0 / (1.0 + jnp.exp(-x))


def _ln_rows(x, w, b, eps):
    """LayerNorm over last axis; x:(M,C), w/b:(1,C)."""
    mu = jnp.mean(x, axis=-1, keepdims=True)
    xc = x - mu
    var = jnp.mean(xc * xc, axis=-1, keepdims=True)
    return xc * jax.lax.rsqrt(var + eps) * w + b


def _np_shift_matrix(B, T):
    """(B*T,B*T) matrix S with dot(S, x) == ZeroPad2d((0,0,1,-1)) time-shift on the
    (B,T,C)-viewed x: out[b,t] = x[b,t-1], out[b,0] = 0."""
    n = B * T
    m = np.zeros((n, n), np.float32)
    for r in range(n):
        if r % T != 0:
            m[r, r - 1] = 1.0
    return m


def _full_spec(shape):
    nd = len(shape)
    return pl.BlockSpec(shape, lambda *_: (0,) * nd)


# ----------------------------- Kernel A: att_pre ------------------------------
def _att_pre_kernel(x_ref, shift_ref, ln_ref, maa_ref, maa_w1_ref, maa_w2_ref,
                    dec_w1_ref, dec_w2_ref, tdecay_ref, w_rkvg_ref,
                    x0_ref, rkvw_ref, g_ref, *, A, D, apply_ln0, eps):
    f32 = jnp.float32
    x = x_ref[...]
    if apply_ln0:                                   # layer 0 only
        x = _ln_rows(x, ln_ref[0:1, :], ln_ref[1:2, :], eps)
    x0_ref[...] = x                                 # residual base
    x1 = _ln_rows(x, ln_ref[2:3, :], ln_ref[3:4, :], eps)

    # causal per-batch time shift via shift-matrix matmul
    xx = jnp.dot(shift_ref[...], x1, preferred_element_type=f32) - x1

    maa = maa_ref[...]                              # rows: [x, w, k, v, r, g]
    xxx = x1 + xx * maa[0:1, :]
    lora = jnp.tanh(jnp.dot(xxx, maa_w1_ref[...], preferred_element_type=f32))

    mixed = []
    for i in range(5):                              # w, k, v, r, g
        m_i = jnp.dot(lora[:, i * D:(i + 1) * D], maa_w2_ref[i],
                      preferred_element_type=f32)
        mixed.append(x1 + xx * (maa[i + 1:i + 2, :] + m_i))
    xw, xk, xv, xr, xg = mixed

    r = jnp.dot(xr, w_rkvg_ref[0], preferred_element_type=f32)
    k = jnp.dot(xk, w_rkvg_ref[1], preferred_element_type=f32)
    v = jnp.dot(xv, w_rkvg_ref[2], preferred_element_type=f32)
    gp = jnp.dot(xg, w_rkvg_ref[3], preferred_element_type=f32)
    g_ref[...] = gp * _sigmoid(gp)                  # silu

    ww = jnp.dot(jnp.tanh(jnp.dot(xw, dec_w1_ref[...], preferred_element_type=f32)),
                 dec_w2_ref[...], preferred_element_type=f32)
    nw = -jnp.exp(tdecay_ref[...] + ww)             # log-decay, hoisted out of WKV

    # lane-dense (B*T, 4*A) slab consumed directly by the WKV kernel
    rkvw_ref[:, 0 * A:1 * A] = r
    rkvw_ref[:, 1 * A:2 * A] = k
    rkvw_ref[:, 2 * A:3 * A] = v
    rkvw_ref[:, 3 * A:4 * A] = nw


def att_pre_pallas(p, x_flat, *, B, T, C, A, apply_ln0):
    BT = B * T
    D = p['time_maa_w2'].shape[1]
    shift = jnp.asarray(_np_shift_matrix(B, T))
    ln_cat = jnp.stack([p['ln0_w'], p['ln0_b'], p['ln1_w'], p['ln1_b']])
    maa_cat = jnp.concatenate(
        [p['time_maa_x'].reshape(1, C), p['time_maa_w'].reshape(1, C),
         p['time_maa_k'].reshape(1, C), p['time_maa_v'].reshape(1, C),
         p['time_maa_r'].reshape(1, C), p['time_maa_g'].reshape(1, C)], axis=0)
    w_rkvg = jnp.stack([p['att_receptance'], p['att_key'],
                        p['att_value'], p['att_gate']])
    inputs = (x_flat, shift, ln_cat, maa_cat, p['time_maa_w1'], p['time_maa_w2'],
              p['time_decay_w1'], p['time_decay_w2'],
              p['time_decay'].reshape(1, A), w_rkvg)
    kernel = functools.partial(_att_pre_kernel, A=A, D=D,
                               apply_ln0=apply_ln0, eps=LN_EPS)
    return pl.pallas_call(
        kernel,
        out_shape=(jax.ShapeDtypeStruct((BT, C), jnp.float32),
                   jax.ShapeDtypeStruct((BT, 4 * A), jnp.float32),
                   jax.ShapeDtypeStruct((BT, A), jnp.float32)),
        grid=(1,),
        in_specs=[_full_spec(z.shape) for z in inputs],
        out_specs=[_full_spec((BT, C)), _full_spec((BT, 4 * A)),
                   _full_spec((BT, A))],
    )(*inputs)


# --------------------------- Kernel B: WKV6 (state) ---------------------------
def _wkv_chunk_kernel(rkvw_ref, u_ref, s0_ref, y_ref, sT_ref, *, T, H, N, A):
    """Chunked linear-attention form of the wkv6state recurrence (T <= one chunk):
       y_t = (r_t.(u*k_t)) v_t + r_t S_t ;  S_{t+1} = diag(exp(-exp(w_t))) S_t + k_t^T v_t
    With cumulative log-decays L:  R' = r*exp(Lx), K' = k*exp(-Li),
       Y = [strict_lower(R'K'^T) + diag(r.(u*k))] V + R' S0
       S_T = diag(exp(Ltot)) S0 + (K'*exp(Ltot))^T V
    All dots feed the MXU; no per-timestep loop."""
    f32 = jnp.float32
    t_i = jax.lax.broadcasted_iota(jnp.int32, (T, T), 0)
    s_i = jax.lax.broadcasted_iota(jnp.int32, (T, T), 1)
    strict = jnp.where(s_i < t_i, 1.0, 0.0).astype(f32)
    n_i = jax.lax.broadcasted_iota(jnp.int32, (N, N), 0)
    n_j = jax.lax.broadcasted_iota(jnp.int32, (N, N), 1)

    rkvw = rkvw_ref[...]                                     # (T, 4A) lane-dense
    for h in range(H):
        lo, hi = h * N, (h + 1) * N
        r = rkvw[:, 0 * A + lo:0 * A + hi]
        k = rkvw[:, 1 * A + lo:1 * A + hi]
        v = rkvw[:, 2 * A + lo:2 * A + hi]
        nw = rkvw[:, 3 * A + lo:3 * A + hi]                  # log-decay = -exp(w)
        u = u_ref[:, lo:hi]                                  # (1, N)
        s0 = s0_ref[h]                                       # (N, N) key-major

        cumx = jnp.dot(strict, nw, preferred_element_type=f32)   # exclusive prefix
        cumi = cumx + nw                                          # inclusive prefix
        rp = r * jnp.exp(cumx)
        kp = k * jnp.exp(-cumi)

        att = jax.lax.dot_general(rp, kp, (((1,), (1,)), ((), ())),
                                  preferred_element_type=f32)     # rp @ kp^T (T,T)
        ruk = jnp.sum(r * u * k, axis=-1, keepdims=True)          # bonus term (T,1)
        att = jnp.where(s_i < t_i, att, 0.0) + jnp.where(s_i == t_i, ruk, 0.0)

        y = (jnp.dot(att, v, preferred_element_type=f32) +
             jnp.dot(rp, s0, preferred_element_type=f32))
        y_ref[:, lo:hi] = y

        # final state
        total = jnp.sum(nw, axis=0, keepdims=True)                # (1, N)
        k2 = kp * jnp.exp(total)
        s_new = jax.lax.dot_general(k2, v, (((0,), (0,)), ((), ())),
                                    preferred_element_type=f32)   # K2^T V (N,N)
        dec = jnp.where(n_i == n_j, jnp.exp(total), 0.0)          # diag(exp(total))
        sT_ref[h, :, :] = s_new + jnp.dot(dec, s0, preferred_element_type=f32)


def wkv_pallas(rkvw, u, s, *, B, T, A, H, N):
    """rkvw: (B*T, 4A) = [r|k|v|log-decay]; u: (H,N); s: (B,H,N,N) torch layout."""
    rkvw3 = rkvw.reshape(B, T, 4 * A)
    u2 = u.reshape(1, A)
    s_km = jnp.swapaxes(s, -1, -2)                            # key-major init state
    kernel = functools.partial(_wkv_chunk_kernel, T=T, H=H, N=N, A=A)
    y, s_fin = pl.pallas_call(
        kernel,
        out_shape=(jax.ShapeDtypeStruct((B, T, A), jnp.float32),
                   jax.ShapeDtypeStruct((B, H, N, N), jnp.float32)),
        grid=(B,),
        in_specs=[pl.BlockSpec((None, T, 4 * A), lambda b: (b, 0, 0)),
                  pl.BlockSpec((1, A), lambda b: (0, 0)),
                  pl.BlockSpec((None, H, N, N), lambda b: (b, 0, 0, 0))],
        out_specs=[pl.BlockSpec((None, T, A), lambda b: (b, 0, 0)),
                   pl.BlockSpec((None, H, N, N), lambda b: (b, 0, 0, 0))],
        compiler_params=pltpu.CompilerParams(dimension_semantics=("parallel",)),
    )(rkvw3, u2, s_km)
    return y.reshape(B * T, A), jnp.swapaxes(s_fin, -1, -2)


# ------------------------ Kernel C: att_post + FFN -----------------------------
def _att_post_ffn_kernel(y_ref, g_ref, x0_ref, shift_ref, lnx_ref, ln2_ref,
                         fmaa_ref, w_out_ref, w_fk_ref, w_fv_ref, w_fr_ref,
                         o_ref, *, H, N, eps_gn, eps_ln):
    f32 = jnp.float32
    y = y_ref[...]
    g = g_ref[...]
    x0 = x0_ref[...]

    # GroupNorm(H) + affine + gate + output projection, decomposed per head:
    #   xp = sum_h [(norm_h * w_h + b_h) * g_h] @ W_out[hN:(h+1)N, :]
    xp = None
    for h in range(H):
        lo, hi = h * N, (h + 1) * N
        yh = y[:, lo:hi]
        mu = jnp.mean(yh, axis=-1, keepdims=True)
        yc = yh - mu
        var = jnp.mean(yc * yc, axis=-1, keepdims=True)
        norm = yc * jax.lax.rsqrt(var + eps_gn)
        gated = (norm * lnx_ref[0:1, lo:hi] + lnx_ref[1:2, lo:hi]) * g[:, lo:hi]
        term = jnp.dot(gated, w_out_ref[lo:hi, :], preferred_element_type=f32)
        xp = term if xp is None else xp + term
    x2 = x0 + xp                                             # residual 1

    # ---- FFN (RWKV_CMix_x060) fused with ln2 ----
    x2n = _ln_rows(x2, ln2_ref[0:1, :], ln2_ref[1:2, :], eps_ln)
    xx = jnp.dot(shift_ref[...], x2n, preferred_element_type=f32) - x2n
    xk = x2n + xx * fmaa_ref[0:1, :]
    xr = x2n + xx * fmaa_ref[1:2, :]
    kf = jnp.dot(xk, w_fk_ref[...], preferred_element_type=f32)
    kf = jnp.square(jnp.maximum(kf, 0.0))
    kv = jnp.dot(kf, w_fv_ref[...], preferred_element_type=f32)
    rr = _sigmoid(jnp.dot(xr, w_fr_ref[...], preferred_element_type=f32))
    o_ref[...] = x2 + rr * kv                                # residual 2


def att_post_ffn_pallas(p, y, g, x0, *, B, T, C, A, H, N, args):
    BT = B * T
    shift = jnp.asarray(_np_shift_matrix(B, T))
    lnx_cat = jnp.stack([p['ln_x_w'], p['ln_x_b']])
    ln2_cat = jnp.stack([p['ln2_w'], p['ln2_b']])
    fmaa_cat = jnp.concatenate([p['ffn_time_maa_k'].reshape(1, C),
                                p['ffn_time_maa_r'].reshape(1, C)], axis=0)
    eps_gn = 1e-5 * (args.head_size_divisor ** 2)
    inputs = (y, g, x0, shift, lnx_cat, ln2_cat, fmaa_cat,
              p['att_output'], p['ffn_key'], p['ffn_value'], p['ffn_receptance'])
    kernel = functools.partial(_att_post_ffn_kernel, H=H, N=N,
                               eps_gn=eps_gn, eps_ln=LN_EPS)
    return pl.pallas_call(
        kernel,
        out_shape=jax.ShapeDtypeStruct((BT, C), jnp.float32),
        grid=(1,),
        in_specs=[_full_spec(z.shape) for z in inputs],
        out_specs=_full_spec((BT, C)),
    )(*inputs)


# --------------------------- Pallas block forward ------------------------------
def block_forward_pallas(p, x, state, args, layer_id):
    B, T, C = x.shape
    A = args.dim_att
    N = args.head_size_a
    H = A // N
    if state is None:
        state = jnp.zeros((B, H, N, N), jnp.float32)
    # TODO(synk): torch Block prints ln0.weight.dtype here (debug print, omitted).
    x_flat = x.reshape(B * T, C)
    x0, rkvw, g = att_pre_pallas(p, x_flat, B=B, T=T, C=C, A=A,
                                 apply_ln0=(layer_id == 0))
    y, state_new = wkv_pallas(rkvw, p['time_faaaa'], state,
                              B=B, T=T, A=A, H=H, N=N)
    out = att_post_ffn_pallas(p, y, g, x0, B=B, T=T, C=C, A=A, H=H, N=N, args=args)
    # Return the updated recurrence state (validated against the reference);
    # the torch module returns whatever tensor `state` the CUDA kernel was given.
    return out.reshape(B, T, C), state_new


# ----------------------------- pure-JAX reference ------------------------------
def layernorm_ref(x, w, b, eps=LN_EPS):
    mu = jnp.mean(x, axis=-1, keepdims=True)
    var = jnp.mean((x - mu) ** 2, axis=-1, keepdims=True)
    return (x - mu) * jax.lax.rsqrt(var + eps) * w + b


def groupnorm_ref(x2d, w, b, groups, eps):
    M, C = x2d.shape
    N = C // groups
    x3 = x2d.reshape(M, groups, N)
    mu = jnp.mean(x3, axis=-1, keepdims=True)
    var = jnp.mean((x3 - mu) ** 2, axis=-1, keepdims=True)
    y = (x3 - mu) * jax.lax.rsqrt(var + eps)
    return y.reshape(M, C) * w + b


def time_shift(x):
    return jnp.pad(x, ((0, 0), (1, 0), (0, 0)))[:, :-1, :]


def wkv6_ref(r, k, v, w, u, s):
    B, T, C = r.shape
    H, N = u.shape

    def split(z):
        return z.reshape(B, T, H, N).transpose(1, 0, 2, 3)

    rT, kT, vT, wT = (split(z) for z in (r, k, v, w))
    S0 = jnp.swapaxes(s, -1, -2)

    def step(S, inp):
        rt, kt, vt, wt = inp
        wd = jnp.exp(-jnp.exp(wt))
        ruk = jnp.sum(rt * u[None] * kt, axis=-1, keepdims=True)
        y = ruk * vt + jnp.einsum('bhi,bhij->bhj', rt, S,
                                  precision=jax.lax.Precision.HIGHEST)
        S = S * wd[..., :, None] + kt[..., :, None] * vt[..., None, :]
        return S, y

    S_fin, ys = jax.lax.scan(step, S0, (rT, kT, vT, wT))
    return ys.transpose(1, 0, 2, 3).reshape(B, T, C), jnp.swapaxes(S_fin, -1, -2)


def att_forward_ref(p, x, state, args):
    B, T, C = x.shape
    A = args.dim_att
    H = A // args.head_size_a
    N = args.head_size_a
    mm = lambda a, b: jnp.dot(a, b, precision=jax.lax.Precision.HIGHEST)

    xx = time_shift(x) - x
    xxx = (x + xx * p['time_maa_x']).reshape(B * T, C)
    tmp = jnp.tanh(mm(xxx, p['time_maa_w1']))
    D = p['time_maa_w2'].shape[1]
    tmp = tmp.reshape(B * T, 5, D).transpose(1, 0, 2)
    mix = jnp.stack([mm(tmp[i], p['time_maa_w2'][i]) for i in range(5)],
                    axis=0).reshape(5, B, T, C)
    mw, mk, mv, mr, mg = mix[0], mix[1], mix[2], mix[3], mix[4]

    xw = x + xx * (p['time_maa_w'] + mw)
    xk = x + xx * (p['time_maa_k'] + mk)
    xv = x + xx * (p['time_maa_v'] + mv)
    xr = x + xx * (p['time_maa_r'] + mr)
    xg = x + xx * (p['time_maa_g'] + mg)

    r = mm(xr.reshape(B * T, C), p['att_receptance']).reshape(B, T, A)
    k = mm(xk.reshape(B * T, C), p['att_key']).reshape(B, T, A)
    v = mm(xv.reshape(B * T, C), p['att_value']).reshape(B, T, A)
    g = jax.nn.silu(mm(xg.reshape(B * T, C), p['att_gate'])).reshape(B, T, A)

    ww = mm(jnp.tanh(mm(xw.reshape(B * T, C), p['time_decay_w1'])),
            p['time_decay_w2']).reshape(B, T, A)
    w = p['time_decay'] + ww

    if state is None:
        state = jnp.zeros((B, H, N, N), jnp.float32)
    y, state_new = wkv6_ref(r, k, v, w, p['time_faaaa'], state)

    eps = 1e-5 * (args.head_size_divisor ** 2)
    xn = groupnorm_ref(y.reshape(B * T, A), p['ln_x_w'], p['ln_x_b'], H, eps)
    xn = xn.reshape(B, T, A) * g
    out = mm(xn.reshape(B * T, A), p['att_output']).reshape(B, T, C)
    return out, state_new


def ffn_forward_ref(p, x):
    B, T, C = x.shape
    mm = lambda a, b: jnp.dot(a, b, precision=jax.lax.Precision.HIGHEST)
    xx = time_shift(x) - x
    xk = x + xx * p['ffn_time_maa_k']
    xr = x + xx * p['ffn_time_maa_r']
    k = mm(xk.reshape(B * T, C), p['ffn_key'])
    k = jnp.square(jnp.maximum(k, 0.0))
    kv = mm(k, p['ffn_value'])
    rcp = jax.nn.sigmoid(mm(xr.reshape(B * T, C), p['ffn_receptance']))
    return (rcp * kv).reshape(B, T, C)


def block_forward_ref(p, x, state, args, layer_id):
    if layer_id == 0:
        x = layernorm_ref(x, p['ln0_w'], p['ln0_b'])
    xp, state_new = att_forward_ref(p, layernorm_ref(x, p['ln1_w'], p['ln1_b']),
                                    state, args)
    x = x + xp
    x = x + ffn_forward_ref(p, layernorm_ref(x, p['ln2_w'], p['ln2_b']))
    return x, state_new


# ---------------------------------- main --------------------------------------
if __name__ == "__main__":
    args = Args()
    key = jax.random.PRNGKey(0)
    kp, kx, ks = jax.random.split(key, 3)
    params = init_params(args, LAYER_ID, kp)

    B, T, C = 2, 8, args.n_embd
    A = args.dim_att
    N = args.head_size_a
    H = A // N

    x = jax.random.normal(kx, (B, T, C), jnp.float32)
    s0 = 0.1 * jax.random.normal(ks, (B, H, N, N), jnp.float32)

    run_pallas = jax.jit(lambda p, xi, si: block_forward_pallas(p, xi, si, args, LAYER_ID))
    run_ref = jax.jit(lambda p, xi, si: block_forward_ref(p, xi, si, args, LAYER_ID))

    out, state_fin = run_pallas(params, x, s0)
    out = jax.block_until_ready(out)
    state_fin = jax.block_until_ready(state_fin)

    out_ref, state_ref = run_ref(params, x, s0)
    out_ref = jax.block_until_ready(out_ref)

    assert out.shape == (B, T, C)
    assert state_fin.shape == (B, H, N, N)
    assert bool(jnp.all(jnp.isfinite(out)))
    err_y = float(jnp.max(jnp.abs(out - out_ref)))
    err_s = float(jnp.max(jnp.abs(state_fin - state_ref)))
    assert bool(jnp.allclose(out, out_ref, rtol=2e-2, atol=2e-2)), err_y
    assert bool(jnp.allclose(state_fin, state_ref, rtol=2e-2, atol=2e-2)), err_s

    print("KERNEL_OK")
</pallas_src>

<mosaic_0001>
module attributes {stable_mosaic.version = 11 : i64} {
  func.func @_att_pre_kernel(%arg0: i32, %arg1: memref<16x32xf32, #tpu.memory_space<vmem>>, %arg2: memref<16x16xf32, #tpu.memory_space<vmem>>, %arg3: memref<4x32xf32, #tpu.memory_space<vmem>>, %arg4: memref<6x32xf32, #tpu.memory_space<vmem>>, %arg5: memref<32x160xf32, #tpu.memory_space<vmem>>, %arg6: memref<5x32x32xf32, #tpu.memory_space<vmem>>, %arg7: memref<32x64xf32, #tpu.memory_space<vmem>>, %arg8: memref<64x32xf32, #tpu.memory_space<vmem>>, %arg9: memref<1x32xf32, #tpu.memory_space<vmem>>, %arg10: memref<4x32x32xf32, #tpu.memory_space<vmem>>, %arg11: memref<16x32xf32, #tpu.memory_space<vmem>>, %arg12: memref<16x128xf32, #tpu.memory_space<vmem>>, %arg13: memref<16x32xf32, #tpu.memory_space<vmem>>) attributes {dimension_semantics = [#tpu.dimension_semantics<arbitrary>], iteration_bounds = array<i64: 1>, scalar_prefetch = 0 : i64, scratch_operands = 0 : i64, tpu.core_type = #tpu.core_type<tc>, window_params = [{pipeline_mode = #tpu.pipeline_mode<synchronous>, transform_indices = @transform_0, window_bounds = array<i64: 16, 32>}, {pipeline_mode = #tpu.pipeline_mode<synchronous>, transform_indices = @transform_1, window_bounds = array<i64: 16, 16>}, {pipeline_mode = #tpu.pipeline_mode<synchronous>, transform_indices = @transform_2, window_bounds = array<i64: 4, 32>}, {pipeline_mode = #tpu.pipeline_mode<synchronous>, transform_indices = @transform_3, window_bounds = array<i64: 6, 32>}, {pipeline_mode = #tpu.pipeline_mode<synchronous>, transform_indices = @transform_4, window_bounds = array<i64: 32, 160>}, {pipeline_mode = #tpu.pipeline_mode<synchronous>, transform_indices = @transform_5, window_bounds = array<i64: 5, 32, 32>}, {pipeline_mode = #tpu.pipeline_mode<synchronous>, transform_indices = @transform_6, window_bounds = array<i64: 32, 64>}, {pipeline_mode = #tpu.pipeline_mode<synchronous>, transform_indices = @transform_7, window_bounds = array<i64: 64, 32>}, {pipeline_mode = #tpu.pipeline_mode<synchronous>, transform_indices = @transform_8, window_bounds = array<i64: 1, 32>}, {pipeline_mode = #tpu.pipeline_mode<synchronous>, transform_indices = @transform_9, window_bounds = array<i64: 4, 32, 32>}, {pipeline_mode = #tpu.pipeline_mode<synchronous>, transform_indices = @transform_10, window_bounds = array<i64: 16, 32>}, {pipeline_mode = #tpu.pipeline_mode<synchronous>, transform_indices = @transform_11, window_bounds = array<i64: 16, 128>}, {pipeline_mode = #tpu.pipeline_mode<synchronous>, transform_indices = @transform_12, window_bounds = array<i64: 16, 32>}]} {
    %c0 = arith.constant 0 : index
    %c0_0 = arith.constant 0 : index
    %0 = vector.load %arg1[%c0, %c0_0] : memref<16x32xf32, #tpu.memory_space<vmem>>, vector<16x32xf32>
    %c0_1 = arith.constant 0 : index
    %c0_2 = arith.constant 0 : index
    %1 = vector.load %arg3[%c0_1, %c0_2] : memref<4x32xf32, #tpu.memory_space<vmem>>, vector<1x32xf32>
    %c1 = arith.constant 1 : index
    %c0_3 = arith.constant 0 : index
    %2 = vector.load %arg3[%c1, %c0_3] : memref<4x32xf32, #tpu.memory_space<vmem>>, vector<1x32xf32>
    %cst = arith.constant dense<0.000000e+00> : vector<16xf32>
    %3 = vector.multi_reduction <add>, %0, %cst [1] : vector<16x32xf32> to vector<16xf32>
    %4 = vector.shape_cast %3 : vector<16xf32> to vector<16x1xf32>
    %cst_4 = arith.constant 3.200000e+01 : f32
    %5 = vector.broadcast %cst_4 : f32 to vector<16x1xf32>
    %6 = arith.divf %4, %5 : vector<16x1xf32>
    %7 = vector.broadcast %6 : vector<16x1xf32> to vector<16x32xf32>
    %8 = arith.subf %0, %7 : vector<16x32xf32>
    %9 = arith.mulf %8, %8 : vector<16x32xf32>
    %cst_5 = arith.constant dense<0.000000e+00> : vector<16xf32>
    %10 = vector.multi_reduction <add>, %9, %cst_5 [1] : vector<16x32xf32> to vector<16xf32>
    %11 = vector.shape_cast %10 : vector<16xf32> to vector<16x1xf32>
    %cst_6 = arith.constant 3.200000e+01 : f32
    %12 = vector.broadcast %cst_6 : f32 to vector<16x1xf32>
    %13 = arith.divf %11, %12 : vector<16x1xf32>
    %cst_7 = arith.constant 9.99999974E-6 : f32
    %14 = vector.broadcast %cst_7 : f32 to vector<16x1xf32>
    %15 = arith.addf %13, %14 : vector<16x1xf32>
    %16 = math.rsqrt %15 : vector<16x1xf32>
    %17 = vector.broadcast %16 : vector<16x1xf32> to vector<16x32xf32>
    %18 = arith.mulf %8, %17 : vector<16x32xf32>
    %19 = vector.broadcast %1 : vector<1x32xf32> to vector<16x32xf32>
    %20 = arith.mulf %18, %19 : vector<16x32xf32>
    %21 = vector.broadcast %2 : vector<1x32xf32> to vector<16x32xf32>
    %22 = arith.addf %20, %21 : vector<16x32xf32>
    %c0_8 = arith.constant 0 : index
    %c0_9 = arith.constant 0 : index
    %23 = vector.load %arg11[%c0_8, %c0_9] : memref<16x32xf32, #tpu.memory_space<vmem>>, vector<16x32xf32>
    tpu.vector_store %arg11[%c0_8, %c0_9], %22 {strides = array<i32>} : memref<16x32xf32, #tpu.memory_space<vmem>>, vector<16x32xf32>,
    %c2 = arith.constant 2 : index
    %c0_10 = arith.constant 0 : index
    %24 = vector.load %arg3[%c2, %c0_10] : memref<4x32xf32, #tpu.memory_space<vmem>>, vector<1x32xf32>
    %c3 = arith.constant 3 : index
    %c0_11 = arith.constant 0 : index
    %25 = vector.load %arg3[%c3, %c0_11] : memref<4x32xf32, #tpu.memory_space<vmem>>, vector<1x32xf32>
    %cst_12 = arith.constant dense<0.000000e+00> : vector<16xf32>
    %26 = vector.multi_reduction <add>, %22, %cst_12 [1] : vector<16x32xf32> to vector<16xf32>
    %27 = vector.shape_cast %26 : vector<16xf32> to vector<16x1xf32>
    %cst_13 = arith.constant 3.200000e+01 : f32
    %28 = vector.broadcast %cst_13 : f32 to vector<16x1xf32>
    %29 = arith.divf %27, %28 : vector<16x1xf32>
    %30 = vector.broadcast %29 : vector<16x1xf32> to vector<16x32xf32>
    %31 = arith.subf %22, %30 : vector<16x32xf32>
    %32 = arith.mulf %31, %31 : vector<16x32xf32>
    %cst_14 = arith.constant dense<0.000000e+00> : vector<16xf32>
    %33 = vector.multi_reduction <add>, %32, %cst_14 [1] : vector<16x32xf32> to vector<16xf32>
    %34 = vector.shape_cast %33 : vector<16xf32> to vector<16x1xf32>
    %cst_15 = arith.constant 3.200000e+01 : f32
    %35 = vector.broadcast %cst_15 : f32 to vector<16x1xf32>
    %36 = arith.divf %34, %35 : vector<16x1xf32>
    %cst_16 = arith.constant 9.99999974E-6 : f32
    %37 = vector.broadcast %cst_16 : f32 to vector<16x1xf32>
    %38 = arith.addf %36, %37 : vector<16x1xf32>
    %39 = math.rsqrt %38 : vector<16x1xf32>
    %40 = vector.broadcast %39 : vector<16x1xf32> to vector<16x32xf32>
    %41 = arith.mulf %31, %40 : vector<16x32xf32>
    %42 = vector.broadcast %24 : vector<1x32xf32> to vector<16x32xf32>
    %43 = arith.mulf %41, %42 : vector<16x32xf32>
    %44 = vector.broadcast %25 : vector<1x32xf32> to vector<16x32xf32>
    %45 = arith.addf %43, %44 : vector<16x32xf32>
    %c0_17 = arith.constant 0 : index
    %c0_18 = arith.constant 0 : index
    %46 = vector.load %arg2[%c0_17, %c0_18] : memref<16x16xf32, #tpu.memory_space<vmem>>, vector<16x16xf32>
    %cst_19 = arith.constant dense<0.000000e+00> : vector<16x32xf32>
    %47 = tpu.matmul %46, %45, %cst_19 {dimension_numbers = #tpu.dot_dimension_numbers<[1], [0], [0], [1], [0, 0, 1, 1], [], []>} : vector<16x16xf32>, vector<16x32xf32>, vector<16x32xf32> -> vector<16x32xf32>
    %48 = arith.subf %47, %45 : vector<16x32xf32>
    %c0_20 = arith.constant 0 : index
    %c0_21 = arith.constant 0 : index
    %49 = vector.load %arg4[%c0_20, %c0_21] : memref<6x32xf32, #tpu.memory_space<vmem>>, vector<6x32xf32>
    %50 = vector.extract_strided_slice %49 {offsets = [0, 0], sizes = [1, 32], strides = [1, 1]} : vector<6x32xf32> to vector<1x32xf32>
    %51 = vector.broadcast %50 : vector<1x32xf32> to vector<16x32xf32>
    %52 = arith.mulf %48, %51 : vector<16x32xf32>
    %53 = arith.addf %45, %52 : vector<16x32xf32>
    %c0_22 = arith.constant 0 : index
    %c0_23 = arith.constant 0 : index
    %54 = vector.load %arg5[%c0_22, %c0_23] : memref<32x160xf32, #tpu.memory_space<vmem>>, vector<32x160xf32>
    %cst_24 = arith.constant dense<0.000000e+00> : vector<16x160xf32>
    %55 = tpu.matmul %53, %54, %cst_24 {dimension_numbers = #tpu.dot_dimension_numbers<[1], [0], [0], [1], [0, 0, 1, 1], [], []>} : vector<16x32xf32>, vector<32x160xf32>, vector<16x160xf32> -> vector<16x160xf32>
    %56 = math.tanh %55 : vector<16x160xf32>
    %57 = vector.extract_strided_slice %56 {offsets = [0, 0], sizes = [16, 32], strides = [1, 1]} : vector<16x160xf32> to vector<16x32xf32>
    %c0_25 = arith.constant 0 : index
    %c0_26 = arith.constant 0 : index
    %c0_27 = arith.constant 0 : index
    %58 = vector.load %arg6[%c0_25, %c0_26, %c0_27] : memref<5x32x32xf32, #tpu.memory_space<vmem>>, vector<1x32x32xf32>
    %59 = vector.shape_cast %58 : vector<1x32x32xf32> to vector<32x32xf32>
    %cst_28 = arith.constant dense<0.000000e+00> : vector<16x32xf32>
    %60 = tpu.matmul %57, %59, %cst_28 {dimension_numbers = #tpu.dot_dimension_numbers<[1], [0], [0], [1], [0, 0, 1, 1], [], []>} : vector<16x32xf32>, vector<32x32xf32>, vector<16x32xf32> -> vector<16x32xf32>
    %61 = vector.extract_strided_slice %49 {offsets = [1, 0], sizes = [1, 32], strides = [1, 1]} : vector<6x32xf32> to vector<1x32xf32>
    %62 = vector.broadcast %61 : vector<1x32xf32> to vector<16x32xf32>
    %63 = arith.addf %62, %60 : vector<16x32xf32>
    %64 = arith.mulf %48, %63 : vector<16x32xf32>
    %65 = arith.addf %45, %64 : vector<16x32xf32>
    %66 = vector.extract_strided_slice %56 {offsets = [0, 32], sizes = [16, 32], strides = [1, 1]} : vector<16x160xf32> to vector<16x32xf32>
    %c1_29 = arith.constant 1 : index
    %c0_30 = arith.constant 0 : index
    %c0_31 = arith.constant 0 : index
    %67 = vector.load %arg6[%c1_29, %c0_30, %c0_31] : memref<5x32x32xf32, #tpu.memory_space<vmem>>, vector<1x32x32xf32>
    %68 = vector.shape_cast %67 : vector<1x32x32xf32> to vector<32x32xf32>
    %cst_32 = arith.constant dense<0.000000e+00> : vector<16x32xf32>
    %69 = tpu.matmul %66, %68, %cst_32 {dimension_numbers = #tpu.dot_dimension_numbers<[1], [0], [0], [1], [0, 0, 1, 1], [], []>} : vector<16x32xf32>, vector<32x32xf32>, vector<16x32xf32> -> vector<16x32xf32>
    %70 = vector.extract_strided_slice %49 {offsets = [2, 0], sizes = [1, 32], strides = [1, 1]} : vector<6x32xf32> to vector<1x32xf32>
    %71 = vector.broadcast %70 : vector<1x32xf32> to vector<16x32xf32>
    %72 = arith.addf %71, %69 : vector<16x32xf32>
    %73 = arith.mulf %48, %72 : vector<16x32xf32>
    %74 = arith.addf %45, %73 : vector<16x32xf32>
    %75 = vector.extract_strided_slice %56 {offsets = [0, 64], sizes = [16, 32], strides = [1, 1]} : vector<16x160xf32> to vector<16x32xf32>
    %c2_33 = arith.constant 2 : index
    %c0_34 = arith.constant 0 : index
    %c0_35 = arith.constant 0 : index
    %76 = vector.load %arg6[%c2_33, %c0_34, %c0_35] : memref<5x32x32xf32, #tpu.memory_space<vmem>>, vector<1x32x32xf32>
    %77 = vector.shape_cast %76 : vector<1x32x32xf32> to vector<32x32xf32>
    %cst_36 = arith.constant dense<0.000000e+00> : vector<16x32xf32>
    %78 = tpu.matmul %75, %77, %cst_36 {dimension_numbers = #tpu.dot_dimension_numbers<[1], [0], [0], [1], [0, 0, 1, 1], [], []>} : vector<16x32xf32>, vector<32x32xf32>, vector<16x32xf32> -> vector<16x32xf32>
    %79 = vector.extract_strided_slice %49 {offsets = [3, 0], sizes = [1, 32], strides = [1, 1]} : vector<6x32xf32> to vector<1x32xf32>
    %80 = vector.broadcast %79 : vector<1x32xf32> to vector<16x32xf32>
    %81 = arith.addf %80, %78 : vector<16x32xf32>
    %82 = arith.mulf %48, %81 : vector<16x32xf32>
    %83 = arith.addf %45, %82 : vector<16x32xf32>
    %84 = vector.extract_strided_slice %56 {offsets = [0, 96], sizes = [16, 32], strides = [1, 1]} : vector<16x160xf32> to vector<16x32xf32>
    %c3_37 = arith.constant 3 : index
    %c0_38 = arith.constant 0 : index
    %c0_39 = arith.constant 0 : index
    %85 = vector.load %arg6[%c3_37, %c0_38, %c0_39] : memref<5x32x32xf32, #tpu.memory_space<vmem>>, vector<1x32x32xf32>
    %86 = vector.shape_cast %85 : vector<1x32x32xf32> to vector<32x32xf32>
    %cst_40 = arith.constant dense<0.000000e+00> : vector<16x32xf32>
    %87 = tpu.matmul %84, %86, %cst_40 {dimension_numbers = #tpu.dot_dimension_numbers<[1], [0], [0], [1], [0, 0, 1, 1], [], []>} : vector<16x32xf32>, vector<32x32xf32>, vector<16x32xf32> -> vector<16x32xf32>
    %88 = vector.extract_strided_slice %49 {offsets = [4, 0], sizes = [1, 32], strides = [1, 1]} : vector<6x32xf32> to vector<1x32xf32>
    %89 = vector.broadcast %88 : vector<1x32xf32> to vector<16x32xf32>
    %90 = arith.addf %89, %87 : vector<16x32xf32>
    %91 = arith.mulf %48, %90 : vector<16x32xf32>
    %92 = arith.addf %45, %91 : vector<16x32xf32>
    %93 = vector.extract_strided_slice %56 {offsets = [0, 128], sizes = [16, 32], strides = [1, 1]} : vector<16x160xf32> to vector<16x32xf32>
    %c4 = arith.constant 4 : index
    %c0_41 = arith.constant 0 : index
    %c0_42 = arith.constant 0 : index
    %94 = vector.load %arg6[%c4, %c0_41, %c0_42] : memref<5x32x32xf32, #tpu.memory_space<vmem>>, vector<1x32x32xf32>
    %95 = vector.shape_cast %94 : vector<1x32x32xf32> to vector<32x32xf32>
    %cst_43 = arith.constant dense<0.000000e+00> : vector<16x32xf32>
    %96 = tpu.matmul %93, %95, %cst_43 {dimension_numbers = #tpu.dot_dimension_numbers<[1], [0], [0], [1], [0, 0, 1, 1], [], []>} : vector<16x32xf32>, vector<32x32xf32>, vector<16x32xf32> -> vector<16x32xf32>
    %97 = vector.extract_strided_slice %49 {offsets = [5, 0], sizes = [1, 32], strides = [1, 1]} : vector<6x32xf32> to vector<1x32xf32>
    %98 = vector.broadcast %97 : vector<1x32xf32> to vector<16x32xf32>
    %99 = arith.addf %98, %96 : vector<16x32xf32>
    %100 = arith.mulf %48, %99 : vector<16x32xf32>
    %101 = arith.addf %45, %100 : vector<16x32xf32>
    %c0_44 = arith.constant 0 : index
    %c0_45 = arith.constant 0 : index
    %c0_46 = arith.constant 0 : index
    %102 = vector.load %arg10[%c0_44, %c0_45, %c0_46] : memref<4x32x32xf32, #tpu.memory_space<vmem>>, vector<1x32x32xf32>
    %103 = vector.shape_cast %102 : vector<1x32x32xf32> to vector<32x32xf32>
    %cst_47 = arith.constant dense<0.000000e+00> : vector<16x32xf32>
    %104 = tpu.matmul %92, %103, %cst_47 {dimension_numbers = #tpu.dot_dimension_numbers<[1], [0], [0], [1], [0, 0, 1, 1], [], []>} : vector<16x32xf32>, vector<32x32xf32>, vector<16x32xf32> -> vector<16x32xf32>
    %c1_48 = arith.constant 1 : index
    %c0_49 = arith.constant 0 : index
    %c0_50 = arith.constant 0 : index
    %105 = vector.load %arg10[%c1_48, %c0_49, %c0_50] : memref<4x32x32xf32, #tpu.memory_space<vmem>>, vector<1x32x32xf32>
    %106 = vector.shape_cast %105 : vector<1x32x32xf32> to vector<32x32xf32>
    %cst_51 = arith.constant dense<0.000000e+00> : vector<16x32xf32>
    %107 = tpu.matmul %74, %106, %cst_51 {dimension_numbers = #tpu.dot_dimension_numbers<[1], [0], [0], [1], [0, 0, 1, 1], [], []>} : vector<16x32xf32>, vector<32x32xf32>, vector<16x32xf32> -> vector<16x32xf32>
    %c2_52 = arith.constant 2 : index
    %c0_53 = arith.constant 0 : index
    %c0_54 = arith.constant 0 : index
    %108 = vector.load %arg10[%c2_52, %c0_53, %c0_54] : memref<4x32x32xf32, #tpu.memory_space<vmem>>, vector<1x32x32xf32>
    %109 = vector.shape_cast %108 : vector<1x32x32xf32> to vector<32x32xf32>
    %cst_55 = arith.constant dense<0.000000e+00> : vector<16x32xf32>
    %110 = tpu.matmul %83, %109, %cst_55 {dimension_numbers = #tpu.dot_dimension_numbers<[1], [0], [0], [1], [0, 0, 1, 1], [], []>} : vector<16x32xf32>, vector<32x32xf32>, vector<16x32xf32> -> vector<16x32xf32>
    %c3_56 = arith.constant 3 : index
    %c0_57 = arith.constant 0 : index
    %c0_58 = arith.constant 0 : index
    %111 = vector.load %arg10[%c3_56, %c0_57, %c0_58] : memref<4x32x32xf32, #tpu.memory_space<vmem>>, vector<1x32x32xf32>
    %112 = vector.shape_cast %111 : vector<1x32x32xf32> to vector<32x32xf32>
    %cst_59 = arith.constant dense<0.000000e+00> : vector<16x32xf32>
    %113 = tpu.matmul %101, %112, %cst_59 {dimension_numbers = #tpu.dot_dimension_numbers<[1], [0], [0], [1], [0, 0, 1, 1], [], []>} : vector<16x32xf32>, vector<32x32xf32>, vector<16x32xf32> -> vector<16x32xf32>
    %cst_60 = arith.constant 0.000000e+00 : f32
    %114 = vector.broadcast %cst_60 : f32 to vector<16x32xf32>
    %115 = arith.subf %114, %113 : vector<16x32xf32>
    %116 = math.exp %115 : vector<16x32xf32>
    %cst_61 = arith.constant 1.000000e+00 : f32
    %117 = vector.broadcast %cst_61 : f32 to vector<16x32xf32>
    %118 = arith.addf %117, %116 : vector<16x32xf32>
    %cst_62 = arith.constant 1.000000e+00 : f32
    %119 = vector.broadcast %cst_62 : f32 to vector<16x32xf32>
    %120 = arith.divf %119, %118 : vector<16x32xf32>
    %121 = arith.mulf %113, %120 : vector<16x32xf32>
    %c0_63 = arith.constant 0 : index
    %c0_64 = arith.constant 0 : index
    %122 = vector.load %arg13[%c0_63, %c0_64] : memref<16x32xf32, #tpu.memory_space<vmem>>, vector<16x32xf32>
    tpu.vector_store %arg13[%c0_63, %c0_64], %121 {strides = array<i32>} : memref<16x32xf32, #tpu.memory_space<vmem>>, vector<16x32xf32>,
    %c0_65 = arith.constant 0 : index
    %c0_66 = arith.constant 0 : index
    %123 = vector.load %arg7[%c0_65, %c0_66] : memref<32x64xf32, #tpu.memory_space<vmem>>, vector<32x64xf32>
    %cst_67 = arith.constant dense<0.000000e+00> : vector<16x64xf32>
    %124 = tpu.matmul %65, %123, %cst_67 {dimension_numbers = #tpu.dot_dimension_numbers<[1], [0], [0], [1], [0, 0, 1, 1], [], []>} : vector<16x32xf32>, vector<32x64xf32>, vector<16x64xf32> -> vector<16x64xf32>
    %125 = math.tanh %124 : vector<16x64xf32>
    %c0_68 = arith.constant 0 : index
    %c0_69 = arith.constant 0 : index
    %126 = vector.load %arg8[%c0_68, %c0_69] : memref<64x32xf32, #tpu.memory_space<vmem>>, vector<64x32xf32>
    %cst_70 = arith.constant dense<0.000000e+00> : vector<16x32xf32>
    %127 = tpu.matmul %125, %126, %cst_70 {dimension_numbers = #tpu.dot_dimension_numbers<[1], [0], [0], [1], [0, 0, 1, 1], [], []>} : vector<16x64xf32>, vector<64x32xf32>, vector<16x32xf32> -> vector<16x32xf32>
    %c0_71 = arith.constant 0 : index
    %c0_72 = arith.constant 0 : index
    %128 = vector.load %arg9[%c0_71, %c0_72] : memref<1x32xf32, #tpu.memory_space<vmem>>, vector<1x32xf32>
    %129 = vector.broadcast %128 : vector<1x32xf32> to vector<16x32xf32>
    %130 = arith.addf %129, %127 : vector<16x32xf32>
    %131 = math.exp %130 : vector<16x32xf32>
    %cst_73 = arith.constant 0.000000e+00 : f32
    %132 = vector.broadcast %cst_73 : f32 to vector<16x32xf32>
    %133 = arith.subf %132, %131 : vector<16x32xf32>
    %c0_74 = arith.constant 0 : index
    %c0_75 = arith.constant 0 : index
    %134 = vector.load %arg12[%c0_74, %c0_75] : memref<16x128xf32, #tpu.memory_space<vmem>>, vector<16x32xf32>
    tpu.vector_store %arg12[%c0_74, %c0_75], %104 {strides = array<i32>} : memref<16x128xf32, #tpu.memory_space<vmem>>, vector<16x32xf32>,
    %c0_76 = arith.constant 0 : index
    %c32 = arith.constant 32 : index
    %135 = vector.load %arg12[%c0_76, %c32] : memref<16x128xf32, #tpu.memory_space<vmem>>, vector<16x32xf32>
    tpu.vector_store %arg12[%c0_76, %c32], %107 {strides = array<i32>} : memref<16x128xf32, #tpu.memory_space<vmem>>, vector<16x32xf32>,
    %c0_77 = arith.constant 0 : index
    %c64 = arith.constant 64 : index
    %136 = vector.load %arg12[%c0_77, %c64] : memref<16x128xf32, #tpu.memory_space<vmem>>, vector<16x32xf32>
    tpu.vector_store %arg12[%c0_77, %c64], %110 {strides = array<i32>} : memref<16x128xf32, #tpu.memory_space<vmem>>, vector<16x32xf32>,
    %c0_78 = arith.constant 0 : index
    %c96 = arith.constant 96 : index
    %137 = vector.load %arg12[%c0_78, %c96] : memref<16x128xf32, #tpu.memory_space<vmem>>, vector<16x32xf32>
    tpu.vector_store %arg12[%c0_78, %c96], %133 {strides = array<i32>} : memref<16x128xf32, #tpu.memory_space<vmem>>, vector<16x32xf32>,
    return
  }
  func.func @transform_0(%arg0: i32) -> (i32, i32) {
    %c0_i32 = arith.constant 0 : i32
    %c0_i32_0 = arith.constant 0 : i32
    %c0_i32_1 = arith.constant 0 : i32
    return %c0_i32, %c0_i32_0 : i32, i32
  }
  func.func @transform_1(%arg0: i32) -> (i32, i32) {
    %c0_i32 = arith.constant 0 : i32
    %c0_i32_0 = arith.constant 0 : i32
    %c0_i32_1 = arith.constant 0 : i32
    return %c0_i32, %c0_i32_0 : i32, i32
  }
  func.func @transform_2(%arg0: i32) -> (i32, i32) {
    %c0_i32 = arith.constant 0 : i32
    %c0_i32_0 = arith.constant 0 : i32
    %c0_i32_1 = arith.constant 0 : i32
    return %c0_i32, %c0_i32_0 : i32, i32
  }
  func.func @transform_3(%arg0: i32) -> (i32, i32) {
    %c0_i32 = arith.constant 0 : i32
    %c0_i32_0 = arith.constant 0 : i32
    %c0_i32_1 = arith.constant 0 : i32
    return %c0_i32, %c0_i32_0 : i32, i32
  }
  func.func @transform_4(%arg0: i32) -> (i32, i32) {
    %c0_i32 = arith.constant 0 : i32
    %c0_i32_0 = arith.constant 0 : i32
    %c0_i32_1 = arith.constant 0 : i32
    return %c0_i32, %c0_i32_0 : i32, i32
  }
  func.func @transform_5(%arg0: i32) -> (i32, i32, i32) {
    %c0_i32 = arith.constant 0 : i32
    %c0_i32_0 = arith.constant 0 : i32
    %c0_i32_1 = arith.constant 0 : i32
    %c0_i32_2 = arith.constant 0 : i32
    return %c0_i32, %c0_i32_0, %c0_i32_1 : i32, i32, i32
  }
  func.func @transform_6(%arg0: i32) -> (i32, i32) {
    %c0_i32 = arith.constant 0 : i32
    %c0_i32_0 = arith.constant 0 : i32
    %c0_i32_1 = arith.constant 0 : i32
    return %c0_i32, %c0_i32_0 : i32, i32
  }
  func.func @transform_7(%arg0: i32) -> (i32, i32) {
    %c0_i32 = arith.constant 0 : i32
    %c0_i32_0 = arith.constant 0 : i32
    %c0_i32_1 = arith.constant 0 : i32
    return %c0_i32, %c0_i32_0 : i32, i32
  }
  func.func @transform_8(%arg0: i32) -> (i32, i32) {
    %c0_i32 = arith.constant 0 : i32
    %c0_i32_0 = arith.constant 0 : i32
    %c0_i32_1 = arith.constant 0 : i32
    return %c0_i32, %c0_i32_0 : i32, i32
  }
  func.func @transform_9(%arg0: i32) -> (i32, i32, i32) {
    %c0_i32 = arith.constant 0 : i32
    %c0_i32_0 = arith.constant 0 : i32
    %c0_i32_1 = arith.constant 0 : i32
    %c0_i32_2 = arith.constant 0 : i32
    return %c0_i32, %c0_i32_0, %c0_i32_1 : i32, i32, i32
  }
  func.func @transform_10(%arg0: i32) -> (i32, i32) {
    %c0_i32 = arith.constant 0 : i32
    %c0_i32_0 = arith.constant 0 : i32
    %c0_i32_1 = arith.constant 0 : i32
    return %c0_i32, %c0_i32_0 : i32, i32
  }
  func.func @transform_11(%arg0: i32) -> (i32, i32) {
    %c0_i32 = arith.constant 0 : i32
    %c0_i32_0 = arith.constant 0 : i32
    %c0_i32_1 = arith.constant 0 : i32
    return %c0_i32, %c0_i32_0 : i32, i32
  }
  func.func @transform_12(%arg0: i32) -> (i32, i32) {
    %c0_i32 = arith.constant 0 : i32
    %c0_i32_0 = arith.constant 0 : i32
    %c0_i32_1 = arith.constant 0 : i32
    return %c0_i32, %c0_i32_0 : i32, i32
  }
}

module attributes {stable_mosaic.version = 11 : i64} {
  func.func @_att_post_ffn_kernel(%arg0: i32, %arg1: memref<16x32xf32, #tpu.memory_space<vmem>>, %arg2: memref<16x32xf32, #tpu.memory_space<vmem>>, %arg3: memref<16x32xf32, #tpu.memory_space<vmem>>, %arg4: memref<16x16xf32, #tpu.memory_space<vmem>>, %arg5: memref<2x32xf32, #tpu.memory_space<vmem>>, %arg6: memref<2x32xf32, #tpu.memory_space<vmem>>, %arg7: memref<2x32xf32, #tpu.memory_space<vmem>>, %arg8: memref<32x32xf32, #tpu.memory_space<vmem>>, %arg9: memref<32x64xf32, #tpu.memory_space<vmem>>, %arg10: memref<64x32xf32, #tpu.memory_space<vmem>>, %arg11: memref<32x32xf32, #tpu.memory_space<vmem>>, %arg12: memref<16x32xf32, #tpu.memory_space<vmem>>) attributes {dimension_semantics = [#tpu.dimension_semantics<arbitrary>], iteration_bounds = array<i64: 1>, scalar_prefetch = 0 : i64, scratch_operands = 0 : i64, tpu.core_type = #tpu.core_type<tc>, window_params = [{pipeline_mode = #tpu.pipeline_mode<synchronous>, transform_indices = @transform_0, window_bounds = array<i64: 16, 32>}, {pipeline_mode = #tpu.pipeline_mode<synchronous>, transform_indices = @transform_1, window_bounds = array<i64: 16, 32>}, {pipeline_mode = #tpu.pipeline_mode<synchronous>, transform_indices = @transform_2, window_bounds = array<i64: 16, 32>}, {pipeline_mode = #tpu.pipeline_mode<synchronous>, transform_indices = @transform_3, window_bounds = array<i64: 16, 16>}, {pipeline_mode = #tpu.pipeline_mode<synchronous>, transform_indices = @transform_4, window_bounds = array<i64: 2, 32>}, {pipeline_mode = #tpu.pipeline_mode<synchronous>, transform_indices = @transform_5, window_bounds = array<i64: 2, 32>}, {pipeline_mode = #tpu.pipeline_mode<synchronous>, transform_indices = @transform_6, window_bounds = array<i64: 2, 32>}, {pipeline_mode = #tpu.pipeline_mode<synchronous>, transform_indices = @transform_7, window_bounds = array<i64: 32, 32>}, {pipeline_mode = #tpu.pipeline_mode<synchronous>, transform_indices = @transform_8, window_bounds = array<i64: 32, 64>}, {pipeline_mode = #tpu.pipeline_mode<synchronous>, transform_indices = @transform_9, window_bounds = array<i64: 64, 32>}, {pipeline_mode = #tpu.pipeline_mode<synchronous>, transform_indices = @transform_10, window_bounds = array<i64: 32, 32>}, {pipeline_mode = #tpu.pipeline_mode<synchronous>, transform_indices = @transform_11, window_bounds = array<i64: 16, 32>}]} {
    %c0 = arith.constant 0 : index
    %c0_0 = arith.constant 0 : index
    %0 = vector.load %arg1[%c0, %c0_0] : memref<16x32xf32, #tpu.memory_space<vmem>>, vector<16x32xf32>
    %c0_1 = arith.constant 0 : index
    %c0_2 = arith.constant 0 : index
    %1 = vector.load %arg2[%c0_1, %c0_2] : memref<16x32xf32, #tpu.memory_space<vmem>>, vector<16x32xf32>
    %c0_3 = arith.constant 0 : index
    %c0_4 = arith.constant 0 : index
    %2 = vector.load %arg3[%c0_3, %c0_4] : memref<16x32xf32, #tpu.memory_space<vmem>>, vector<16x32xf32>
    %3 = vector.extract_strided_slice %0 {offsets = [0, 0], sizes = [16, 16], strides = [1, 1]} : vector<16x32xf32> to vector<16x16xf32>
    %cst = arith.constant dense<0.000000e+00> : vector<16xf32>
    %4 = vector.multi_reduction <add>, %3, %cst [1] : vector<16x16xf32> to vector<16xf32>
    %5 = vector.shape_cast %4 : vector<16xf32> to vector<16x1xf32>
    %cst_5 = arith.constant 1.600000e+01 : f32
    %6 = vector.broadcast %cst_5 : f32 to vector<16x1xf32>
    %7 = arith.divf %5, %6 : vector<16x1xf32>
    %8 = vector.broadcast %7 : vector<16x1xf32> to vector<16x16xf32>
    %9 = arith.subf %3, %8 : vector<16x16xf32>
    %10 = arith.mulf %9, %9 : vector<16x16xf32>
    %cst_6 = arith.constant dense<0.000000e+00> : vector<16xf32>
    %11 = vector.multi_reduction <add>, %10, %cst_6 [1] : vector<16x16xf32> to vector<16xf32>
    %12 = vector.shape_cast %11 : vector<16xf32> to vector<16x1xf32>
    %cst_7 = arith.constant 1.600000e+01 : f32
    %13 = vector.broadcast %cst_7 : f32 to vector<16x1xf32>
    %14 = arith.divf %12, %13 : vector<16x1xf32>
    %cst_8 = arith.constant 6.400000e-04 : f32
    %15 = vector.broadcast %cst_8 : f32 to vector<16x1xf32>
    %16 = arith.addf %14, %15 : vector<16x1xf32>
    %17 = math.rsqrt %16 : vector<16x1xf32>
    %18 = vector.broadcast %17 : vector<16x1xf32> to vector<16x16xf32>
    %19 = arith.mulf %9, %18 : vector<16x16xf32>
    %c0_9 = arith.constant 0 : index
    %c0_10 = arith.constant 0 : index
    %20 = vector.load %arg5[%c0_9, %c0_10] : memref<2x32xf32, #tpu.memory_space<vmem>>, vector<1x16xf32>
    %21 = vector.broadcast %20 : vector<1x16xf32> to vector<16x16xf32>
    %22 = arith.mulf %19, %21 : vector<16x16xf32>
    %c1 = arith.constant 1 : index
    %c0_11 = arith.constant 0 : index
    %23 = vector.load %arg5[%c1, %c0_11] : memref<2x32xf32, #tpu.memory_space<vmem>>, vector<1x16xf32>
    %24 = vector.broadcast %23 : vector<1x16xf32> to vector<16x16xf32>
    %25 = arith.addf %22, %24 : vector<16x16xf32>
    %26 = vector.extract_strided_slice %1 {offsets = [0, 0], sizes = [16, 16], strides = [1, 1]} : vector<16x32xf32> to vector<16x16xf32>
    %27 = arith.mulf %25, %26 : vector<16x16xf32>
    %c0_12 = arith.constant 0 : index
    %c0_13 = arith.constant 0 : index
    %28 = vector.load %arg8[%c0_12, %c0_13] : memref<32x32xf32, #tpu.memory_space<vmem>>, vector<16x32xf32>
    %cst_14 = arith.constant dense<0.000000e+00> : vector<16x32xf32>
    %29 = tpu.matmul %27, %28, %cst_14 {dimension_numbers = #tpu.dot_dimension_numbers<[1], [0], [0], [1], [0, 0, 1, 1], [], []>} : vector<16x16xf32>, vector<16x32xf32>, vector<16x32xf32> -> vector<16x32xf32>
    %30 = vector.extract_strided_slice %0 {offsets = [0, 16], sizes = [16, 16], strides = [1, 1]} : vector<16x32xf32> to vector<16x16xf32>
    %cst_15 = arith.constant dense<0.000000e+00> : vector<16xf32>
    %31 = vector.multi_reduction <add>, %30, %cst_15 [1] : vector<16x16xf32> to vector<16xf32>
    %32 = vector.shape_cast %31 : vector<16xf32> to vector<16x1xf32>
    %cst_16 = arith.constant 1.600000e+01 : f32
    %33 = vector.broadcast %cst_16 : f32 to vector<16x1xf32>
    %34 = arith.divf %32, %33 : vector<16x1xf32>
    %35 = vector.broadcast %34 : vector<16x1xf32> to vector<16x16xf32>
    %36 = arith.subf %30, %35 : vector<16x16xf32>
    %37 = arith.mulf %36, %36 : vector<16x16xf32>
    %cst_17 = arith.constant dense<0.000000e+00> : vector<16xf32>
    %38 = vector.multi_reduction <add>, %37, %cst_17 [1] : vector<16x16xf32> to vector<16xf32>
    %39 = vector.shape_cast %38 : vector<16xf32> to vector<16x1xf32>
    %cst_18 = arith.constant 1.600000e+01 : f32
    %40 = vector.broadcast %cst_18 : f32 to vector<16x1xf32>
    %41 = arith.divf %39, %40 : vector<16x1xf32>
    %cst_19 = arith.constant 6.400000e-04 : f32
    %42 = vector.broadcast %cst_19 : f32 to vector<16x1xf32>
    %43 = arith.addf %41, %42 : vector<16x1xf32>
    %44 = math.rsqrt %43 : vector<16x1xf32>
    %45 = vector.broadcast %44 : vector<16x1xf32> to vector<16x16xf32>
    %46 = arith.mulf %36, %45 : vector<16x16xf32>
    %c0_20 = arith.constant 0 : index
    %c16 = arith.constant 16 : index
    %47 = vector.load %arg5[%c0_20, %c16] : memref<2x32xf32, #tpu.memory_space<vmem>>, vector<1x16xf32>
    %48 = vector.broadcast %47 : vector<1x16xf32> to vector<16x16xf32>
    %49 = arith.mulf %46, %48 : vector<16x16xf32>
    %c1_21 = arith.constant 1 : index
    %c16_22 = arith.constant 16 : index
    %50 = vector.load %arg5[%c1_21, %c16_22] : memref<2x32xf32, #tpu.memory_space<vmem>>, vector<1x16xf32>
    %51 = vector.broadcast %50 : vector<1x16xf32> to vector<16x16xf32>
    %52 = arith.addf %49, %51 : vector<16x16xf32>
    %53 = vector.extract_strided_slice %1 {offsets = [0, 16], sizes = [16, 16], strides = [1, 1]} : vector<16x32xf32> to vector<16x16xf32>
    %54 = arith.mulf %52, %53 : vector<16x16xf32>
    %c16_23 = arith.constant 16 : index
    %c0_24 = arith.constant 0 : index
    %55 = vector.load %arg8[%c16_23, %c0_24] : memref<32x32xf32, #tpu.memory_space<vmem>>, vector<16x32xf32>
    %cst_25 = arith.constant dense<0.000000e+00> : vector<16x32xf32>
    %56 = tpu.matmul %54, %55, %cst_25 {dimension_numbers = #tpu.dot_dimension_numbers<[1], [0], [0], [1], [0, 0, 1, 1], [], []>} : vector<16x16xf32>, vector<16x32xf32>, vector<16x32xf32> -> vector<16x32xf32>
    %57 = arith.addf %29, %56 : vector<16x32xf32>
    %58 = arith.addf %2, %57 : vector<16x32xf32>
    %c0_26 = arith.constant 0 : index
    %c0_27 = arith.constant 0 : index
    %59 = vector.load %arg6[%c0_26, %c0_27] : memref<2x32xf32, #tpu.memory_space<vmem>>, vector<1x32xf32>
    %c1_28 = arith.constant 1 : index
    %c0_29 = arith.constant 0 : index
    %60 = vector.load %arg6[%c1_28, %c0_29] : memref<2x32xf32, #tpu.memory_space<vmem>>, vector<1x32xf32>
    %cst_30 = arith.constant dense<0.000000e+00> : vector<16xf32>
    %61 = vector.multi_reduction <add>, %58, %cst_30 [1] : vector<16x32xf32> to vector<16xf32>
    %62 = vector.shape_cast %61 : vector<16xf32> to vector<16x1xf32>
    %cst_31 = arith.constant 3.200000e+01 : f32
    %63 = vector.broadcast %cst_31 : f32 to vector<16x1xf32>
    %64 = arith.divf %62, %63 : vector<16x1xf32>
    %65 = vector.broadcast %64 : vector<16x1xf32> to vector<16x32xf32>
    %66 = arith.subf %58, %65 : vector<16x32xf32>
    %67 = arith.mulf %66, %66 : vector<16x32xf32>
    %cst_32 = arith.constant dense<0.000000e+00> : vector<16xf32>
    %68 = vector.multi_reduction <add>, %67, %cst_32 [1] : vector<16x32xf32> to vector<16xf32>
    %69 = vector.shape_cast %68 : vector<16xf32> to vector<16x1xf32>
    %cst_33 = arith.constant 3.200000e+01 : f32
    %70 = vector.broadcast %cst_33 : f32 to vector<16x1xf32>
    %71 = arith.divf %69, %70 : vector<16x1xf32>
    %cst_34 = arith.constant 9.99999974E-6 : f32
    %72 = vector.broadcast %cst_34 : f32 to vector<16x1xf32>
    %73 = arith.addf %71, %72 : vector<16x1xf32>
    %74 = math.rsqrt %73 : vector<16x1xf32>
    %75 = vector.broadcast %74 : vector<16x1xf32> to vector<16x32xf32>
    %76 = arith.mulf %66, %75 : vector<16x32xf32>
    %77 = vector.broadcast %59 : vector<1x32xf32> to vector<16x32xf32>
    %78 = arith.mulf %76, %77 : vector<16x32xf32>
    %79 = vector.broadcast %60 : vector<1x32xf32> to vector<16x32xf32>
    %80 = arith.addf %78, %79 : vector<16x32xf32>
    %c0_35 = arith.constant 0 : index
    %c0_36 = arith.constant 0 : index
    %81 = vector.load %arg4[%c0_35, %c0_36] : memref<16x16xf32, #tpu.memory_space<vmem>>, vector<16x16xf32>
    %cst_37 = arith.constant dense<0.000000e+00> : vector<16x32xf32>
    %82 = tpu.matmul %81, %80, %cst_37 {dimension_numbers = #tpu.dot_dimension_numbers<[1], [0], [0], [1], [0, 0, 1, 1], [], []>} : vector<16x16xf32>, vector<16x32xf32>, vector<16x32xf32> -> vector<16x32xf32>
    %83 = arith.subf %82, %80 : vector<16x32xf32>
    %c0_38 = arith.constant 0 : index
    %c0_39 = arith.constant 0 : index
    %84 = vector.load %arg7[%c0_38, %c0_39] : memref<2x32xf32, #tpu.memory_space<vmem>>, vector<1x32xf32>
    %85 = vector.broadcast %84 : vector<1x32xf32> to vector<16x32xf32>
    %86 = arith.mulf %83, %85 : vector<16x32xf32>
    %87 = arith.addf %80, %86 : vector<16x32xf32>
    %c1_40 = arith.constant 1 : index
    %c0_41 = arith.constant 0 : index
    %88 = vector.load %arg7[%c1_40, %c0_41] : memref<2x32xf32, #tpu.memory_space<vmem>>, vector<1x32xf32>
    %89 = vector.broadcast %88 : vector<1x32xf32> to vector<16x32xf32>
    %90 = arith.mulf %83, %89 : vector<16x32xf32>
    %91 = arith.addf %80, %90 : vector<16x32xf32>
    %c0_42 = arith.constant 0 : index
    %c0_43 = arith.constant 0 : index
    %92 = vector.load %arg9[%c0_42, %c0_43] : memref<32x64xf32, #tpu.memory_space<vmem>>, vector<32x64xf32>
    %cst_44 = arith.constant dense<0.000000e+00> : vector<16x64xf32>
    %93 = tpu.matmul %87, %92, %cst_44 {dimension_numbers = #tpu.dot_dimension_numbers<[1], [0], [0], [1], [0, 0, 1, 1], [], []>} : vector<16x32xf32>, vector<32x64xf32>, vector<16x64xf32> -> vector<16x64xf32>
    %cst_45 = arith.constant 0.000000e+00 : f32
    %94 = vector.broadcast %cst_45 : f32 to vector<16x64xf32>
    %95 = arith.maximumf %93, %94 : vector<16x64xf32>
    %96 = arith.mulf %95, %95 : vector<16x64xf32>
    %c0_46 = arith.constant 0 : index
    %c0_47 = arith.constant 0 : index
    %97 = vector.load %arg10[%c0_46, %c0_47] : memref<64x32xf32, #tpu.memory_space<vmem>>, vector<64x32xf32>
    %cst_48 = arith.constant dense<0.000000e+00> : vector<16x32xf32>
    %98 = tpu.matmul %96, %97, %cst_48 {dimension_numbers = #tpu.dot_dimension_numbers<[1], [0], [0], [1], [0, 0, 1, 1], [], []>} : vector<16x64xf32>, vector<64x32xf32>, vector<16x32xf32> -> vector<16x32xf32>
    %c0_49 = arith.constant 0 : index
    %c0_50 = arith.constant 0 : index
    %99 = vector.load %arg11[%c0_49, %c0_50] : memref<32x32xf32, #tpu.memory_space<vmem>>, vector<32x32xf32>
    %cst_51 = arith.constant dense<0.000000e+00> : vector<16x32xf32>
    %100 = tpu.matmul %91, %99, %cst_51 {dimension_numbers = #tpu.dot_dimension_numbers<[1], [0], [0], [1], [0, 0, 1, 1], [], []>} : vector<16x32xf32>, vector<32x32xf32>, vector<16x32xf32> -> vector<16x32xf32>
    %cst_52 = arith.constant 0.000000e+00 : f32
    %101 = vector.broadcast %cst_52 : f32 to vector<16x32xf32>
    %102 = arith.subf %101, %100 : vector<16x32xf32>
    %103 = math.exp %102 : vector<16x32xf32>
    %cst_53 = arith.constant 1.000000e+00 : f32
    %104 = vector.broadcast %cst_53 : f32 to vector<16x32xf32>
    %105 = arith.addf %104, %103 : vector<16x32xf32>
    %cst_54 = arith.constant 1.000000e+00 : f32
    %106 = vector.broadcast %cst_54 : f32 to vector<16x32xf32>
    %107 = arith.divf %106, %105 : vector<16x32xf32>
    %108 = arith.mulf %107, %98 : vector<16x32xf32>
    %109 = arith.addf %58, %108 : vector<16x32xf32>
    %c0_55 = arith.constant 0 : index
    %c0_56 = arith.constant 0 : index
    %110 = vector.load %arg12[%c0_55, %c0_56] : memref<16x32xf32, #tpu.memory_space<vmem>>, vector<16x32xf32>
    tpu.vector_store %arg12[%c0_55, %c0_56], %109 {strides = array<i32>} : memref<16x32xf32, #tpu.memory_space<vmem>>, vector<16x32xf32>,
    return
  }
  func.func @transform_0(%arg0: i32) -> (i32, i32) {
    %c0_i32 = arith.constant 0 : i32
    %c0_i32_0 = arith.constant 0 : i32
    %c0_i32_1 = arith.constant 0 : i32
    return %c0_i32, %c0_i32_0 : i32, i32
  }
  func.func @transform_1(%arg0: i32) -> (i32, i32) {
    %c0_i32 = arith.constant 0 : i32
    %c0_i32_0 = arith.constant 0 : i32
    %c0_i32_1 = arith.constant 0 : i32
    return %c0_i32, %c0_i32_0 : i32, i32
  }
  func.func @transform_2(%arg0: i32) -> (i32, i32) {
    %c0_i32 = arith.constant 0 : i32
    %c0_i32_0 = arith.constant 0 : i32
    %c0_i32_1 = arith.constant 0 : i32
    return %c0_i32, %c0_i32_0 : i32, i32
  }
  func.func @transform_3(%arg0: i32) -> (i32, i32) {
    %c0_i32 = arith.constant 0 : i32
    %c0_i32_0 = arith.constant 0 : i32
    %c0_i32_1 = arith.constant 0 : i32
    return %c0_i32, %c0_i32_0 : i32, i32
  }
  func.func @transform_4(%arg0: i32) -> (i32, i32) {
    %c0_i32 = arith.constant 0 : i32
    %c0_i32_0 = arith.constant 0 : i32
    %c0_i32_1 = arith.constant 0 : i32
    return %c0_i32, %c0_i32_0 : i32, i32
  }
  func.func @transform_5(%arg0: i32) -> (i32, i32) {
    %c0_i32 = arith.constant 0 : i32
    %c0_i32_0 = arith.constant 0 : i32
    %c0_i32_1 = arith.constant 0 : i32
    return %c0_i32, %c0_i32_0 : i32, i32
  }
  func.func @transform_6(%arg0: i32) -> (i32, i32) {
    %c0_i32 = arith.constant 0 : i32
    %c0_i32_0 = arith.constant 0 : i32
    %c0_i32_1 = arith.constant 0 : i32
    return %c0_i32, %c0_i32_0 : i32, i32
  }
  func.func @transform_7(%arg0: i32) -> (i32, i32) {
    %c0_i32 = arith.constant 0 : i32
    %c0_i32_0 = arith.constant 0 : i32
    %c0_i32_1 = arith.constant 0 : i32
    return %c0_i32, %c0_i32_0 : i32, i32
  }
  func.func @transform_8(%arg0: i32) -> (i32, i32) {
    %c0_i32 = arith.constant 0 : i32
    %c0_i32_0 = arith.constant 0 : i32
    %c0_i32_1 = arith.constant 0 : i32
    return %c0_i32, %c0_i32_0 : i32, i32
  }
  func.func @transform_9(%arg0: i32) -> (i32, i32) {
    %c0_i32 = arith.constant 0 : i32
    %c0_i32_0 = arith.constant 0 : i32
    %c0_i32_1 = arith.constant 0 : i32
    return %c0_i32, %c0_i32_0 : i32, i32
  }
  func.func @transform_10(%arg0: i32) -> (i32, i32) {
    %c0_i32 = arith.constant 0 : i32
    %c0_i32_0 = arith.constant 0 : i32
    %c0_i32_1 = arith.constant 0 : i32
    return %c0_i32, %c0_i32_0 : i32, i32
  }
  func.func @transform_11(%arg0: i32) -> (i32, i32) {
    %c0_i32 = arith.constant 0 : i32
    %c0_i32_0 = arith.constant 0 : i32
    %c0_i32_1 = arith.constant 0 : i32
    return %c0_i32, %c0_i32_0 : i32, i32
  }
}

module attributes {stable_mosaic.version = 11 : i64} {
  func.func @_wkv_chunk_kernel(%arg0: i32, %arg1: memref<1x8x128xf32, #tpu.memory_space<vmem>>, %arg2: memref<1x32xf32, #tpu.memory_space<vmem>>, %arg3: memref<1x2x16x16xf32, #tpu.memory_space<vmem>>, %arg4: memref<1x8x32xf32, #tpu.memory_space<vmem>>, %arg5: memref<1x2x16x16xf32, #tpu.memory_space<vmem>>) attributes {dimension_semantics = [#tpu.dimension_semantics<parallel>], iteration_bounds = array<i64: 2>, scalar_prefetch = 0 : i64, scratch_operands = 0 : i64, tpu.core_type = #tpu.core_type<tc>, window_params = [{transform_indices = @transform_0, window_bounds = array<i64: 1, 8, 128>}, {pipeline_mode = #tpu.pipeline_mode<synchronous>, transform_indices = @transform_1, window_bounds = array<i64: 1, 32>}, {transform_indices = @transform_2, window_bounds = array<i64: 1, 2, 16, 16>}, {transform_indices = @transform_3, window_bounds = array<i64: 1, 8, 32>}, {transform_indices = @transform_4, window_bounds = array<i64: 1, 2, 16, 16>}]} {
    %0 = tpu.iota {dimensions = array<i32: 0>} : vector<8x8xi32>
    %1 = tpu.iota {dimensions = array<i32: 1>} : vector<8x8xi32>
    %2 = arith.cmpi slt, %1, %0 : vector<8x8xi32>
    %cst = arith.constant 1.000000e+00 : f32
    %cst_0 = arith.constant 0.000000e+00 : f32
    %3 = vector.broadcast %cst : f32 to vector<8x8xf32>
    %4 = vector.broadcast %cst_0 : f32 to vector<8x8xf32>
    %5 = arith.select %2, %3, %4 : vector<8x8xi1>, vector<8x8xf32>
    %6 = tpu.iota {dimensions = array<i32: 0>} : vector<16x16xi32>
    %7 = tpu.iota {dimensions = array<i32: 1>} : vector<16x16xi32>
    %c0 = arith.constant 0 : index
    %c0_1 = arith.constant 0 : index
    %c0_2 = arith.constant 0 : index
    %8 = vector.load %arg1[%c0, %c0_1, %c0_2] : memref<1x8x128xf32, #tpu.memory_space<vmem>>, vector<1x8x128xf32>
    %9 = vector.shape_cast %8 : vector<1x8x128xf32> to vector<8x128xf32>
    %10 = vector.extract_strided_slice %9 {offsets = [0, 0], sizes = [8, 16], strides = [1, 1]} : vector<8x128xf32> to vector<8x16xf32>
    %11 = vector.extract_strided_slice %9 {offsets = [0, 32], sizes = [8, 16], strides = [1, 1]} : vector<8x128xf32> to vector<8x16xf32>
    %12 = vector.extract_strided_slice %9 {offsets = [0, 64], sizes = [8, 16], strides = [1, 1]} : vector<8x128xf32> to vector<8x16xf32>
    %13 = vector.extract_strided_slice %9 {offsets = [0, 96], sizes = [8, 16], strides = [1, 1]} : vector<8x128xf32> to vector<8x16xf32>
    %c0_3 = arith.constant 0 : index
    %c0_4 = arith.constant 0 : index
    %14 = vector.load %arg2[%c0_3, %c0_4] : memref<1x32xf32, #tpu.memory_space<vmem>>, vector<1x16xf32>
    %c0_5 = arith.constant 0 : index
    %c0_6 = arith.constant 0 : index
    %c0_7 = arith.constant 0 : index
    %c0_8 = arith.constant 0 : index
    %15 = vector.load %arg3[%c0_5, %c0_6, %c0_7, %c0_8] : memref<1x2x16x16xf32, #tpu.memory_space<vmem>>, vector<1x1x16x16xf32>
    %16 = vector.shape_cast %15 : vector<1x1x16x16xf32> to vector<16x16xf32>
    %cst_9 = arith.constant dense<0.000000e+00> : vector<8x16xf32>
    %17 = tpu.matmul %5, %13, %cst_9 {dimension_numbers = #tpu.dot_dimension_numbers<[1], [0], [0], [1], [0, 0, 1, 1], [], []>} : vector<8x8xf32>, vector<8x16xf32>, vector<8x16xf32> -> vector<8x16xf32>
    %18 = arith.addf %17, %13 : vector<8x16xf32>
    %19 = math.exp %17 : vector<8x16xf32>
    %20 = arith.mulf %10, %19 : vector<8x16xf32>
    %cst_10 = arith.constant 0.000000e+00 : f32
    %21 = vector.broadcast %cst_10 : f32 to vector<8x16xf32>
    %22 = arith.subf %21, %18 : vector<8x16xf32>
    %23 = math.exp %22 : vector<8x16xf32>
    %24 = arith.mulf %11, %23 : vector<8x16xf32>
    %cst_11 = arith.constant dense<0.000000e+00> : vector<8x8xf32>
    %25 = tpu.matmul %20, %24, %cst_11 {dimension_numbers = #tpu.dot_dimension_numbers<[1], [1], [0], [0], [0, 0, 1, 0], [], []>} : vector<8x16xf32>, vector<8x16xf32>, vector<8x8xf32> -> vector<8x8xf32>
    %26 = vector.broadcast %14 : vector<1x16xf32> to vector<8x16xf32>
    %27 = arith.mulf %10, %26 : vector<8x16xf32>
    %28 = arith.mulf %27, %11 : vector<8x16xf32>
    %cst_12 = arith.constant dense<0.000000e+00> : vector<8xf32>
    %29 = vector.multi_reduction <add>, %28, %cst_12 [1] : vector<8x16xf32> to vector<8xf32>
    %30 = vector.shape_cast %29 : vector<8xf32> to vector<8x1xf32>
    %31 = arith.cmpi slt, %1, %0 : vector<8x8xi32>
    %cst_13 = arith.constant 0.000000e+00 : f32
    %32 = vector.broadcast %cst_13 : f32 to vector<8x8xf32>
    %33 = arith.select %31, %25, %32 : vector<8x8xi1>, vector<8x8xf32>
    %34 = arith.cmpi eq, %1, %0 : vector<8x8xi32>
    %cst_14 = arith.constant 0.000000e+00 : f32
    %35 = vector.shape_cast %30 : vector<8x1xf32> to vector<8x1xf32>
    %36 = vector.broadcast %35 : vector<8x1xf32> to vector<8x8xf32>
    %37 = vector.broadcast %cst_14 : f32 to vector<8x8xf32>
    %38 = arith.select %34, %36, %37 : vector<8x8xi1>, vector<8x8xf32>
    %39 = arith.addf %33, %38 : vector<8x8xf32>
    %cst_15 = arith.constant dense<0.000000e+00> : vector<8x16xf32>
    %40 = tpu.matmul %39, %12, %cst_15 {dimension_numbers = #tpu.dot_dimension_numbers<[1], [0], [0], [1], [0, 0, 1, 1], [], []>} : vector<8x8xf32>, vector<8x16xf32>, vector<8x16xf32> -> vector<8x16xf32>
    %cst_16 = arith.constant dense<0.000000e+00> : vector<8x16xf32>
    %41 = tpu.matmul %20, %16, %cst_16 {dimension_numbers = #tpu.dot_dimension_numbers<[1], [0], [0], [1], [0, 0, 1, 1], [], []>} : vector<8x16xf32>, vector<16x16xf32>, vector<8x16xf32> -> vector<8x16xf32>
    %42 = arith.addf %40, %41 : vector<8x16xf32>
    %c0_17 = arith.constant 0 : index
    %c0_18 = arith.constant 0 : index
    %c0_19 = arith.constant 0 : index
    %43 = vector.load %arg4[%c0_17, %c0_18, %c0_19] : memref<1x8x32xf32, #tpu.memory_space<vmem>>, vector<1x8x16xf32>
    %44 = vector.shape_cast %43 : vector<1x8x16xf32> to vector<8x16xf32>
    %45 = vector.shape_cast %42 : vector<8x16xf32> to vector<1x8x16xf32>
    tpu.vector_store %arg4[%c0_17, %c0_18, %c0_19], %45 {strides = array<i32>} : memref<1x8x32xf32, #tpu.memory_space<vmem>>, vector<1x8x16xf32>,
    %cst_20 = arith.constant dense<0.000000e+00> : vector<16xf32>
    %46 = vector.multi_reduction <add>, %13, %cst_20 [0] : vector<8x16xf32> to vector<16xf32>
    %47 = vector.shape_cast %46 : vector<16xf32> to vector<1x16xf32>
    %48 = math.exp %47 : vector<1x16xf32>
    %49 = vector.broadcast %48 : vector<1x16xf32> to vector<8x16xf32>
    %50 = arith.mulf %24, %49 : vector<8x16xf32>
    %cst_21 = arith.constant dense<0.000000e+00> : vector<16x16xf32>
    %51 = tpu.matmul %50, %12, %cst_21 {dimension_numbers = #tpu.dot_dimension_numbers<[0], [0], [1], [1], [0, 1, 1, 1], [], []>} : vector<8x16xf32>, vector<8x16xf32>, vector<16x16xf32> -> vector<16x16xf32>
    %52 = arith.cmpi eq, %6, %7 : vector<16x16xi32>
    %53 = math.exp %47 : vector<1x16xf32>
    %cst_22 = arith.constant 0.000000e+00 : f32
    %54 = vector.shape_cast %53 : vector<1x16xf32> to vector<1x16xf32>
    %55 = vector.broadcast %54 : vector<1x16xf32> to vector<16x16xf32>
    %56 = vector.broadcast %cst_22 : f32 to vector<16x16xf32>
    %57 = arith.select %52, %55, %56 : vector<16x16xi1>, vector<16x16xf32>
    %cst_23 = arith.constant dense<0.000000e+00> : vector<16x16xf32>
    %58 = tpu.matmul %57, %16, %cst_23 {dimension_numbers = #tpu.dot_dimension_numbers<[1], [0], [0], [1], [0, 0, 1, 1], [], []>} : vector<16x16xf32>, vector<16x16xf32>, vector<16x16xf32> -> vector<16x16xf32>
    %59 = arith.addf %51, %58 : vector<16x16xf32>
    %c0_24 = arith.constant 0 : index
    %c0_25 = arith.constant 0 : index
    %c0_26 = arith.constant 0 : index
    %c0_27 = arith.constant 0 : index
    %60 = vector.load %arg5[%c0_24, %c0_25, %c0_26, %c0_27] : memref<1x2x16x16xf32, #tpu.memory_space<vmem>>, vector<1x1x16x16xf32>
    %61 = vector.shape_cast %60 : vector<1x1x16x16xf32> to vector<16x16xf32>
    %62 = vector.shape_cast %59 : vector<16x16xf32> to vector<1x1x16x16xf32>
    tpu.vector_store %arg5[%c0_24, %c0_25, %c0_26, %c0_27], %62 {strides = array<i32>} : memref<1x2x16x16xf32, #tpu.memory_space<vmem>>, vector<1x1x16x16xf32>,
    %63 = vector.extract_strided_slice %9 {offsets = [0, 16], sizes = [8, 16], strides = [1, 1]} : vector<8x128xf32> to vector<8x16xf32>
    %64 = vector.extract_strided_slice %9 {offsets = [0, 48], sizes = [8, 16], strides = [1, 1]} : vector<8x128xf32> to vector<8x16xf32>
    %65 = vector.extract_strided_slice %9 {offsets = [0, 80], sizes = [8, 16], strides = [1, 1]} : vector<8x128xf32> to vector<8x16xf32>
    %66 = vector.extract_strided_slice %9 {offsets = [0, 112], sizes = [8, 16], strides = [1, 1]} : vector<8x128xf32> to vector<8x16xf32>
    %c0_28 = arith.constant 0 : index
    %c16 = arith.constant 16 : index
    %67 = vector.load %arg2[%c0_28, %c16] : memref<1x32xf32, #tpu.memory_space<vmem>>, vector<1x16xf32>
    %c0_29 = arith.constant 0 : index
    %c1 = arith.constant 1 : index
    %c0_30 = arith.constant 0 : index
    %c0_31 = arith.constant 0 : index
    %68 = vector.load %arg3[%c0_29, %c1, %c0_30, %c0_31] : memref<1x2x16x16xf32, #tpu.memory_space<vmem>>, vector<1x1x16x16xf32>
    %69 = vector.shape_cast %68 : vector<1x1x16x16xf32> to vector<16x16xf32>
    %cst_32 = arith.constant dense<0.000000e+00> : vector<8x16xf32>
    %70 = tpu.matmul %5, %66, %cst_32 {dimension_numbers = #tpu.dot_dimension_numbers<[1], [0], [0], [1], [0, 0, 1, 1], [], []>} : vector<8x8xf32>, vector<8x16xf32>, vector<8x16xf32> -> vector<8x16xf32>
    %71 = arith.addf %70, %66 : vector<8x16xf32>
    %72 = math.exp %70 : vector<8x16xf32>
    %73 = arith.mulf %63, %72 : vector<8x16xf32>
    %cst_33 = arith.constant 0.000000e+00 : f32
    %74 = vector.broadcast %cst_33 : f32 to vector<8x16xf32>
    %75 = arith.subf %74, %71 : vector<8x16xf32>
    %76 = math.exp %75 : vector<8x16xf32>
    %77 = arith.mulf %64, %76 : vector<8x16xf32>
    %cst_34 = arith.constant dense<0.000000e+00> : vector<8x8xf32>
    %78 = tpu.matmul %73, %77, %cst_34 {dimension_numbers = #tpu.dot_dimension_numbers<[1], [1], [0], [0], [0, 0, 1, 0], [], []>} : vector<8x16xf32>, vector<8x16xf32>, vector<8x8xf32> -> vector<8x8xf32>
    %79 = vector.broadcast %67 : vector<1x16xf32> to vector<8x16xf32>
    %80 = arith.mulf %63, %79 : vector<8x16xf32>
    %81 = arith.mulf %80, %64 : vector<8x16xf32>
    %cst_35 = arith.constant dense<0.000000e+00> : vector<8xf32>
    %82 = vector.multi_reduction <add>, %81, %cst_35 [1] : vector<8x16xf32> to vector<8xf32>
    %83 = vector.shape_cast %82 : vector<8xf32> to vector<8x1xf32>
    %84 = arith.cmpi slt, %1, %0 : vector<8x8xi32>
    %cst_36 = arith.constant 0.000000e+00 : f32
    %85 = vector.broadcast %cst_36 : f32 to vector<8x8xf32>
    %86 = arith.select %84, %78, %85 : vector<8x8xi1>, vector<8x8xf32>
    %87 = arith.cmpi eq, %1, %0 : vector<8x8xi32>
    %cst_37 = arith.constant 0.000000e+00 : f32
    %88 = vector.shape_cast %83 : vector<8x1xf32> to vector<8x1xf32>
    %89 = vector.broadcast %88 : vector<8x1xf32> to vector<8x8xf32>
    %90 = vector.broadcast %cst_37 : f32 to vector<8x8xf32>
    %91 = arith.select %87, %89, %90 : vector<8x8xi1>, vector<8x8xf32>
    %92 = arith.addf %86, %91 : vector<8x8xf32>
    %cst_38 = arith.constant dense<0.000000e+00> : vector<8x16xf32>
    %93 = tpu.matmul %92, %65, %cst_38 {dimension_numbers = #tpu.dot_dimension_numbers<[1], [0], [0], [1], [0, 0, 1, 1], [], []>} : vector<8x8xf32>, vector<8x16xf32>, vector<8x16xf32> -> vector<8x16xf32>
    %cst_39 = arith.constant dense<0.000000e+00> : vector<8x16xf32>
    %94 = tpu.matmul %73, %69, %cst_39 {dimension_numbers = #tpu.dot_dimension_numbers<[1], [0], [0], [1], [0, 0, 1, 1], [], []>} : vector<8x16xf32>, vector<16x16xf32>, vector<8x16xf32> -> vector<8x16xf32>
    %95 = arith.addf %93, %94 : vector<8x16xf32>
    %c0_40 = arith.constant 0 : index
    %c0_41 = arith.constant 0 : index
    %c16_42 = arith.constant 16 : index
    %96 = vector.load %arg4[%c0_40, %c0_41, %c16_42] : memref<1x8x32xf32, #tpu.memory_space<vmem>>, vector<1x8x16xf32>
    %97 = vector.shape_cast %96 : vector<1x8x16xf32> to vector<8x16xf32>
    %98 = vector.shape_cast %95 : vector<8x16xf32> to vector<1x8x16xf32>
    tpu.vector_store %arg4[%c0_40, %c0_41, %c16_42], %98 {strides = array<i32>} : memref<1x8x32xf32, #tpu.memory_space<vmem>>, vector<1x8x16xf32>,
    %cst_43 = arith.constant dense<0.000000e+00> : vector<16xf32>
    %99 = vector.multi_reduction <add>, %66, %cst_43 [0] : vector<8x16xf32> to vector<16xf32>
    %100 = vector.shape_cast %99 : vector<16xf32> to vector<1x16xf32>
    %101 = math.exp %100 : vector<1x16xf32>
    %102 = vector.broadcast %101 : vector<1x16xf32> to vector<8x16xf32>
    %103 = arith.mulf %77, %102 : vector<8x16xf32>
    %cst_44 = arith.constant dense<0.000000e+00> : vector<16x16xf32>
    %104 = tpu.matmul %103, %65, %cst_44 {dimension_numbers = #tpu.dot_dimension_numbers<[0], [0], [1], [1], [0, 1, 1, 1], [], []>} : vector<8x16xf32>, vector<8x16xf32>, vector<16x16xf32> -> vector<16x16xf32>
    %105 = arith.cmpi eq, %6, %7 : vector<16x16xi32>
    %106 = math.exp %100 : vector<1x16xf32>
    %cst_45 = arith.constant 0.000000e+00 : f32
    %107 = vector.shape_cast %106 : vector<1x16xf32> to vector<1x16xf32>
    %108 = vector.broadcast %107 : vector<1x16xf32> to vector<16x16xf32>
    %109 = vector.broadcast %cst_45 : f32 to vector<16x16xf32>
    %110 = arith.select %105, %108, %109 : vector<16x16xi1>, vector<16x16xf32>
    %cst_46 = arith.constant dense<0.000000e+00> : vector<16x16xf32>
    %111 = tpu.matmul %110, %69, %cst_46 {dimension_numbers = #tpu.dot_dimension_numbers<[1], [0], [0], [1], [0, 0, 1, 1], [], []>} : vector<16x16xf32>, vector<16x16xf32>, vector<16x16xf32> -> vector<16x16xf32>
    %112 = arith.addf %104, %111 : vector<16x16xf32>
    %c0_47 = arith.constant 0 : index
    %c1_48 = arith.constant 1 : index
    %c0_49 = arith.constant 0 : index
    %c0_50 = arith.constant 0 : index
    %113 = vector.load %arg5[%c0_47, %c1_48, %c0_49, %c0_50] : memref<1x2x16x16xf32, #tpu.memory_space<vmem>>, vector<1x1x16x16xf32>
    %114 = vector.shape_cast %113 : vector<1x1x16x16xf32> to vector<16x16xf32>
    %115 = vector.shape_cast %112 : vector<16x16xf32> to vector<1x1x16x16xf32>
    tpu.vector_store %arg5[%c0_47, %c1_48, %c0_49, %c0_50], %115 {strides = array<i32>} : memref<1x2x16x16xf32, #tpu.memory_space<vmem>>, vector<1x1x16x16xf32>,
    return
  }
  func.func @transform_0(%arg0: i32) -> (i32, i32, i32) {
    %c0_i32 = arith.constant 0 : i32
    %c0_i32_0 = arith.constant 0 : i32
    %c0_i32_1 = arith.constant 0 : i32
    return %arg0, %c0_i32, %c0_i32_0 : i32, i32, i32
  }
  func.func @transform_1(%arg0: i32) -> (i32, i32) {
    %c0_i32 = arith.constant 0 : i32
    %c0_i32_0 = arith.constant 0 : i32
    %c0_i32_1 = arith.constant 0 : i32
    return %c0_i32, %c0_i32_0 : i32, i32
  }
  func.func @transform_2(%arg0: i32) -> (i32, i32, i32, i32) {
    %c0_i32 = arith.constant 0 : i32
    %c0_i32_0 = arith.constant 0 : i32
    %c0_i32_1 = arith.constant 0 : i32
    %c0_i32_2 = arith.constant 0 : i32
    return %arg0, %c0_i32, %c0_i32_0, %c0_i32_1 : i32, i32, i32, i32
  }
  func.func @transform_3(%arg0: i32) -> (i32, i32, i32) {
    %c0_i32 = arith.constant 0 : i32
    %c0_i32_0 = arith.constant 0 : i32
    %c0_i32_1 = arith.constant 0 : i32
    return %arg0, %c0_i32, %c0_i32_0 : i32, i32, i32
  }
  func.func @transform_4(%arg0: i32) -> (i32, i32, i32, i32) {
    %c0_i32 = arith.constant 0 : i32
    %c0_i32_0 = arith.constant 0 : i32
    %c0_i32_1 = arith.constant 0 : i32
    %c0_i32_2 = arith.constant 0 : i32
    return %arg0, %c0_i32, %c0_i32_0, %c0_i32_1 : i32, i32, i32, i32
  }
}

</mosaic_0001>

<llo_original>
// kernel: _lambda_.5
$region0: #{_lambda_.5}
  #allocation0 [shape = 'u32[]', space=smem, size = 0x4, offset = 0x4, fixed_abs, tag = 'smem constant byte address 0x4 - core index']
  #allocation1 [shape = 'u32[144,128]{1,0:T(1,128)}', space=vmem, size = 0x12000, scoped, tag = 'internal scratch']
  %s0 = inlined_call_operand.vmem [shape: f32[16,32], index: 0, kind: input, shape index: {}]
  %s1 = inlined_call_operand.vmem [shape: f32[16,32], index: 1, kind: input, shape index: {}]
  %s2 = inlined_call_operand.vmem [shape: f32[16,32], index: 2, kind: input, shape index: {}]
  %s3 = inlined_call_operand.vmem [shape: f32[16,16], index: 3, kind: input, shape index: {}]
  %s4 = inlined_call_operand.vmem [shape: f32[2,32], index: 4, kind: input, shape index: {}]
  %s5 = inlined_call_operand.vmem [shape: f32[2,32], index: 5, kind: input, shape index: {}]
  %s6 = inlined_call_operand.vmem [shape: f32[2,32], index: 6, kind: input, shape index: {}]
  %s7 = inlined_call_operand.vmem [shape: f32[32,32], index: 7, kind: input, shape index: {}]
  %s8 = inlined_call_operand.vmem [shape: f32[32,64], index: 8, kind: input, shape index: {}]
  %s9 = inlined_call_operand.vmem [shape: f32[64,32], index: 9, kind: input, shape index: {}]
  %s10 = inlined_call_operand.vmem [shape: f32[32,32], index: 10, kind: input, shape index: {}]
  %s11 = inlined_call_operand.hbm [shape: f32[16,32], index: 11, kind: output, shape index: {}]
  %s12 = sld [smem:[#allocation0]]
  $region54: #{_lambda_.5} parent=0
    _
  %s14 = ssub.s32 1, %s12
  %s15 = scalar_select 0, %s14, %s12
  $region1: #{_lambda_.5} parent=0
    #allocation2 [shape = 'u8[8192]{0}', space=vmem, size = 0x2000, scoped, tag = 'output window, operand 0, single buffered']
    #allocation3 [shape = 's32[1]{0}', space=sflag, size = 0x4, scoped, tag = 'scoped memory for _lambda_.5']
    %16 = vsyncpa [#allocation3], 0
    // Predicated region
    $region2: #{_lambda_.5} parent=1 // pred_check
      _
    $region3: #{_lambda_.5} parent=1 // pred_check_branch
      %18 = sbr.rel (0) target = $region5
    $region4: #{_lambda_.5} parent=1 // pred_region
      _
    $region5: #{_lambda_.5} parent=1 // pred_fallthru
      _
    // Predicated region
    $region6: #{_lambda_.5} parent=1 // pred_check
      _
    $region7: #{_lambda_.5} parent=1 // pred_check_branch
      %20 = sbr.rel (0) target = $region9
    $region8: #{_lambda_.5} parent=1 // pred_region
      _
    $region9: #{_lambda_.5} parent=1 // pred_fallthru
      _
    // Predicated region
    $region10: #{_lambda_.5} parent=1 // pred_check
      _
    $region11: #{_lambda_.5} parent=1 // pred_check_branch
      %22 = sbr.rel (0) target = $region13
    $region12: #{_lambda_.5} parent=1 // pred_region
      _
    $region13: #{_lambda_.5} parent=1 // pred_fallthru
      _
    // Predicated region
    $region14: #{_lambda_.5} parent=1 // pred_check
      _
    $region15: #{_lambda_.5} parent=1 // pred_check_branch
      %24 = sbr.rel (0) target = $region17
    $region16: #{_lambda_.5} parent=1 // pred_region
      _
    $region17: #{_lambda_.5} parent=1 // pred_fallthru
      _
    // Predicated region
    $region18: #{_lambda_.5} parent=1 // pred_check
      _
    $region19: #{_lambda_.5} parent=1 // pred_check_branch
      %26 = sbr.rel (0) target = $region21
    $region20: #{_lambda_.5} parent=1 // pred_region
      _
    $region21: #{_lambda_.5} parent=1 // pred_fallthru
      _
    // Predicated region
    $region22: #{_lambda_.5} parent=1 // pred_check
      _
    $region23: #{_lambda_.5} parent=1 // pred_check_branch
      %28 = sbr.rel (0) target = $region25
    $region24: #{_lambda_.5} parent=1 // pred_region
      _
    $region25: #{_lambda_.5} parent=1 // pred_fallthru
      _
    // Predicated region
    $region26: #{_lambda_.5} parent=1 // pred_check
      _
    $region27: #{_lambda_.5} parent=1 // pred_check_branch
      %30 = sbr.rel (0) target = $region29
    $region28: #{_lambda_.5} parent=1 // pred_region
      _
    $region29: #{_lambda_.5} parent=1 // pred_fallthru
      _
    // Predicated region
    $region30: #{_lambda_.5} parent=1 // pred_check
      _
    $region31: #{_lambda_.5} parent=1 // pred_check_branch
      %32 = sbr.rel (0) target = $region33
    $region32: #{_lambda_.5} parent=1 // pred_region
      _
    $region33: #{_lambda_.5} parent=1 // pred_fallthru
      _
    // Predicated region
    $region34: #{_lambda_.5} parent=1 // pred_check
      _
    $region35: #{_lambda_.5} parent=1 // pred_check_branch
      %34 = sbr.rel (0) target = $region37
    $region36: #{_lambda_.5} parent=1 // pred_region
      _
    $region37: #{_lambda_.5} parent=1 // pred_fallthru
      _
    // Predicated region
    $region38: #{_lambda_.5} parent=1 // pred_check
      _
    $region39: #{_lambda_.5} parent=1 // pred_check_branch
      %36 = sbr.rel (0) target = $region41
    $region40: #{_lambda_.5} parent=1 // pred_region
      _
    $region41: #{_lambda_.5} parent=1 // pred_fallthru
      _
    // Predicated region
    $region42: #{_lambda_.5} parent=1 // pred_check
      _
    $region43: #{_lambda_.5} parent=1 // pred_check_branch
      %38 = sbr.rel (0) target = $region45
    $region44: #{_lambda_.5} parent=1 // pred_region
      _
    $region45: #{_lambda_.5} parent=1 // pred_fallthru
      _
    %v39 = vld [vmem:[%s0] sm:$0xff]
    %v40 = vld [vmem:[%s0 + $0x8] sm:$0xff]
    %v41 = vld [vmem:[%s1] sm:$0xff]
    %v42 = vld [vmem:[%s1 + $0x8] sm:$0xff]
    %v43 = vld [vmem:[%s2] sm:$0xff]
    %v44 = vld [vmem:[%s2 + $0x8] sm:$0xff]
    %vm45 = vcmask 130048
    %v46 = vsel %vm45, %v39, 0.0
    %47 = vadd.xlane.f32.xlu0 %v46
    %v48 = vpop.xlane.xlu0 %47
    %v49 = vsel %vm45, %v40, 0.0
    %50 = vadd.xlane.f32.xlu0 %v49
    %v51 = vpop.xlane.xlu0 %50
    %v52 = vrcp.pop 16.0
    %v53 = vmul.f32 %v48, %v52
    %v54 = vmul.f32 %v51, %v52
    %v55 = vsub.f32 %v39, %v53
    %v56 = vsub.f32 %v40, %v54
    %v57 = vmul.f32 %v55, %v55
    %v58 = vmul.f32 %v56, %v56
    %v59 = vsel %vm45, %v57, 0.0
    %60 = vadd.xlane.f32.xlu0 %v59
    %v61 = vpop.xlane.xlu0 %60
    %v62 = vsel %vm45, %v58, 0.0
    %63 = vadd.xlane.f32.xlu0 %v62
    %v64 = vpop.xlane.xlu0 %63
    %v65 = vmul.f32 %v61, %v52
    %v66 = vmul.f32 %v64, %v52
    %v67 = vadd.f32 %v65, 0.00064
    %v68 = vadd.f32 %v66, 0.00064
    %v69 = vrsqrt.pop %v67
    %v70 = vrsqrt.pop %v68
    %v71 = vmul.f32 %v55, %v69
    %v72 = vmul.f32 %v56, %v70
    %v73 = vld [vmem:[%s4] sm:$0x1]
    %v74 = vlaneseq
    %v75 = vshrl.u32 %v74, 7
    %v76 = vsub.s32 0, %v75
    %v77 = vrot.slane %v73, %v76
    %v78 = vmul.f32 %v71, %v77
    %v79 = vmul.f32 %v72, %v77
    %v80 = vld [vmem:[%s4 + $0x1] sm:$0x1]
    %v81 = vlaneseq
    %v82 = vshrl.u32 %v81, 7
    %v83 = vsub.s32 0, %v82
    %v84 = vrot.slane %v80, %v83
    %v85 = vadd.f32 %v78, %v84
    %v86 = vadd.f32 %v79, %v84
    %v87 = vmul.f32 %v85, %v41
    %v88 = vmul.f32 %v86, %v42
    %v89 = vld [vmem:[%s7] sm:$0xff]
    %v90 = vld [vmem:[%s7 + $0x8] sm:$0xff]
    %93 = vrot.lane.b32.xlu0 %v39, 112
    %v94 = vpop.permute.xlu0 %93
    %95 = vrot.lane.b32.xlu0 %v40, 112
    %v96 = vpop.permute.xlu0 %95
    %v99 = vsel %vm45, %v94, 0.0
    %100 = vadd.xlane.f32.xlu0 %v99
    %v101 = vpop.xlane.xlu0 %100
    %v102 = vsel %vm45, %v96, 0.0
    %103 = vadd.xlane.f32.xlu0 %v102
    %v104 = vpop.xlane.xlu0 %103
    %v105 = vmul.f32 %v101, %v52
    %v106 = vmul.f32 %v104, %v52
    %v107 = vsub.f32 %v39, %v105
    %v108 = vsub.f32 %v40, %v106
    %v109 = vmul.f32 %v107, %v107
    %v110 = vmul.f32 %v108, %v108
    %113 = vrot.lane.b32.xlu0 %v109, 112
    %v114 = vpop.permute.xlu0 %113
    %115 = vrot.lane.b32.xlu0 %v110, 112
    %v116 = vpop.permute.xlu0 %115
    %v119 = vsel %vm45, %v114, 0.0
    %120 = vadd.xlane.f32.xlu0 %v119
    %v121 = vpop.xlane.xlu0 %120
    %v122 = vsel %vm45, %v116, 0.0
    %123 = vadd.xlane.f32.xlu0 %v122
    %v124 = vpop.xlane.xlu0 %123
    %v125 = vmul.f32 %v121, %v52
    %v126 = vmul.f32 %v124, %v52
    %v127 = vadd.f32 %v125, 0.00064
    %v128 = vadd.f32 %v126, 0.00064
    %v129 = vrsqrt.pop %v127
    %v130 = vrsqrt.pop %v128
    %v131 = vmul.f32 %v107, %v129
    %v132 = vmul.f32 %v108, %v130
    %v133 = vmul.f32 %v131, %v77
    %v134 = vmul.f32 %v132, %v77
    %v135 = vadd.f32 %v133, %v84
    %v136 = vadd.f32 %v134, %v84
    %v137 = vmul.f32 %v135, %v41
    %v138 = vmul.f32 %v136, %v42
    %v139 = vld [vmem:[%s7 + $0x10] sm:$0xff]
    %v140 = vld [vmem:[%s7 + $0x18] sm:$0xff]
    %143 = vrot.lane.b32.xlu0 %v137, 112
    %v144 = vpop.permute.xlu0 %143
    %145 = vrot.lane.b32.xlu0 %v138, 112
    %v146 = vpop.permute.xlu0 %145
    %v147 = vsel %vm45, %v144, 0
    %v149 = vsel %vm45, %v146, 0
    %151 = vmatprep.subr.mxu0 0.0
    %152 = vmatpush1.msra.mxu0 0.0
    %153 = vmatprep.subr.mxu0 0.0
    %154 = vmatpush1.msra.mxu0 0.0
    %155 = vmatprep.subr.mxu0 0.0
    %156 = vmatpush1.msra.mxu0 0.0
    %157 = vmatprep.subr.mxu0 0.0
    %158 = vmatpush1.msra.mxu0 0.0
    %159 = vmatprep.subr.mxu0 0.0
    %160 = vmatpush1.msra.mxu0 0.0
    %161 = vmatprep.subr.mxu0 0.0
    %162 = vmatpush1.msra.mxu0 0.0
    %163 = vmatprep.subr.mxu0 0.0
    %164 = vmatpush1.msra.mxu0 0.0
    %165 = vmatprep.subr.mxu0 0.0
    %166 = vmatpush1.msra.mxu0 0.0
    %167 = vmatprep.subr.mxu0 0.0
    %168 = vmatpush1.msra.mxu0 0.0
    %169 = vmatprep.subr.mxu0 0.0
    %170 = vmatpush1.msra.mxu0 0.0
    %171 = vmatprep.subr.mxu0 0.0
    %172 = vmatpush1.msra.mxu0 0.0
    %173 = vmatprep.subr.mxu0 0.0
    %174 = vmatpush1.msra.mxu0 0.0
    %175 = vmatprep.subr.mxu0 0.0
    %176 = vmatpush1.msra.mxu0 0.0
    %177 = vmatprep.subr.mxu0 0.0
    %178 = vmatpush1.msra.mxu0 0.0
    %179 = vmatprep.subr.mxu0 0.0
    %180 = vmatpush1.msra.mxu0 %v140
    %181 = vmatprep.subr.mxu0 0.0
    %182 = vmatpush1.msra.mxu0 %v139
    %183 = vmatprep.subr.mxu0 0.0
    %184 = vmatpush2.msra.mxu0 0.0
    %185 = vmatprep.subr.mxu0 0.0
    %186 = vmatpush2.msra.mxu0 0.0
    %187 = vmatprep.subr.mxu0 0.0
    %188 = vmatpush2.msra.mxu0 0.0
    %189 = vmatprep.subr.mxu0 0.0
    %190 = vmatpush2.msra.mxu0 0.0
    %191 = vmatprep.subr.mxu0 0.0
    %192 = vmatpush2.msra.mxu0 0.0
    %193 = vmatprep.subr.mxu0 0.0
    %194 = vmatpush2.msra.mxu0 0.0
    %195 = vmatprep.subr.mxu0 0.0
    %196 = vmatpush2.msra.mxu0 0.0
    %197 = vmatprep.subr.mxu0 0.0
    %198 = vmatpush2.msra.mxu0 0.0
    %199 = vmatprep.subr.mxu0 0.0
    %200 = vmatpush2.msra.mxu0 0.0
    %201 = vmatprep.subr.mxu0 0.0
    %202 = vmatpush2.msra.mxu0 0.0
    %203 = vmatprep.subr.mxu0 0.0
    %204 = vmatpush2.msra.mxu0 0.0
    %205 = vmatprep.subr.mxu0 0.0
    %206 = vmatpush2.msra.mxu0 0.0
    %207 = vmatprep.subr.mxu0 0.0
    %208 = vmatpush2.msra.mxu0 0.0
    %209 = vmatprep.subr.mxu0 0.0
    %210 = vmatpush2.msra.mxu0 0.0
    %211 = vmatprep.subr.mxu0 0.0
    %212 = vmatpush2.msra.mxu0 0.0
    %213 = vmatprep.subr.mxu0 0.0
    %214 = vmatpush2.msra.mxu0 0.0
    %215 = vmatprep.mubr.f32.mxu0 0.0
    %216 = vmatmul.mubr.f32.gmra.mxu0 %v147
    %v217 = vpop.f32.mrf.mxu0
    %v218 = vadd.f32 0.0, %v217
    %v219 = vpop.f32.mrf.mxu0
    %220 = vmatprep.mubr.f32.mxu0 0.0
    %221 = vmatmul.mubr.f32.gmra.mxu0 %v149
    %v222 = vpop.f32.mrf.mxu0
    %v223 = vadd.f32 0.0, %v222
    %v224 = vpop.f32.mrf.mxu0
    %225 = vdwg.mxu0
    %v227 = vsel %vm45, %v87, 0
    %v230 = vsel %vm45, %v88, 0
    %232 = vmatprep.subr.mxu0 0.0
    %233 = vmatpush1.msra.mxu0 0.0
    %234 = vmatprep.subr.mxu0 0.0
    %235 = vmatpush1.msra.mxu0 0.0
    %236 = vmatprep.subr.mxu0 0.0
    %237 = vmatpush1.msra.mxu0 0.0
    %238 = vmatprep.subr.mxu0 0.0
    %239 = vmatpush1.msra.mxu0 0.0
    %240 = vmatprep.subr.mxu0 0.0
    %241 = vmatpush1.msra.mxu0 0.0
    %242 = vmatprep.subr.mxu0 0.0
    %243 = vmatpush1.msra.mxu0 0.0
    %244 = vmatprep.subr.mxu0 0.0
    %245 = vmatpush1.msra.mxu0 0.0
    %246 = vmatprep.subr.mxu0 0.0
    %247 = vmatpush1.msra.mxu0 0.0
    %248 = vmatprep.subr.mxu0 0.0
    %249 = vmatpush1.msra.mxu0 0.0
    %250 = vmatprep.subr.mxu0 0.0
    %251 = vmatpush1.msra.mxu0 0.0
    %252 = vmatprep.subr.mxu0 0.0
    %253 = vmatpush1.msra.mxu0 0.0
    %254 = vmatprep.subr.mxu0 0.0
    %255 = vmatpush1.msra.mxu0 0.0
    %256 = vmatprep.subr.mxu0 0.0
    %257 = vmatpush1.msra.mxu0 0.0
    %258 = vmatprep.subr.mxu0 0.0
    %259 = vmatpush1.msra.mxu0 0.0
    %260 = vmatprep.subr.mxu0 0.0
    %261 = vmatpush1.msra.mxu0 %v90
    %262 = vmatprep.subr.mxu0 0.0
    %263 = vmatpush1.msra.mxu0 %v89
    %264 = vmatprep.subr.mxu0 0.0
    %265 = vmatpush2.msra.mxu0 0.0
    %266 = vmatprep.subr.mxu0 0.0
    %267 = vmatpush2.msra.mxu0 0.0
    %268 = vmatprep.subr.mxu0 0.0
    %269 = vmatpush2.msra.mxu0 0.0
    %270 = vmatprep.subr.mxu0 0.0
    %271 = vmatpush2.msra.mxu0 0.0
    %272 = vmatprep.subr.mxu0 0.0
    %273 = vmatpush2.msra.mxu0 0.0
    %274 = vmatprep.subr.mxu0 0.0
    %275 = vmatpush2.msra.mxu0 0.0
    %276 = vmatprep.subr.mxu0 0.0
    %277 = vmatpush2.msra.mxu0 0.0
    %278 = vmatprep.subr.mxu0 0.0
    %279 = vmatpush2.msra.mxu0 0.0
    %280 = vmatprep.subr.mxu0 0.0
    %281 = vmatpush2.msra.mxu0 0.0
    %282 = vmatprep.subr.mxu0 0.0
    %283 = vmatpush2.msra.mxu0 0.0
    %284 = vmatprep.subr.mxu0 0.0
    %285 = vmatpush2.msra.mxu0 0.0
    %286 = vmatprep.subr.mxu0 0.0
    %287 = vmatpush2.msra.mxu0 0.0
    %288 = vmatprep.subr.mxu0 0.0
    %289 = vmatpush2.msra.mxu0 0.0
    %290 = vmatprep.subr.mxu0 0.0
    %291 = vmatpush2.msra.mxu0 0.0
    %292 = vmatprep.subr.mxu0 0.0
    %293 = vmatpush2.msra.mxu0 0.0
    %294 = vmatprep.subr.mxu0 0.0
    %295 = vmatpush2.msra.mxu0 0.0
    %296 = vmatprep.mubr.f32.mxu0 0.0
    %297 = vmatmul.mubr.f32.gmra.mxu0 %v227
    %v298 = vpop.f32.mrf.mxu0
    %v299 = vadd.f32 %v218, %v298
    %v300 = vpop.f32.mrf.mxu0
    %301 = vmatprep.mubr.f32.mxu0 0.0
    %302 = vmatmul.mubr.f32.gmra.mxu0 %v230
    %v303 = vpop.f32.mrf.mxu0
    %v304 = vadd.f32 %v223, %v303
    %v305 = vpop.f32.mrf.mxu0
    %306 = vdwg.mxu0
    %v307 = vadd.f32 %v43, %v299
    %v308 = vadd.f32 %v44, %v304
    %v309 = vld [vmem:[%s5] sm:$0x1]
    %v310 = vld [vmem:[%s5 + $0x1] sm:$0x1]
    %vm311 = vcmask 261120
    %v312 = vsel %vm311, %v307, 0.0
    %313 = vadd.xlane.f32.xlu0 %v312
    %v314 = vpop.xlane.xlu0 %313
    %v315 = vsel %vm311, %v308, 0.0
    %316 = vadd.xlane.f32.xlu0 %v315
    %v317 = vpop.xlane.xlu0 %316
    %v318 = vrcp.pop 32.0
    %v319 = vmul.f32 %v314, %v318
    %v320 = vmul.f32 %v317, %v318
    %v321 = vsub.f32 %v307, %v319
    %v322 = vsub.f32 %v308, %v320
    %v323 = vmul.f32 %v321, %v321
    %v324 = vmul.f32 %v322, %v322
    %v325 = vsel %vm311, %v323, 0.0
    %326 = vadd.xlane.f32.xlu0 %v325
    %v327 = vpop.xlane.xlu0 %326
    %v328 = vsel %vm311, %v324, 0.0
    %329 = vadd.xlane.f32.xlu0 %v328
    %v330 = vpop.xlane.xlu0 %329
    %v331 = vmul.f32 %v327, %v318
    %v332 = vmul.f32 %v330, %v318
    %v333 = vadd.f32 %v331, 1e-05
    %v334 = vadd.f32 %v332, 1e-05
    %v335 = vrsqrt.pop %v333
    %v336 = vrsqrt.pop %v334
    %v337 = vmul.f32 %v321, %v335
    %v338 = vmul.f32 %v322, %v336
    %v339 = vlaneseq
    %v340 = vshrl.u32 %v339, 7
    %v341 = vsub.s32 0, %v340
    %v342 = vrot.slane %v309, %v341
    %v343 = vmul.f32 %v337, %v342
    %v344 = vmul.f32 %v338, %v342
    %v345 = vlaneseq
    %v346 = vshrl.u32 %v345, 7
    %v347 = vsub.s32 0, %v346
    %v348 = vrot.slane %v310, %v347
    %v349 = vadd.f32 %v343, %v348
    %v350 = vadd.f32 %v344, %v348
    %v351 = vld [vmem:[%s3] sm:$0xff]
    %v352 = vld [vmem:[%s3 + $0x8] sm:$0xff]
    %v354 = vsel %vm45, %v351, 0
    %v357 = vsel %vm45, %v352, 0
    %359 = vmatprep.subr.mxu0 0.0
    %360 = vmatpush1.msra.mxu0 0.0
    %361 = vmatprep.subr.mxu0 0.0
    %362 = vmatpush1.msra.mxu0 0.0
    %363 = vmatprep.subr.mxu0 0.0
    %364 = vmatpush1.msra.mxu0 0.0
    %365 = vmatprep.subr.mxu0 0.0
    %366 = vmatpush1.msra.mxu0 0.0
    %367 = vmatprep.subr.mxu0 0.0
    %368 = vmatpush1.msra.mxu0 0.0
    %369 = vmatprep.subr.mxu0 0.0
    %370 = vmatpush1.msra.mxu0 0.0
    %371 = vmatprep.subr.mxu0 0.0
    %372 = vmatpush1.msra.mxu0 0.0
    %373 = vmatprep.subr.mxu0 0.0
    %374 = vmatpush1.msra.mxu0 0.0
    %375 = vmatprep.subr.mxu0 0.0
    %376 = vmatpush1.msra.mxu0 0.0
    %377 = vmatprep.subr.mxu0 0.0
    %378 = vmatpush1.msra.mxu0 0.0
    %379 = vmatprep.subr.mxu0 0.0
    %380 = vmatpush1.msra.mxu0 0.0
    %381 = vmatprep.subr.mxu0 0.0
    %382 = vmatpush1.msra.mxu0 0.0
    %383 = vmatprep.subr.mxu0 0.0
    %384 = vmatpush1.msra.mxu0 0.0
    %385 = vmatprep.subr.mxu0 0.0
    %386 = vmatpush1.msra.mxu0 0.0
    %387 = vmatprep.subr.mxu0 0.0
    %388 = vmatpush1.msra.mxu0 %v350
    %389 = vmatprep.subr.mxu0 0.0
    %390 = vmatpush1.msra.mxu0 %v349
    %391 = vmatprep.subr.mxu0 0.0
    %392 = vmatpush2.msra.mxu0 0.0
    %393 = vmatprep.subr.mxu0 0.0
    %394 = vmatpush2.msra.mxu0 0.0
    %395 = vmatprep.subr.mxu0 0.0
    %396 = vmatpush2.msra.mxu0 0.0
    %397 = vmatprep.subr.mxu0 0.0
    %398 = vmatpush2.msra.mxu0 0.0
    %399 = vmatprep.subr.mxu0 0.0
    %400 = vmatpush2.msra.mxu0 0.0
    %401 = vmatprep.subr.mxu0 0.0
    %402 = vmatpush2.msra.mxu0 0.0
    %403 = vmatprep.subr.mxu0 0.0
    %404 = vmatpush2.msra.mxu0 0.0
    %405 = vmatprep.subr.mxu0 0.0
    %406 = vmatpush2.msra.mxu0 0.0
    %407 = vmatprep.subr.mxu0 0.0
    %408 = vmatpush2.msra.mxu0 0.0
    %409 = vmatprep.subr.mxu0 0.0
    %410 = vmatpush2.msra.mxu0 0.0
    %411 = vmatprep.subr.mxu0 0.0
    %412 = vmatpush2.msra.mxu0 0.0
    %413 = vmatprep.subr.mxu0 0.0
    %414 = vmatpush2.msra.mxu0 0.0
    %415 = vmatprep.subr.mxu0 0.0
    %416 = vmatpush2.msra.mxu0 0.0
    %417 = vmatprep.subr.mxu0 0.0
    %418 = vmatpush2.msra.mxu0 0.0
    %419 = vmatprep.subr.mxu0 0.0
    %420 = vmatpush2.msra.mxu0 0.0
    %421 = vmatprep.subr.mxu0 0.0
    %422 = vmatpush2.msra.mxu0 0.0
    %423 = vmatprep.mubr.f32.mxu0 0.0
    %424 = vmatmul.mubr.f32.gmra.mxu0 %v354
    %v425 = vpop.f32.mrf.mxu0
    %v426 = vadd.f32 0.0, %v425
    %v427 = vpop.f32.mrf.mxu0
    %428 = vmatprep.mubr.f32.mxu0 0.0
    %429 = vmatmul.mubr.f32.gmra.mxu0 %v357
    %v430 = vpop.f32.mrf.mxu0
    %v431 = vadd.f32 0.0, %v430
    %v432 = vpop.f32.mrf.mxu0
    %433 = vdwg.mxu0
    %v434 = vsub.f32 %v426, %v349
    %v435 = vsub.f32 %v431, %v350
    %v436 = vld [vmem:[%s6] sm:$0x1]
    %v437 = vlaneseq
    %v438 = vshrl.u32 %v437, 7
    %v439 = vsub.s32 0, %v438
    %v440 = vrot.slane %v436, %v439
    %v441 = vmul.f32 %v434, %v440
    %v442 = vmul.f32 %v435, %v440
    %v443 = vadd.f32 %v349, %v441
    %v444 = vadd.f32 %v350, %v442
    %v445 = vld [vmem:[%s6 + $0x1] sm:$0x1]
    %v446 = vlaneseq
    %v447 = vshrl.u32 %v446, 7
    %v448 = vsub.s32 0, %v447
    %v449 = vrot.slane %v445, %v448
    %v450 = vmul.f32 %v434, %v449
    %v451 = vmul.f32 %v435, %v449
    %v452 = vadd.f32 %v349, %v450
    %v453 = vadd.f32 %v350, %v451
    %v454 = vld [vmem:[%s8] sm:$0xff]
    %v455 = vld [vmem:[%s8 + $0x8] sm:$0xff]
    %v456 = vld [vmem:[%s8 + $0x10] sm:$0xff]
    %v457 = vld [vmem:[%s8 + $0x18] sm:$0xff]
    %v459 = vsel %vm311, %v443, 0
    %v462 = vsel %vm311, %v444, 0
    %464 = vmatprep.subr.mxu0 0.0
    %465 = vmatpush1.msra.mxu0 0.0
    %466 = vmatprep.subr.mxu0 0.0
    %467 = vmatpush1.msra.mxu0 0.0
    %468 = vmatprep.subr.mxu0 0.0
    %469 = vmatpush1.msra.mxu0 0.0
    %470 = vmatprep.subr.mxu0 0.0
    %471 = vmatpush1.msra.mxu0 0.0
    %472 = vmatprep.subr.mxu0 0.0
    %473 = vmatpush1.msra.mxu0 0.0
    %474 = vmatprep.subr.mxu0 0.0
    %475 = vmatpush1.msra.mxu0 0.0
    %476 = vmatprep.subr.mxu0 0.0
    %477 = vmatpush1.msra.mxu0 0.0
    %478 = vmatprep.subr.mxu0 0.0
    %479 = vmatpush1.msra.mxu0 0.0
    %480 = vmatprep.subr.mxu0 0.0
    %481 = vmatpush1.msra.mxu0 0.0
    %482 = vmatprep.subr.mxu0 0.0
    %483 = vmatpush1.msra.mxu0 0.0
    %484 = vmatprep.subr.mxu0 0.0
    %485 = vmatpush1.msra.mxu0 0.0
    %486 = vmatprep.subr.mxu0 0.0
    %487 = vmatpush1.msra.mxu0 0.0
    %488 = vmatprep.subr.mxu0 0.0
    %489 = vmatpush1.msra.mxu0 %v457
    %490 = vmatprep.subr.mxu0 0.0
    %491 = vmatpush1.msra.mxu0 %v456
    %492 = vmatprep.subr.mxu0 0.0
    %493 = vmatpush1.msra.mxu0 %v455
    %494 = vmatprep.subr.mxu0 0.0
    %495 = vmatpush1.msra.mxu0 %v454
    %496 = vmatprep.subr.mxu0 0.0
    %497 = vmatpush2.msra.mxu0 0.0
    %498 = vmatprep.subr.mxu0 0.0
    %499 = vmatpush2.msra.mxu0 0.0
    %500 = vmatprep.subr.mxu0 0.0
    %501 = vmatpush2.msra.mxu0 0.0
    %502 = vmatprep.subr.mxu0 0.0
    %503 = vmatpush2.msra.mxu0 0.0
    %504 = vmatprep.subr.mxu0 0.0
    %505 = vmatpush2.msra.mxu0 0.0
    %506 = vmatprep.subr.mxu0 0.0
    %507 = vmatpush2.msra.mxu0 0.0
    %508 = vmatprep.subr.mxu0 0.0
    %509 = vmatpush2.msra.mxu0 0.0
    %510 = vmatprep.subr.mxu0 0.0
    %511 = vmatpush2.msra.mxu0 0.0
    %512 = vmatprep.subr.mxu0 0.0
    %513 = vmatpush2.msra.mxu0 0.0
    %514 = vmatprep.subr.mxu0 0.0
    %515 = vmatpush2.msra.mxu0 0.0
    %516 = vmatprep.subr.mxu0 0.0
    %517 = vmatpush2.msra.mxu0 0.0
    %518 = vmatprep.subr.mxu0 0.0
    %519 = vmatpush2.msra.mxu0 0.0
    %520 = vmatprep.subr.mxu0 0.0
    %521 = vmatpush2.msra.mxu0 0.0
    %522 = vmatprep.subr.mxu0 0.0
    %523 = vmatpush2.msra.mxu0 0.0
    %524 = vmatprep.subr.mxu0 0.0
    %525 = vmatpush2.msra.mxu0 0.0
    %526 = vmatprep.subr.mxu0 0.0
    %527 = vmatpush2.msra.mxu0 0.0
    %528 = vmatprep.mubr.f32.mxu0 0.0
    %529 = vmatmul.mubr.f32.gmra.mxu0 %v459
    %v530 = vpop.f32.mrf.mxu0
    %v531 = vadd.f32 0.0, %v530
    %v532 = vpop.f32.mrf.mxu0
    %533 = vmatprep.mubr.f32.mxu0 0.0
    %534 = vmatmul.mubr.f32.gmra.mxu0 %v462
    %v535 = vpop.f32.mrf.mxu0
    %v536 = vadd.f32 0.0, %v535
    %v537 = vpop.f32.mrf.mxu0
    %538 = vdwg.mxu0
    %v539 = vmax.f32 %v531, 0.0
    %v540 = vmax.f32 %v536, 0.0
    %v541 = vmul.f32 %v539, %v539
    %v542 = vmul.f32 %v540, %v540
    %v543 = vld [vmem:[%s9] sm:$0xff]
    %v544 = vld [vmem:[%s9 + $0x8] sm:$0xff]
    %v545 = vld [vmem:[%s9 + $0x10] sm:$0xff]
    %v546 = vld [vmem:[%s9 + $0x18] sm:$0xff]
    %v547 = vld [vmem:[%s9 + $0x20] sm:$0xff]
    %v548 = vld [vmem:[%s9 + $0x28] sm:$0xff]
    %v549 = vld [vmem:[%s9 + $0x30] sm:$0xff]
    %v550 = vld [vmem:[%s9 + $0x38] sm:$0xff]
    %vm551 = vcmask 523264
    %v553 = vsel %vm551, %v541, 0
    %v556 = vsel %vm551, %v542, 0
    %558 = vmatprep.subr.mxu0 0.0
    %559 = vmatpush1.msra.mxu0 0.0
    %560 = vmatprep.subr.mxu0 0.0
    %561 = vmatpush1.msra.mxu0 0.0
    %562 = vmatprep.subr.mxu0 0.0
    %563 = vmatpush1.msra.mxu0 0.0
    %564 = vmatprep.subr.mxu0 0.0
    %565 = vmatpush1.msra.mxu0 0.0
    %566 = vmatprep.subr.mxu0 0.0
    %567 = vmatpush1.msra.mxu0 0.0
    %568 = vmatprep.subr.mxu0 0.0
    %569 = vmatpush1.msra.mxu0 0.0
    %570 = vmatprep.subr.mxu0 0.0
    %571 = vmatpush1.msra.mxu0 0.0
    %572 = vmatprep.subr.mxu0 0.0
    %573 = vmatpush1.msra.mxu0 0.0
    %574 = vmatprep.subr.mxu0 0.0
    %575 = vmatpush1.msra.mxu0 %v550
    %576 = vmatprep.subr.mxu0 0.0
    %577 = vmatpush1.msra.mxu0 %v549
    %578 = vmatprep.subr.mxu0 0.0
    %579 = vmatpush1.msra.mxu0 %v548
    %580 = vmatprep.subr.mxu0 0.0
    %581 = vmatpush1.msra.mxu0 %v547
    %582 = vmatprep.subr.mxu0 0.0
    %583 = vmatpush1.msra.mxu0 %v546
    %584 = vmatprep.subr.mxu0 0.0
    %585 = vmatpush1.msra.mxu0 %v545
    %586 = vmatprep.subr.mxu0 0.0
    %587 = vmatpush1.msra.mxu0 %v544
    %588 = vmatprep.subr.mxu0 0.0
    %589 = vmatpush1.msra.mxu0 %v543
    %590 = vmatprep.subr.mxu0 0.0
    %591 = vmatpush2.msra.mxu0 0.0
    %592 = vmatprep.subr.mxu0 0.0
    %593 = vmatpush2.msra.mxu0 0.0
    %594 = vmatprep.subr.mxu0 0.0
    %595 = vmatpush2.msra.mxu0 0.0
    %596 = vmatprep.subr.mxu0 0.0
    %597 = vmatpush2.msra.mxu0 0.0
    %598 = vmatprep.subr.mxu0 0.0
    %599 = vmatpush2.msra.mxu0 0.0
    %600 = vmatprep.subr.mxu0 0.0
    %601 = vmatpush2.msra.mxu0 0.0
    %602 = vmatprep.subr.mxu0 0.0
    %603 = vmatpush2.msra.mxu0 0.0
    %604 = vmatprep.subr.mxu0 0.0
    %605 = vmatpush2.msra.mxu0 0.0
    %606 = vmatprep.subr.mxu0 0.0
    %607 = vmatpush2.msra.mxu0 0.0
    %608 = vmatprep.subr.mxu0 0.0
    %609 = vmatpush2.msra.mxu0 0.0
    %610 = vmatprep.subr.mxu0 0.0
    %611 = vmatpush2.msra.mxu0 0.0
    %612 = vmatprep.subr.mxu0 0.0
    %613 = vmatpush2.msra.mxu0 0.0
    %614 = vmatprep.subr.mxu0 0.0
    %615 = vmatpush2.msra.mxu0 0.0
    %616 = vmatprep.subr.mxu0 0.0
    %617 = vmatpush2.msra.mxu0 0.0
    %618 = vmatprep.subr.mxu0 0.0
    %619 = vmatpush2.msra.mxu0 0.0
    %620 = vmatprep.subr.mxu0 0.0
    %621 = vmatpush2.msra.mxu0 0.0
    %622 = vmatprep.mubr.f32.mxu0 0.0
    %623 = vmatmul.mubr.f32.gmra.mxu0 %v553
    %v624 = vpop.f32.mrf.mxu0
    %v625 = vadd.f32 0.0, %v624
    %v626 = vpop.f32.mrf.mxu0
    %627 = vmatprep.mubr.f32.mxu0 0.0
    %628 = vmatmul.mubr.f32.gmra.mxu0 %v556
    %v629 = vpop.f32.mrf.mxu0
    %v630 = vadd.f32 0.0, %v629
    %v631 = vpop.f32.mrf.mxu0
    %632 = vdwg.mxu0
    %v633 = vld [vmem:[%s10] sm:$0xff]
    %v634 = vld [vmem:[%s10 + $0x8] sm:$0xff]
    %v635 = vld [vmem:[%s10 + $0x10] sm:$0xff]
    %v636 = vld [vmem:[%s10 + $0x18] sm:$0xff]
    %v638 = vsel %vm311, %v452, 0
    %v641 = vsel %vm311, %v453, 0
    %643 = vmatprep.subr.mxu0 0.0
    %644 = vmatpush1.msra.mxu0 0.0
    %645 = vmatprep.subr.mxu0 0.0
    %646 = vmatpush1.msra.mxu0 0.0
    %647 = vmatprep.subr.mxu0 0.0
    %648 = vmatpush1.msra.mxu0 0.0
    %649 = vmatprep.subr.mxu0 0.0
    %650 = vmatpush1.msra.mxu0 0.0
    %651 = vmatprep.subr.mxu0 0.0
    %652 = vmatpush1.msra.mxu0 0.0
    %653 = vmatprep.subr.mxu0 0.0
    %654 = vmatpush1.msra.mxu0 0.0
    %655 = vmatprep.subr.mxu0 0.0
    %656 = vmatpush1.msra.mxu0 0.0
    %657 = vmatprep.subr.mxu0 0.0
    %658 = vmatpush1.msra.mxu0 0.0
    %659 = vmatprep.subr.mxu0 0.0
    %660 = vmatpush1.msra.mxu0 0.0
    %661 = vmatprep.subr.mxu0 0.0
    %662 = vmatpush1.msra.mxu0 0.0
    %663 = vmatprep.subr.mxu0 0.0
    %664 = vmatpush1.msra.mxu0 0.0
    %665 = vmatprep.subr.mxu0 0.0
    %666 = vmatpush1.msra.mxu0 0.0
    %667 = vmatprep.subr.mxu0 0.0
    %668 = vmatpush1.msra.mxu0 %v636
    %669 = vmatprep.subr.mxu0 0.0
    %670 = vmatpush1.msra.mxu0 %v635
    %671 = vmatprep.subr.mxu0 0.0
    %672 = vmatpush1.msra.mxu0 %v634
    %673 = vmatprep.subr.mxu0 0.0
    %674 = vmatpush1.msra.mxu0 %v633
    %675 = vmatprep.subr.mxu0 0.0
    %676 = vmatpush2.msra.mxu0 0.0
    %677 = vmatprep.subr.mxu0 0.0
    %678 = vmatpush2.msra.mxu0 0.0
    %679 = vmatprep.subr.mxu0 0.0
    %680 = vmatpush2.msra.mxu0 0.0
    %681 = vmatprep.subr.mxu0 0.0
    %682 = vmatpush2.msra.mxu0 0.0
    %683 = vmatprep.subr.mxu0 0.0
    %684 = vmatpush2.msra.mxu0 0.0
    %685 = vmatprep.subr.mxu0 0.0
    %686 = vmatpush2.msra.mxu0 0.0
    %687 = vmatprep.subr.mxu0 0.0
    %688 = vmatpush2.msra.mxu0 0.0
    %689 = vmatprep.subr.mxu0 0.0
    %690 = vmatpush2.msra.mxu0 0.0
    %691 = vmatprep.subr.mxu0 0.0
    %692 = vmatpush2.msra.mxu0 0.0
    %693 = vmatprep.subr.mxu0 0.0
    %694 = vmatpush2.msra.mxu0 0.0
    %695 = vmatprep.subr.mxu0 0.0
    %696 = vmatpush2.msra.mxu0 0.0
    %697 = vmatprep.subr.mxu0 0.0
    %698 = vmatpush2.msra.mxu0 0.0
    %699 = vmatprep.subr.mxu0 0.0
    %700 = vmatpush2.msra.mxu0 0.0
    %701 = vmatprep.subr.mxu0 0.0
    %702 = vmatpush2.msra.mxu0 0.0
    %703 = vmatprep.subr.mxu0 0.0
    %704 = vmatpush2.msra.mxu0 0.0
    %705 = vmatprep.subr.mxu0 0.0
    %706 = vmatpush2.msra.mxu0 0.0
    %707 = vmatprep.mubr.f32.mxu0 0.0
    %708 = vmatmul.mubr.f32.gmra.mxu0 %v638
    %v709 = vpop.f32.mrf.mxu0
    %v710 = vadd.f32 0.0, %v709
    %v711 = vpop.f32.mrf.mxu0
    %712 = vmatprep.mubr.f32.mxu0 0.0
    %713 = vmatmul.mubr.f32.gmra.mxu0 %v641
    %v714 = vpop.f32.mrf.mxu0
    %v715 = vadd.f32 0.0, %v714
    %v716 = vpop.f32.mrf.mxu0
    %717 = vdwg.mxu0
    %v718 = vsub.f32 0.0, %v710
    %v719 = vsub.f32 0.0, %v715
    %v720 = vmul.f32 %v718, 1.442695
    %v721 = vpow.pop %v720
    %v722 = vmul.f32 %v719, 1.442695
    %v723 = vpow.pop %v722
    %v724 = vadd.f32 %v721, 1.0
    %v725 = vadd.f32 %v723, 1.0
    %v726 = vrcp.pop %v724
    %v727 = vmul.f32 1.0, %v726
    %v728 = vrcp.pop %v725
    %v729 = vmul.f32 1.0, %v728
    %v730 = vmul.f32 %v727, %v625
    %v731 = vmul.f32 %v729, %v630
    %v732 = vadd.f32 %v307, %v730
    %v733 = vadd.f32 %v308, %v731
    %734 = vst.msk [vmem:[#allocation2] sm:$0xff] %vm311, %v732
    %735 = vst.msk [vmem:[#allocation2 + $0x8] sm:$0xff] %vm311, %v733
    // Predicated region
    $region46: #{_lambda_.5} parent=1 // pred_check
      _
    $region47: #{_lambda_.5} parent=1 // pred_check_branch
      %737 = sbr.rel (0) target = $region49
    $region48: #{_lambda_.5} parent=1 // pred_region
      %s739 = ssub.s32 256, 256
      %740 = vsyncadd [#allocation3], %s739
      %s741 = sshll.u32 [#allocation2], 4
      %s742 = int_to_ptr.vmem [resolvable:$true] %s741
      %747 = dma.vmem_to_hbm [thread:$0]  %s742, 256, %s11, [#allocation3], 128, 128, 8
    $region49: #{_lambda_.5} parent=1 // pred_fallthru
      _
    // Predicated region
    $region50: #{_lambda_.5} parent=1 // pred_check
      _
    $region51: #{_lambda_.5} parent=1 // pred_check_branch
      %749 = sbr.rel (0) target = $region53
    $region52: #{_lambda_.5} parent=1 // pred_region
      %750 = dma.done [#allocation3], 256
    $region53: #{_lambda_.5} parent=1 // pred_fallthru
      _
    %751 = vsyncpa [#allocation3], 1

// kernel: _lambda_.4
$region0: #{_lambda_.4}
  #allocation0 [shape = 'u32[]', space=smem, size = 0x4, offset = 0x4, fixed_abs, tag = 'smem constant byte address 0x4 - core index']
  #allocation1 [shape = 'u32[144,128]{1,0:T(1,128)}', space=vmem, size = 0x12000, scoped, tag = 'internal scratch']
  %s0 = inlined_call_operand.vmem [shape: f32[2,8,128], index: 0, kind: input, shape index: {}]
  %s1 = inlined_call_operand.vmem [shape: f32[1,32], index: 1, kind: input, shape index: {}]
  %s2 = inlined_call_operand.vmem [shape: f32[2,2,16,16], index: 2, kind: input, shape index: {}]
  %s3 = inlined_call_operand.vmem [shape: f32[2,8,32], index: 3, kind: output, shape index: {0}]
  %s4 = inlined_call_operand.vmem [shape: f32[2,2,16,16], index: 4, kind: output, shape index: {1}]
  %5 = xla_tuple %s3, %s4
  %s6 = sld [smem:[#allocation0]]
  $region53: #{_lambda_.4} parent=0
    _
  %s8 = ssub.s32 1, %s6
  %s9 = scalar_select 0, %s8, %s6
  loop: start=0, step=1, limit=4
  $region2: #{_lambda_.4} parent=0 // loop_pre_header
    _
  $region3: #{_lambda_.4} parent=0 // loop_header
    %s11 = sphi 0, %s15
    %p12 = scmp.ge.s32.totalorder %s11, 4
    %s21 = sphi 0, %s23
    %s24 = sphi 0, %s21
    %s25 = sphi 0, %s24
    %s41 = sphi 0, %s25
    %s45 = sphi 0, %s45
    %s47 = sphi 0, %s45
    %s48 = sphi 0, %s47
    %s62 = sphi 0, %s48
    %s68 = sphi 0, %s70
    %s71 = sphi 0, %s68
    %s72 = sphi 0, %s71
    %s88 = sphi 0, %s72
    %s94 = sphi 0, %s96
    %s97 = sphi 0, %s94
    %s98 = sphi 0, %s97
    %s114 = sphi 0, %s98
    %s120 = sphi 0, %s122
    %s123 = sphi 0, %s120
    %s124 = sphi 0, %s123
    %s140 = sphi 0, %s124
  $region4: #{_lambda_.4} parent=0 // loop_header_branch
    %14 = sbr.rel (%p12) target = $region8
  $region5: #{_lambda_.4} parent=0 // loop_body
    %s16 = ssub.s32 %s11, 1
    %s17 = ssub.s32 %s11, 2
    %s18 = sadd.s32 %s11, 1
    %s19 = ssub.s32 %s11, %s18
    %p20 = scmp.eq.s32.totalorder %s19, 0
    %s22 = sadd.s32 %s21, 1
    %s23 = scalar_select %p20, %s21, %s22
    %p26 = pneg %p20
    %p27 = scmp.eq.s32.totalorder %s11, 1
    %p28 = por %p26, %p27
    %p29 = scmp.ne.s32.totalorder %s21, %s24
    %p30 = scmp.eq.s32.totalorder %s11, 0
    %p31 = por %p29, %p30
    %p32 = scmp.ne.s32.totalorder %s21, %s24
    %p33 = scmp.eq.s32.totalorder %s16, 1
    %p34 = por %p32, %p33
    %p35 = scmp.ne.s32.totalorder %s24, %s25
    %p36 = scmp.eq.s32.totalorder %s16, 0
    %p37 = por %p35, %p36
    %p38 = scmp.ne.s32.totalorder %s24, %s25
    %p39 = scmp.eq.s32.totalorder %s17, 1
    %p40 = por %p38, %p39
    %p42 = scmp.ne.s32.totalorder %s25, %s41
    %p43 = scmp.eq.s32.totalorder %s17, 0
    %p44 = por %p42, %p43
    %s46 = sadd.s32 %s45, 1
    %p49 = scmp.eq.s32.totalorder %s11, 1
    %p50 = scmp.ne.s32.totalorder %s45, %s47
    %p51 = scmp.eq.s32.totalorder %s11, 0
    %p52 = por %p50, %p51
    %p53 = scmp.ne.s32.totalorder %s45, %s47
    %p54 = scmp.eq.s32.totalorder %s16, 1
    %p55 = por %p53, %p54
    %p56 = scmp.ne.s32.totalorder %s47, %s48
    %p57 = scmp.eq.s32.totalorder %s16, 0
    %p58 = por %p56, %p57
    %p59 = scmp.ne.s32.totalorder %s47, %s48
    %p60 = scmp.eq.s32.totalorder %s17, 1
    %p61 = por %p59, %p60
    %p63 = scmp.ne.s32.totalorder %s48, %s62
    %p64 = scmp.eq.s32.totalorder %s17, 0
    %p65 = por %p63, %p64
    %s66 = ssub.s32 %s11, %s18
    %p67 = scmp.eq.s32.totalorder %s66, 0
    %s69 = sadd.s32 %s68, 1
    %s70 = scalar_select %p67, %s68, %s69
    %p73 = pneg %p67
    %p74 = scmp.eq.s32.totalorder %s11, 1
    %p75 = por %p73, %p74
    %p76 = scmp.ne.s32.totalorder %s68, %s71
    %p77 = scmp.eq.s32.totalorder %s11, 0
    %p78 = por %p76, %p77
    %p79 = scmp.ne.s32.totalorder %s68, %s71
    %p80 = scmp.eq.s32.totalorder %s16, 1
    %p81 = por %p79, %p80
    %p82 = scmp.ne.s32.totalorder %s71, %s72
    %p83 = scmp.eq.s32.totalorder %s16, 0
    %p84 = por %p82, %p83
    %p85 = scmp.ne.s32.totalorder %s71, %s72
    %p86 = scmp.eq.s32.totalorder %s17, 1
    %p87 = por %p85, %p86
    %p89 = scmp.ne.s32.totalorder %s72, %s88
    %p90 = scmp.eq.s32.totalorder %s17, 0
    %p91 = por %p89, %p90
    %s92 = ssub.s32 %s11, %s18
    %p93 = scmp.eq.s32.totalorder %s92, 0
    %s95 = sadd.s32 %s94, 1
    %s96 = scalar_select %p93, %s94, %s95
    %p99 = pneg %p93
    %p100 = scmp.eq.s32.totalorder %s11, 1
    %p101 = por %p99, %p100
    %p102 = scmp.ne.s32.totalorder %s94, %s97
    %p103 = scmp.eq.s32.totalorder %s11, 0
    %p104 = por %p102, %p103
    %p105 = scmp.ne.s32.totalorder %s94, %s97
    %p106 = scmp.eq.s32.totalorder %s16, 1
    %p107 = por %p105, %p106
    %p108 = scmp.ne.s32.totalorder %s97, %s98
    %p109 = scmp.eq.s32.totalorder %s16, 0
    %p110 = por %p108, %p109
    %p111 = scmp.ne.s32.totalorder %s97, %s98
    %p112 = scmp.eq.s32.totalorder %s17, 1
    %p113 = por %p111, %p112
    %p115 = scmp.ne.s32.totalorder %s98, %s114
    %p116 = scmp.eq.s32.totalorder %s17, 0
    %p117 = por %p115, %p116
    %s118 = ssub.s32 %s11, %s18
    %p119 = scmp.eq.s32.totalorder %s118, 0
    %s121 = sadd.s32 %s120, 1
    %s122 = scalar_select %p119, %s120, %s121
    %p125 = pneg %p119
    %p126 = scmp.eq.s32.totalorder %s11, 1
    %p127 = por %p125, %p126
    %p128 = scmp.ne.s32.totalorder %s120, %s123
    %p129 = scmp.eq.s32.totalorder %s11, 0
    %p130 = por %p128, %p129
    %p131 = scmp.ne.s32.totalorder %s120, %s123
    %p132 = scmp.eq.s32.totalorder %s16, 1
    %p133 = por %p131, %p132
    %p134 = scmp.ne.s32.totalorder %s123, %s124
    %p135 = scmp.eq.s32.totalorder %s16, 0
    %p136 = por %p134, %p135
    %p137 = scmp.ne.s32.totalorder %s123, %s124
    %p138 = scmp.eq.s32.totalorder %s17, 1
    %p139 = por %p137, %p138
    %p141 = scmp.ne.s32.totalorder %s124, %s140
    %p142 = scmp.eq.s32.totalorder %s17, 0
    %p143 = por %p141, %p142
    %p144 = scmp.le.s32.totalorder 1, %s11
    %p145 = scmp.lt.s32.totalorder %s11, 3
    %p146 = pnand %p144, %p145
    %p147 = pneg %p146
    // Predicated region
    $region9: #{_lambda_.4} parent=5 // pred_check
      _
    $region10: #{_lambda_.4} parent=5 // pred_check_branch
      %149 = sbr.rel (%p146) target = $region12
    $region11: #{_lambda_.4} parent=5 // pred_region
      %s150 = ssub.s32 %s11, 1
      // Predicated region
      $region13: #{_lambda_.4} parent=11 // pred_check
        %p151 = pneg %p58
      $region14: #{_lambda_.4} parent=11 // pred_check_branch
        %153 = sbr.rel (%p151) target = $region16
      $region15: #{_lambda_.4} parent=11 // pred_region
        _
      $region16: #{_lambda_.4} parent=11 // pred_fallthru
        _
    $region12: #{_lambda_.4} parent=5 // pred_fallthru
      _
    %p154 = scmp.lt.s32.totalorder %s11, 2
    // Predicated region
    $region17: #{_lambda_.4} parent=5 // pred_check
      %p155 = pneg %p154
    $region18: #{_lambda_.4} parent=5 // pred_check_branch
      %157 = sbr.rel (%p155) target = $region20
    $region19: #{_lambda_.4} parent=5 // pred_region
      // Predicated region
      $region21: #{_lambda_.4} parent=19 // pred_check
        %p158 = pneg %p31
      $region22: #{_lambda_.4} parent=19 // pred_check_branch
        %160 = sbr.rel (%p158) target = $region24
      $region23: #{_lambda_.4} parent=19 // pred_region
        %p161 = scmp.lt.s32.totalorder %s11, 1
        %s162 = scalar_select %p161, %s11, 1
        %s163 = smul.addr %s162, 8
        %s164 = scalar_lea.vmem %s0, %s163
      $region24: #{_lambda_.4} parent=19 // pred_fallthru
        _
      // Predicated region
      $region25: #{_lambda_.4} parent=19 // pred_check
        %p165 = pneg %p78
      $region26: #{_lambda_.4} parent=19 // pred_check_branch
        %167 = sbr.rel (%p165) target = $region28
      $region27: #{_lambda_.4} parent=19 // pred_region
        %p168 = scmp.lt.s32.totalorder %s11, 1
        %s169 = scalar_select %p168, %s11, 1
        %s170 = smul.addr %s169, 4
        %s171 = smul.addr %s170, 8
        %s172 = scalar_lea.vmem %s2, %s171
      $region28: #{_lambda_.4} parent=19 // pred_fallthru
        _
    $region20: #{_lambda_.4} parent=5 // pred_fallthru
      _
    %p173 = scmp.le.s32.totalorder 1, %s11
    %p174 = scmp.lt.s32.totalorder %s11, 3
    %p175 = pnand %p173, %p174
    %p176 = pneg %p175
    // Predicated region
    $region29: #{_lambda_.4} parent=5 // pred_check
      _
    $region30: #{_lambda_.4} parent=5 // pred_check_branch
      %178 = sbr.rel (%p175) target = $region32
    $region31: #{_lambda_.4} parent=5 // pred_region
      %s179 = ssub.s32 %s11, 1
      %p180 = scmp.lt.s32.totalorder %s16, 1
      %s181 = scalar_select %p180, %s16, 1
      %s182 = smul.addr %s181, 8
      %s183 = scalar_lea.vmem %s0, %s182
      %p184 = pneg %p37
      %p185 = pneg %p34
      %p186 = pneg %p58
      %p187 = pneg %p55
      %p188 = scmp.lt.s32.totalorder %s16, 1
      %s189 = scalar_select %p188, %s16, 1
      %s190 = smul.addr %s189, 4
      %s191 = smul.addr %s190, 8
      %s192 = scalar_lea.vmem %s2, %s191
      %p193 = pneg %p84
      %p194 = pneg %p81
      %p195 = pneg %p110
      %p196 = pneg %p107
      %p197 = scmp.lt.s32.totalorder %s16, 1
      %s198 = scalar_select %p197, %s16, 1
      %s199 = smul.addr %s198, 8
      %s200 = scalar_lea.vmem %s3, %s199
      %p201 = pneg %p136
      %p202 = pneg %p133
      %p203 = scmp.lt.s32.totalorder %s16, 1
      %s204 = scalar_select %p203, %s16, 1
      %s205 = smul.addr %s204, 4
      %s206 = smul.addr %s205, 8
      %s207 = scalar_lea.vmem %s4, %s206
      %p208 = scmp.lt.s32.totalorder %s16, 1
      %s209 = scalar_select %p208, %s16, 1
      %s210 = smul.addr %s209, 8
      %s211 = scalar_lea.vmem %s0, %s210
      %p212 = scmp.lt.s32.totalorder %s16, 1
      %s213 = scalar_select %p212, %s16, 1
      %s214 = smul.addr %s213, 4
      %s215 = smul.addr %s214, 8
      %s216 = scalar_lea.vmem %s2, %s215
      %p217 = scmp.lt.s32.totalorder %s16, 1
      %s218 = scalar_select %p217, %s16, 1
      %s219 = smul.addr %s218, 8
      %s220 = scalar_lea.vmem %s3, %s219
      %p221 = scmp.lt.s32.totalorder %s16, 1
      %s222 = scalar_select %p221, %s16, 1
      %s223 = smul.addr %s222, 4
      %s224 = smul.addr %s223, 8
      %s225 = scalar_lea.vmem %s4, %s224
      %v226 = vlaneseq
      %v227 = vshrl.u32 %v226, 7
      %v228 = vlaneseq
      %v229 = vand.u32 %v228, 127
      %vm230 = vcmp.lt.s32.totalorder %v229, %v227
      %v231 = vsel %vm230, 1.0, 0.0
      %v232 = vadd.s32 %v227, 8
      %v233 = vld [vmem:[%s211] sm:$0xff]
      %v234 = vld [vmem:[%s1] sm:$0x1]
      %v235 = vld [vmem:[%s216] sm:$0xff]
      %v236 = vld [vmem:[%s216 + $0x8] sm:$0xff]
      %238 = vrot.lane.b32.xlu0 %v233, 32
      %v239 = vpop.permute.xlu0 %238
      %vm241 = vcmask 64512
      %v243 = vsel %vm241, %v231, 0
      %245 = vmatprep.subr.mxu0 0.0
      %246 = vmatpush1.msra.mxu0 0.0
      %247 = vmatprep.subr.mxu0 0.0
      %248 = vmatpush1.msra.mxu0 0.0
      %249 = vmatprep.subr.mxu0 0.0
      %250 = vmatpush1.msra.mxu0 0.0
      %251 = vmatprep.subr.mxu0 0.0
      %252 = vmatpush1.msra.mxu0 0.0
      %253 = vmatprep.subr.mxu0 0.0
      %254 = vmatpush1.msra.mxu0 0.0
      %255 = vmatprep.subr.mxu0 0.0
      %256 = vmatpush1.msra.mxu0 0.0
      %257 = vmatprep.subr.mxu0 0.0
      %258 = vmatpush1.msra.mxu0 0.0
      %259 = vmatprep.subr.mxu0 0.0
      %260 = vmatpush1.msra.mxu0 0.0
      %261 = vmatprep.subr.mxu0 0.0
      %262 = vmatpush1.msra.mxu0 0.0
      %263 = vmatprep.subr.mxu0 0.0
      %264 = vmatpush1.msra.mxu0 0.0
      %265 = vmatprep.subr.mxu0 0.0
      %266 = vmatpush1.msra.mxu0 0.0
      %267 = vmatprep.subr.mxu0 0.0
      %268 = vmatpush1.msra.mxu0 0.0
      %269 = vmatprep.subr.mxu0 0.0
      %270 = vmatpush1.msra.mxu0 0.0
      %271 = vmatprep.subr.mxu0 0.0
      %272 = vmatpush1.msra.mxu0 0.0
      %273 = vmatprep.subr.mxu0 0.0
      %274 = vmatpush1.msra.mxu0 0.0
      %275 = vmatprep.subr.mxu0 0.0
      %276 = vmatpush1.msra.mxu0 %v239
      %277 = vmatprep.subr.mxu0 0.0
      %278 = vmatpush2.msra.mxu0 0.0
      %279 = vmatprep.subr.mxu0 0.0
      %280 = vmatpush2.msra.mxu0 0.0
      %281 = vmatprep.subr.mxu0 0.0
      %282 = vmatpush2.msra.mxu0 0.0
      %283 = vmatprep.subr.mxu0 0.0
      %284 = vmatpush2.msra.mxu0 0.0
      %285 = vmatprep.subr.mxu0 0.0
      %286 = vmatpush2.msra.mxu0 0.0
      %287 = vmatprep.subr.mxu0 0.0
      %288 = vmatpush2.msra.mxu0 0.0
      %289 = vmatprep.subr.mxu0 0.0
      %290 = vmatpush2.msra.mxu0 0.0
      %291 = vmatprep.subr.mxu0 0.0
      %292 = vmatpush2.msra.mxu0 0.0
      %293 = vmatprep.subr.mxu0 0.0
      %294 = vmatpush2.msra.mxu0 0.0
      %295 = vmatprep.subr.mxu0 0.0
      %296 = vmatpush2.msra.mxu0 0.0
      %297 = vmatprep.subr.mxu0 0.0
      %298 = vmatpush2.msra.mxu0 0.0
      %299 = vmatprep.subr.mxu0 0.0
      %300 = vmatpush2.msra.mxu0 0.0
      %301 = vmatprep.subr.mxu0 0.0
      %302 = vmatpush2.msra.mxu0 0.0
      %303 = vmatprep.subr.mxu0 0.0
      %304 = vmatpush2.msra.mxu0 0.0
      %305 = vmatprep.subr.mxu0 0.0
      %306 = vmatpush2.msra.mxu0 0.0
      %307 = vmatprep.subr.mxu0 0.0
      %308 = vmatpush2.msra.mxu0 0.0
      %309 = vmatprep.mubr.f32.mxu0 0.0
      %310 = vmatmul.mubr.f32.gmra.mxu0 %v243
      %v311 = vpop.f32.mrf.mxu0
      %v312 = vadd.f32 0.0, %v311
      %v313 = vpop.f32.mrf.mxu0
      %314 = vdwg.mxu0
      %v315 = vadd.f32 %v312, %v239
      %v316 = vmul.f32 %v312, 1.442695
      %v317 = vpow.pop %v316
      %v318 = vmul.f32 %v233, %v317
      %v319 = vsub.f32 0.0, %v315
      %v320 = vmul.f32 %v319, 1.442695
      %v321 = vpow.pop %v320
      %323 = vrot.lane.b32.xlu0 %v321, 32
      %v324 = vpop.permute.xlu0 %323
      %v326 = vmul.f32 %v233, %v324
      %328 = vrot.lane.b32.xlu0 %v326, 96
      %v329 = vpop.permute.xlu0 %328
      %vm330 = vcmask 130048
      %v332 = vsel %vm330, %v318, 0
      %v334 = vsel %vm330, %v329, 0
      %336 = vmatprep.subr.mxu0 0.0
      %337 = vmatpush1.xpose.msra.mxu0 0.0
      %338 = vmatprep.subr.mxu0 0.0
      %339 = vmatpush1.xpose.msra.mxu0 0.0
      %340 = vmatprep.subr.mxu0 0.0
      %341 = vmatpush1.xpose.msra.mxu0 0.0
      %342 = vmatprep.subr.mxu0 0.0
      %343 = vmatpush1.xpose.msra.mxu0 0.0
      %344 = vmatprep.subr.mxu0 0.0
      %345 = vmatpush1.xpose.msra.mxu0 0.0
      %346 = vmatprep.subr.mxu0 0.0
      %347 = vmatpush1.xpose.msra.mxu0 0.0
      %348 = vmatprep.subr.mxu0 0.0
      %349 = vmatpush1.xpose.msra.mxu0 0.0
      %350 = vmatprep.subr.mxu0 0.0
      %351 = vmatpush1.xpose.msra.mxu0 0.0
      %352 = vmatprep.subr.mxu0 0.0
      %353 = vmatpush1.xpose.msra.mxu0 0.0
      %354 = vmatprep.subr.mxu0 0.0
      %355 = vmatpush1.xpose.msra.mxu0 0.0
      %356 = vmatprep.subr.mxu0 0.0
      %357 = vmatpush1.xpose.msra.mxu0 0.0
      %358 = vmatprep.subr.mxu0 0.0
      %359 = vmatpush1.xpose.msra.mxu0 0.0
      %360 = vmatprep.subr.mxu0 0.0
      %361 = vmatpush1.xpose.msra.mxu0 0.0
      %362 = vmatprep.subr.mxu0 0.0
      %363 = vmatpush1.xpose.msra.mxu0 0.0
      %364 = vmatprep.subr.mxu0 0.0
      %365 = vmatpush1.xpose.msra.mxu0 0.0
      %366 = vmatprep.subr.mxu0 0.0
      %367 = vmatpush1.xpose.msra.mxu0 %v334
      %368 = vmatprep.subr.mxu0 0.0
      %369 = vmatpush2.xpose.msra.mxu0 0.0
      %370 = vmatprep.subr.mxu0 0.0
      %371 = vmatpush2.xpose.msra.mxu0 0.0
      %372 = vmatprep.subr.mxu0 0.0
      %373 = vmatpush2.xpose.msra.mxu0 0.0
      %374 = vmatprep.subr.mxu0 0.0
      %375 = vmatpush2.xpose.msra.mxu0 0.0
      %376 = vmatprep.subr.mxu0 0.0
      %377 = vmatpush2.xpose.msra.mxu0 0.0
      %378 = vmatprep.subr.mxu0 0.0
      %379 = vmatpush2.xpose.msra.mxu0 0.0
      %380 = vmatprep.subr.mxu0 0.0
      %381 = vmatpush2.xpose.msra.mxu0 0.0
      %382 = vmatprep.subr.mxu0 0.0
      %383 = vmatpush2.xpose.msra.mxu0 0.0
      %384 = vmatprep.subr.mxu0 0.0
      %385 = vmatpush2.xpose.msra.mxu0 0.0
      %386 = vmatprep.subr.mxu0 0.0
      %387 = vmatpush2.xpose.msra.mxu0 0.0
      %388 = vmatprep.subr.mxu0 0.0
      %389 = vmatpush2.xpose.msra.mxu0 0.0
      %390 = vmatprep.subr.mxu0 0.0
      %391 = vmatpush2.xpose.msra.mxu0 0.0
      %392 = vmatprep.subr.mxu0 0.0
      %393 = vmatpush2.xpose.msra.mxu0 0.0
      %394 = vmatprep.subr.mxu0 0.0
      %395 = vmatpush2.xpose.msra.mxu0 0.0
      %396 = vmatprep.subr.mxu0 0.0
      %397 = vmatpush2.xpose.msra.mxu0 0.0
      %398 = vmatprep.subr.mxu0 0.0
      %399 = vmatpush2.xpose.msra.mxu0 0.0
      %400 = vmatprep.mubr.f32.mxu0 0.0
      %401 = vmatmul.mubr.f32.gmra.mxu0 %v332
      %v402 = vpop.f32.mrf.mxu0
      %v403 = vadd.f32 0.0, %v402
      %v404 = vpop.f32.mrf.mxu0
      %405 = vdwg.mxu0
      %v407 = vlaneseq
      %v408 = vshrl.u32 %v407, 7
      %v409 = vsub.s32 0, %v408
      %v410 = vrot.slane %v234, %v409
      %v412 = vmul.f32 %v233, %v410
      %413 = vrot.lane.b32.xlu0 %v233, 96
      %v414 = vpop.permute.xlu0 %413
      %v416 = vmul.f32 %v412, %v414
      %v417 = vsel %vm330, %v416, 0.0
      %418 = vadd.xlane.f32.xlu0 %v417
      %v419 = vpop.xlane.xlu0 %418
      %v420 = vsel %vm230, %v403, 0.0
      %vm421 = vcmp.eq.s32.totalorder %v229, %v227
      %v422 = vsel %vm421, %v419, 0.0
      %v423 = vadd.f32 %v420, %v422
      %424 = vmatprep.subr.mxu0 0.0
      %425 = vmatpush1.msra.mxu0 0.0
      %426 = vmatprep.subr.mxu0 0.0
      %427 = vmatpush1.msra.mxu0 0.0
      %428 = vmatprep.subr.mxu0 0.0
      %429 = vmatpush1.msra.mxu0 0.0
      %430 = vmatprep.subr.mxu0 0.0
      %431 = vmatpush1.msra.mxu0 0.0
      %432 = vmatprep.subr.mxu0 0.0
      %433 = vmatpush1.msra.mxu0 0.0
      %434 = vmatprep.subr.mxu0 0.0
      %435 = vmatpush1.msra.mxu0 0.0
      %436 = vmatprep.subr.mxu0 0.0
      %437 = vmatpush1.msra.mxu0 0.0
      %438 = vmatprep.subr.mxu0 0.0
      %439 = vmatpush1.msra.mxu0 0.0
      %440 = vmatprep.subr.mxu0 0.0
      %441 = vmatpush1.msra.mxu0 0.0
      %442 = vmatprep.subr.mxu0 0.0
      %443 = vmatpush1.msra.mxu0 0.0
      %444 = vmatprep.subr.mxu0 0.0
      %445 = vmatpush1.msra.mxu0 0.0
      %446 = vmatprep.subr.mxu0 0.0
      %447 = vmatpush1.msra.mxu0 0.0
      %448 = vmatprep.subr.mxu0 0.0
      %449 = vmatpush1.msra.mxu0 0.0
      %450 = vmatprep.subr.mxu0 0.0
      %451 = vmatpush1.msra.mxu0 0.0
      %452 = vmatprep.subr.mxu0 0.0
      %453 = vmatpush1.msra.mxu0 %v236
      %454 = vmatprep.subr.mxu0 0.0
      %455 = vmatpush1.msra.mxu0 %v235
      %456 = vmatprep.subr.mxu0 0.0
      %457 = vmatpush2.msra.mxu0 0.0
      %458 = vmatprep.subr.mxu0 0.0
      %459 = vmatpush2.msra.mxu0 0.0
      %460 = vmatprep.subr.mxu0 0.0
      %461 = vmatpush2.msra.mxu0 0.0
      %462 = vmatprep.subr.mxu0 0.0
      %463 = vmatpush2.msra.mxu0 0.0
      %464 = vmatprep.subr.mxu0 0.0
      %465 = vmatpush2.msra.mxu0 0.0
      %466 = vmatprep.subr.mxu0 0.0
      %467 = vmatpush2.msra.mxu0 0.0
      %468 = vmatprep.subr.mxu0 0.0
      %469 = vmatpush2.msra.mxu0 0.0
      %470 = vmatprep.subr.mxu0 0.0
      %471 = vmatpush2.msra.mxu0 0.0
      %472 = vmatprep.subr.mxu0 0.0
      %473 = vmatpush2.msra.mxu0 0.0
      %474 = vmatprep.subr.mxu0 0.0
      %475 = vmatpush2.msra.mxu0 0.0
      %476 = vmatprep.subr.mxu0 0.0
      %477 = vmatpush2.msra.mxu0 0.0
      %478 = vmatprep.subr.mxu0 0.0
      %479 = vmatpush2.msra.mxu0 0.0
      %480 = vmatprep.subr.mxu0 0.0
      %481 = vmatpush2.msra.mxu0 0.0
      %482 = vmatprep.subr.mxu0 0.0
      %483 = vmatpush2.msra.mxu0 0.0
      %484 = vmatprep.subr.mxu0 0.0
      %485 = vmatpush2.msra.mxu0 0.0
      %486 = vmatprep.subr.mxu0 0.0
      %487 = vmatpush2.msra.mxu0 0.0
      %488 = vmatprep.mubr.f32.mxu0 0.0
      %489 = vmatmul.mubr.f32.gmra.mxu0 %v332
      %v490 = vpop.f32.mrf.mxu0
      %v491 = vadd.f32 0.0, %v490
      %v492 = vpop.f32.mrf.mxu0
      %493 = vdwg.mxu0
      %494 = vrot.lane.b32.xlu0 %v233, 64
      %v495 = vpop.permute.xlu0 %494
      %v498 = vsel %vm241, %v423, 0
      %500 = vmatprep.subr.mxu0 0.0
      %501 = vmatpush1.msra.mxu0 0.0
      %502 = vmatprep.subr.mxu0 0.0
      %503 = vmatpush1.msra.mxu0 0.0
      %504 = vmatprep.subr.mxu0 0.0
      %505 = vmatpush1.msra.mxu0 0.0
      %506 = vmatprep.subr.mxu0 0.0
      %507 = vmatpush1.msra.mxu0 0.0
      %508 = vmatprep.subr.mxu0 0.0
      %509 = vmatpush1.msra.mxu0 0.0
      %510 = vmatprep.subr.mxu0 0.0
      %511 = vmatpush1.msra.mxu0 0.0
      %512 = vmatprep.subr.mxu0 0.0
      %513 = vmatpush1.msra.mxu0 0.0
      %514 = vmatprep.subr.mxu0 0.0
      %515 = vmatpush1.msra.mxu0 0.0
      %516 = vmatprep.subr.mxu0 0.0
      %517 = vmatpush1.msra.mxu0 0.0
      %518 = vmatprep.subr.mxu0 0.0
      %519 = vmatpush1.msra.mxu0 0.0
      %520 = vmatprep.subr.mxu0 0.0
      %521 = vmatpush1.msra.mxu0 0.0
      %522 = vmatprep.subr.mxu0 0.0
      %523 = vmatpush1.msra.mxu0 0.0
      %524 = vmatprep.subr.mxu0 0.0
      %525 = vmatpush1.msra.mxu0 0.0
      %526 = vmatprep.subr.mxu0 0.0
      %527 = vmatpush1.msra.mxu0 0.0
      %528 = vmatprep.subr.mxu0 0.0
      %529 = vmatpush1.msra.mxu0 0.0
      %530 = vmatprep.subr.mxu0 0.0
      %531 = vmatpush1.msra.mxu0 %v495
      %532 = vmatprep.subr.mxu0 0.0
      %533 = vmatpush2.msra.mxu0 0.0
      %534 = vmatprep.subr.mxu0 0.0
      %535 = vmatpush2.msra.mxu0 0.0
      %536 = vmatprep.subr.mxu0 0.0
      %537 = vmatpush2.msra.mxu0 0.0
      %538 = vmatprep.subr.mxu0 0.0
      %539 = vmatpush2.msra.mxu0 0.0
      %540 = vmatprep.subr.mxu0 0.0
      %541 = vmatpush2.msra.mxu0 0.0
      %542 = vmatprep.subr.mxu0 0.0
      %543 = vmatpush2.msra.mxu0 0.0
      %544 = vmatprep.subr.mxu0 0.0
      %545 = vmatpush2.msra.mxu0 0.0
      %546 = vmatprep.subr.mxu0 0.0
      %547 = vmatpush2.msra.mxu0 0.0
      %548 = vmatprep.subr.mxu0 0.0
      %549 = vmatpush2.msra.mxu0 0.0
      %550 = vmatprep.subr.mxu0 0.0
      %551 = vmatpush2.msra.mxu0 0.0
      %552 = vmatprep.subr.mxu0 0.0
      %553 = vmatpush2.msra.mxu0 0.0
      %554 = vmatprep.subr.mxu0 0.0
      %555 = vmatpush2.msra.mxu0 0.0
      %556 = vmatprep.subr.mxu0 0.0
      %557 = vmatpush2.msra.mxu0 0.0
      %558 = vmatprep.subr.mxu0 0.0
      %559 = vmatpush2.msra.mxu0 0.0
      %560 = vmatprep.subr.mxu0 0.0
      %561 = vmatpush2.msra.mxu0 0.0
      %562 = vmatprep.subr.mxu0 0.0
      %563 = vmatpush2.msra.mxu0 0.0
      %564 = vmatprep.mubr.f32.mxu0 0.0
      %565 = vmatmul.mubr.f32.gmra.mxu0 %v498
      %v566 = vpop.f32.mrf.mxu0
      %v567 = vadd.f32 %v491, %v566
      %v568 = vpop.f32.mrf.mxu0
      %569 = vdwg.mxu0
      %570 = vst.msk [vmem:[%s220] sm:$0xff] %vm330, %v567
      %vm571 = vcmask 917248
      %v572 = vsel %vm571, %v233, 0.0
      %v573 = vrot.slane %v572, 4
      %v574 = vadd.f32 %v572, %v573
      %v575 = vrot.slane %v574, 2
      %v576 = vadd.f32 %v574, %v575
      %v577 = vrot.slane %v576, 1
      %v578 = vadd.f32 %v576, %v577
      %v579 = vmul.f32 %v578, 1.442695
      %v580 = vpow.pop %v579
      %582 = vrot.lane.b32.xlu0 %v580, 64
      %v583 = vpop.permute.xlu0 %582
      %v585 = vmul.f32 %v326, %v583
      %vm586 = vcmp.eq.s32.totalorder %v227, %v229
      %vm587 = vcmp.eq.s32.totalorder %v232, %v229
      %588 = vrot.lane.b32.xlu0 %v580, 32
      %v589 = vpop.permute.xlu0 %588
      %v591 = vsel %vm586, %v589, 0.0
      %v592 = vsel %vm587, %v589, 0.0
      %v594 = vsel %vm330, %v591, 0
      %v597 = vsel %vm330, %v592, 0
      %599 = vmatprep.subr.mxu0 0.0
      %600 = vmatpush1.msra.mxu0 0.0
      %601 = vmatprep.subr.mxu0 0.0
      %602 = vmatpush1.msra.mxu0 0.0
      %603 = vmatprep.subr.mxu0 0.0
      %604 = vmatpush1.msra.mxu0 0.0
      %605 = vmatprep.subr.mxu0 0.0
      %606 = vmatpush1.msra.mxu0 0.0
      %607 = vmatprep.subr.mxu0 0.0
      %608 = vmatpush1.msra.mxu0 0.0
      %609 = vmatprep.subr.mxu0 0.0
      %610 = vmatpush1.msra.mxu0 0.0
      %611 = vmatprep.subr.mxu0 0.0
      %612 = vmatpush1.msra.mxu0 0.0
      %613 = vmatprep.subr.mxu0 0.0
      %614 = vmatpush1.msra.mxu0 0.0
      %615 = vmatprep.subr.mxu0 0.0
      %616 = vmatpush1.msra.mxu0 0.0
      %617 = vmatprep.subr.mxu0 0.0
      %618 = vmatpush1.msra.mxu0 0.0
      %619 = vmatprep.subr.mxu0 0.0
      %620 = vmatpush1.msra.mxu0 0.0
      %621 = vmatprep.subr.mxu0 0.0
      %622 = vmatpush1.msra.mxu0 0.0
      %623 = vmatprep.subr.mxu0 0.0
      %624 = vmatpush1.msra.mxu0 0.0
      %625 = vmatprep.subr.mxu0 0.0
      %626 = vmatpush1.msra.mxu0 0.0
      %627 = vmatprep.subr.mxu0 0.0
      %628 = vmatpush1.msra.mxu0 %v236
      %629 = vmatprep.subr.mxu0 0.0
      %630 = vmatpush1.msra.mxu0 %v235
      %631 = vmatprep.subr.mxu0 0.0
      %632 = vmatpush2.msra.mxu0 0.0
      %633 = vmatprep.subr.mxu0 0.0
      %634 = vmatpush2.msra.mxu0 0.0
      %635 = vmatprep.subr.mxu0 0.0
      %636 = vmatpush2.msra.mxu0 0.0
      %637 = vmatprep.subr.mxu0 0.0
      %638 = vmatpush2.msra.mxu0 0.0
      %639 = vmatprep.subr.mxu0 0.0
      %640 = vmatpush2.msra.mxu0 0.0
      %641 = vmatprep.subr.mxu0 0.0
      %642 = vmatpush2.msra.mxu0 0.0
      %643 = vmatprep.subr.mxu0 0.0
      %644 = vmatpush2.msra.mxu0 0.0
      %645 = vmatprep.subr.mxu0 0.0
      %646 = vmatpush2.msra.mxu0 0.0
      %647 = vmatprep.subr.mxu0 0.0
      %648 = vmatpush2.msra.mxu0 0.0
      %649 = vmatprep.subr.mxu0 0.0
      %650 = vmatpush2.msra.mxu0 0.0
      %651 = vmatprep.subr.mxu0 0.0
      %652 = vmatpush2.msra.mxu0 0.0
      %653 = vmatprep.subr.mxu0 0.0
      %654 = vmatpush2.msra.mxu0 0.0
      %655 = vmatprep.subr.mxu0 0.0
      %656 = vmatpush2.msra.mxu0 0.0
      %657 = vmatprep.subr.mxu0 0.0
      %658 = vmatpush2.msra.mxu0 0.0
      %659 = vmatprep.subr.mxu0 0.0
      %660 = vmatpush2.msra.mxu0 0.0
      %661 = vmatprep.subr.mxu0 0.0
      %662 = vmatpush2.msra.mxu0 0.0
      %663 = vmatprep.mubr.f32.mxu0 0.0
      %664 = vmatmul.mubr.f32.gmra.mxu0 %v594
      %v665 = vpop.f32.mrf.mxu0
      %v666 = vadd.f32 0.0, %v665
      %v667 = vpop.f32.mrf.mxu0
      %668 = vmatprep.mubr.f32.mxu0 0.0
      %669 = vmatmul.mubr.f32.gmra.mxu0 %v597
      %v670 = vpop.f32.mrf.mxu0
      %v671 = vadd.f32 0.0, %v670
      %v672 = vpop.f32.mrf.mxu0
      %673 = vdwg.mxu0
      %675 = vrot.lane.b32.xlu0 %v585, 96
      %v676 = vpop.permute.xlu0 %675
      %678 = vxpose.xlu0.b32.start [1/16] %v676, 128
      %679 = vxpose.xlu0.b32.cont [2/16] 0.0, 128
      %680 = vxpose.xlu0.b32.cont [3/16] 0.0, 128
      %681 = vxpose.xlu0.b32.cont [4/16] 0.0, 128
      %682 = vxpose.xlu0.b32.cont [5/16] 0.0, 128
      %683 = vxpose.xlu0.b32.cont [6/16] 0.0, 128
      %684 = vxpose.xlu0.b32.cont [7/16] 0.0, 128
      %685 = vxpose.xlu0.b32.cont [8/16] 0.0, 128
      %686 = vxpose.xlu0.b32.cont [9/16] 0.0, 128
      %687 = vxpose.xlu0.b32.cont [10/16] 0.0, 128
      %688 = vxpose.xlu0.b32.cont [11/16] 0.0, 128
      %689 = vxpose.xlu0.b32.cont [12/16] 0.0, 128
      %690 = vxpose.xlu0.b32.cont [13/16] 0.0, 128
      %691 = vxpose.xlu0.b32.cont [14/16] 0.0, 128
      %692 = vxpose.xlu0.b32.cont [15/16] 0.0, 128
      %693 = vxpose.xlu0.b32.end [16/16] 0.0, 128
      %v694 = vpop.trf.xlu0
      %v695 = vpop.trf.xlu0
      %v696 = vpop.trf.xlu0
      %v697 = vpop.trf.xlu0
      %v698 = vpop.trf.xlu0
      %v699 = vpop.trf.xlu0
      %v700 = vpop.trf.xlu0
      %v701 = vpop.trf.xlu0
      %v702 = vpop.trf.xlu0
      %v703 = vpop.trf.xlu0
      %v704 = vpop.trf.xlu0
      %v705 = vpop.trf.xlu0
      %v706 = vpop.trf.xlu0
      %v707 = vpop.trf.xlu0
      %v708 = vpop.trf.xlu0
      %v709 = vpop.trf.xlu0
      %v711 = vsel %vm241, %v694, 0
      %v714 = vsel %vm241, %v695, 0
      %716 = vmatprep.subr.mxu0 0.0
      %717 = vmatpush1.msra.mxu0 0.0
      %718 = vmatprep.subr.mxu0 0.0
      %719 = vmatpush1.msra.mxu0 0.0
      %720 = vmatprep.subr.mxu0 0.0
      %721 = vmatpush1.msra.mxu0 0.0
      %722 = vmatprep.subr.mxu0 0.0
      %723 = vmatpush1.msra.mxu0 0.0
      %724 = vmatprep.subr.mxu0 0.0
      %725 = vmatpush1.msra.mxu0 0.0
      %726 = vmatprep.subr.mxu0 0.0
      %727 = vmatpush1.msra.mxu0 0.0
      %728 = vmatprep.subr.mxu0 0.0
      %729 = vmatpush1.msra.mxu0 0.0
      %730 = vmatprep.subr.mxu0 0.0
      %731 = vmatpush1.msra.mxu0 0.0
      %732 = vmatprep.subr.mxu0 0.0
      %733 = vmatpush1.msra.mxu0 0.0
      %734 = vmatprep.subr.mxu0 0.0
      %735 = vmatpush1.msra.mxu0 0.0
      %736 = vmatprep.subr.mxu0 0.0
      %737 = vmatpush1.msra.mxu0 0.0
      %738 = vmatprep.subr.mxu0 0.0
      %739 = vmatpush1.msra.mxu0 0.0
      %740 = vmatprep.subr.mxu0 0.0
      %741 = vmatpush1.msra.mxu0 0.0
      %742 = vmatprep.subr.mxu0 0.0
      %743 = vmatpush1.msra.mxu0 0.0
      %744 = vmatprep.subr.mxu0 0.0
      %745 = vmatpush1.msra.mxu0 0.0
      %746 = vmatprep.subr.mxu0 0.0
      %747 = vmatpush1.msra.mxu0 %v495
      %748 = vmatprep.subr.mxu0 0.0
      %749 = vmatpush2.msra.mxu0 0.0
      %750 = vmatprep.subr.mxu0 0.0
      %751 = vmatpush2.msra.mxu0 0.0
      %752 = vmatprep.subr.mxu0 0.0
      %753 = vmatpush2.msra.mxu0 0.0
      %754 = vmatprep.subr.mxu0 0.0
      %755 = vmatpush2.msra.mxu0 0.0
      %756 = vmatprep.subr.mxu0 0.0
      %757 = vmatpush2.msra.mxu0 0.0
      %758 = vmatprep.subr.mxu0 0.0
      %759 = vmatpush2.msra.mxu0 0.0
      %760 = vmatprep.subr.mxu0 0.0
      %761 = vmatpush2.msra.mxu0 0.0
      %762 = vmatprep.subr.mxu0 0.0
      %763 = vmatpush2.msra.mxu0 0.0
      %764 = vmatprep.subr.mxu0 0.0
      %765 = vmatpush2.msra.mxu0 0.0
      %766 = vmatprep.subr.mxu0 0.0
      %767 = vmatpush2.msra.mxu0 0.0
      %768 = vmatprep.subr.mxu0 0.0
      %769 = vmatpush2.msra.mxu0 0.0
      %770 = vmatprep.subr.mxu0 0.0
      %771 = vmatpush2.msra.mxu0 0.0
      %772 = vmatprep.subr.mxu0 0.0
      %773 = vmatpush2.msra.mxu0 0.0
      %774 = vmatprep.subr.mxu0 0.0
      %775 = vmatpush2.msra.mxu0 0.0
      %776 = vmatprep.subr.mxu0 0.0
      %777 = vmatpush2.msra.mxu0 0.0
      %778 = vmatprep.subr.mxu0 0.0
      %779 = vmatpush2.msra.mxu0 0.0
      %780 = vmatprep.mubr.f32.mxu0 0.0
      %781 = vmatmul.mubr.f32.gmra.mxu0 %v711
      %v782 = vpop.f32.mrf.mxu0
      %v783 = vadd.f32 %v666, %v782
      %v784 = vpop.f32.mrf.mxu0
      %785 = vmatprep.mubr.f32.mxu0 0.0
      %786 = vmatmul.mubr.f32.gmra.mxu0 %v714
      %v787 = vpop.f32.mrf.mxu0
      %v788 = vadd.f32 %v671, %v787
      %v789 = vpop.f32.mrf.mxu0
      %790 = vdwg.mxu0
      %791 = vst.msk [vmem:[%s225] sm:$0xff] %vm330, %v783
      %792 = vst.msk [vmem:[%s225 + $0x8] sm:$0xff] %vm330, %v788
      %v793 = vld [vmem:[%s1] sm:$0x1]
      %s794 = scalar_lea.vmem %s216, 16
      %v795 = vld [vmem:[%s794] sm:$0xff]
      %v796 = vld [vmem:[%s794 + $0x8] sm:$0xff]
      %797 = vrot.lane.b32.xlu0 %v233, 16
      %v798 = vpop.permute.xlu0 %797
      %800 = vmatprep.subr.mxu0 0.0
      %801 = vmatpush1.msra.mxu0 0.0
      %802 = vmatprep.subr.mxu0 0.0
      %803 = vmatpush1.msra.mxu0 0.0
      %804 = vmatprep.subr.mxu0 0.0
      %805 = vmatpush1.msra.mxu0 0.0
      %806 = vmatprep.subr.mxu0 0.0
      %807 = vmatpush1.msra.mxu0 0.0
      %808 = vmatprep.subr.mxu0 0.0
      %809 = vmatpush1.msra.mxu0 0.0
      %810 = vmatprep.subr.mxu0 0.0
      %811 = vmatpush1.msra.mxu0 0.0
      %812 = vmatprep.subr.mxu0 0.0
      %813 = vmatpush1.msra.mxu0 0.0
      %814 = vmatprep.subr.mxu0 0.0
      %815 = vmatpush1.msra.mxu0 0.0
      %816 = vmatprep.subr.mxu0 0.0
      %817 = vmatpush1.msra.mxu0 0.0
      %818 = vmatprep.subr.mxu0 0.0
      %819 = vmatpush1.msra.mxu0 0.0
      %820 = vmatprep.subr.mxu0 0.0
      %821 = vmatpush1.msra.mxu0 0.0
      %822 = vmatprep.subr.mxu0 0.0
      %823 = vmatpush1.msra.mxu0 0.0
      %824 = vmatprep.subr.mxu0 0.0
      %825 = vmatpush1.msra.mxu0 0.0
      %826 = vmatprep.subr.mxu0 0.0
      %827 = vmatpush1.msra.mxu0 0.0
      %828 = vmatprep.subr.mxu0 0.0
      %829 = vmatpush1.msra.mxu0 0.0
      %830 = vmatprep.subr.mxu0 0.0
      %831 = vmatpush1.msra.mxu0 %v798
      %832 = vmatprep.subr.mxu0 0.0
      %833 = vmatpush2.msra.mxu0 0.0
      %834 = vmatprep.subr.mxu0 0.0
      %835 = vmatpush2.msra.mxu0 0.0
      %836 = vmatprep.subr.mxu0 0.0
      %837 = vmatpush2.msra.mxu0 0.0
      %838 = vmatprep.subr.mxu0 0.0
      %839 = vmatpush2.msra.mxu0 0.0
      %840 = vmatprep.subr.mxu0 0.0
      %841 = vmatpush2.msra.mxu0 0.0
      %842 = vmatprep.subr.mxu0 0.0
      %843 = vmatpush2.msra.mxu0 0.0
      %844 = vmatprep.subr.mxu0 0.0
      %845 = vmatpush2.msra.mxu0 0.0
      %846 = vmatprep.subr.mxu0 0.0
      %847 = vmatpush2.msra.mxu0 0.0
      %848 = vmatprep.subr.mxu0 0.0
      %849 = vmatpush2.msra.mxu0 0.0
      %850 = vmatprep.subr.mxu0 0.0
      %851 = vmatpush2.msra.mxu0 0.0
      %852 = vmatprep.subr.mxu0 0.0
      %853 = vmatpush2.msra.mxu0 0.0
      %854 = vmatprep.subr.mxu0 0.0
      %855 = vmatpush2.msra.mxu0 0.0
      %856 = vmatprep.subr.mxu0 0.0
      %857 = vmatpush2.msra.mxu0 0.0
      %858 = vmatprep.subr.mxu0 0.0
      %859 = vmatpush2.msra.mxu0 0.0
      %860 = vmatprep.subr.mxu0 0.0
      %861 = vmatpush2.msra.mxu0 0.0
      %862 = vmatprep.subr.mxu0 0.0
      %863 = vmatpush2.msra.mxu0 0.0
      %864 = vmatprep.mubr.f32.mxu0 0.0
      %865 = vmatmul.mubr.f32.gmra.mxu0 %v243
      %v866 = vpop.f32.mrf.mxu0
      %v867 = vadd.f32 0.0, %v866
      %v868 = vpop.f32.mrf.mxu0
      %869 = vdwg.mxu0
      %v870 = vadd.f32 %v867, %v798
      %v871 = vmul.f32 %v867, 1.442695
      %v872 = vpow.pop %v871
      %874 = vrot.lane.b32.xlu0 %v872, 16
      %v875 = vpop.permute.xlu0 %874
      %v877 = vmul.f32 %v233, %v875
      %v878 = vsub.f32 0.0, %v870
      %v879 = vmul.f32 %v878, 1.442695
      %v880 = vpow.pop %v879
      %882 = vrot.lane.b32.xlu0 %v880, 48
      %v883 = vpop.permute.xlu0 %882
      %v885 = vmul.f32 %v233, %v883
      %887 = vrot.lane.b32.xlu0 %v877, 112
      %v888 = vpop.permute.xlu0 %887
      %890 = vrot.lane.b32.xlu0 %v885, 80
      %v891 = vpop.permute.xlu0 %890
      %v892 = vsel %vm330, %v888, 0
      %v894 = vsel %vm330, %v891, 0
      %896 = vmatprep.subr.mxu0 0.0
      %897 = vmatpush1.xpose.msra.mxu0 0.0
      %898 = vmatprep.subr.mxu0 0.0
      %899 = vmatpush1.xpose.msra.mxu0 0.0
      %900 = vmatprep.subr.mxu0 0.0
      %901 = vmatpush1.xpose.msra.mxu0 0.0
      %902 = vmatprep.subr.mxu0 0.0
      %903 = vmatpush1.xpose.msra.mxu0 0.0
      %904 = vmatprep.subr.mxu0 0.0
      %905 = vmatpush1.xpose.msra.mxu0 0.0
      %906 = vmatprep.subr.mxu0 0.0
      %907 = vmatpush1.xpose.msra.mxu0 0.0
      %908 = vmatprep.subr.mxu0 0.0
      %909 = vmatpush1.xpose.msra.mxu0 0.0
      %910 = vmatprep.subr.mxu0 0.0
      %911 = vmatpush1.xpose.msra.mxu0 0.0
      %912 = vmatprep.subr.mxu0 0.0
      %913 = vmatpush1.xpose.msra.mxu0 0.0
      %914 = vmatprep.subr.mxu0 0.0
      %915 = vmatpush1.xpose.msra.mxu0 0.0
      %916 = vmatprep.subr.mxu0 0.0
      %917 = vmatpush1.xpose.msra.mxu0 0.0
      %918 = vmatprep.subr.mxu0 0.0
      %919 = vmatpush1.xpose.msra.mxu0 0.0
      %920 = vmatprep.subr.mxu0 0.0
      %921 = vmatpush1.xpose.msra.mxu0 0.0
      %922 = vmatprep.subr.mxu0 0.0
      %923 = vmatpush1.xpose.msra.mxu0 0.0
      %924 = vmatprep.subr.mxu0 0.0
      %925 = vmatpush1.xpose.msra.mxu0 0.0
      %926 = vmatprep.subr.mxu0 0.0
      %927 = vmatpush1.xpose.msra.mxu0 %v894
      %928 = vmatprep.subr.mxu0 0.0
      %929 = vmatpush2.xpose.msra.mxu0 0.0
      %930 = vmatprep.subr.mxu0 0.0
      %931 = vmatpush2.xpose.msra.mxu0 0.0
      %932 = vmatprep.subr.mxu0 0.0
      %933 = vmatpush2.xpose.msra.mxu0 0.0
      %934 = vmatprep.subr.mxu0 0.0
      %935 = vmatpush2.xpose.msra.mxu0 0.0
      %936 = vmatprep.subr.mxu0 0.0
      %937 = vmatpush2.xpose.msra.mxu0 0.0
      %938 = vmatprep.subr.mxu0 0.0
      %939 = vmatpush2.xpose.msra.mxu0 0.0
      %940 = vmatprep.subr.mxu0 0.0
      %941 = vmatpush2.xpose.msra.mxu0 0.0
      %942 = vmatprep.subr.mxu0 0.0
      %943 = vmatpush2.xpose.msra.mxu0 0.0
      %944 = vmatprep.subr.mxu0 0.0
      %945 = vmatpush2.xpose.msra.mxu0 0.0
      %946 = vmatprep.subr.mxu0 0.0
      %947 = vmatpush2.xpose.msra.mxu0 0.0
      %948 = vmatprep.subr.mxu0 0.0
      %949 = vmatpush2.xpose.msra.mxu0 0.0
      %950 = vmatprep.subr.mxu0 0.0
      %951 = vmatpush2.xpose.msra.mxu0 0.0
      %952 = vmatprep.subr.mxu0 0.0
      %953 = vmatpush2.xpose.msra.mxu0 0.0
      %954 = vmatprep.subr.mxu0 0.0
      %955 = vmatpush2.xpose.msra.mxu0 0.0
      %956 = vmatprep.subr.mxu0 0.0
      %957 = vmatpush2.xpose.msra.mxu0 0.0
      %958 = vmatprep.subr.mxu0 0.0
      %959 = vmatpush2.xpose.msra.mxu0 0.0
      %960 = vmatprep.mubr.f32.mxu0 0.0
      %961 = vmatmul.mubr.f32.gmra.mxu0 %v892
      %v962 = vpop.f32.mrf.mxu0
      %v963 = vadd.f32 0.0, %v962
      %v964 = vpop.f32.mrf.mxu0
      %965 = vdwg.mxu0
      %v967 = vlaneseq
      %v968 = vshrl.u32 %v967, 7
      %v969 = vsub.s32 0, %v968
      %v970 = vrot.slane %v793, %v969
      %v972 = vmul.f32 %v233, %v970
      %v973 = vmul.f32 %v972, %v414
      %975 = vrot.lane.b32.xlu0 %v973, 112
      %v976 = vpop.permute.xlu0 %975
      %v978 = vsel %vm330, %v976, 0.0
      %979 = vadd.xlane.f32.xlu0 %v978
      %v980 = vpop.xlane.xlu0 %979
      %v981 = vsel %vm230, %v963, 0.0
      %v982 = vsel %vm421, %v980, 0.0
      %v983 = vadd.f32 %v981, %v982
      %984 = vmatprep.subr.mxu0 0.0
      %985 = vmatpush1.msra.mxu0 0.0
      %986 = vmatprep.subr.mxu0 0.0
      %987 = vmatpush1.msra.mxu0 0.0
      %988 = vmatprep.subr.mxu0 0.0
      %989 = vmatpush1.msra.mxu0 0.0
      %990 = vmatprep.subr.mxu0 0.0
      %991 = vmatpush1.msra.mxu0 0.0
      %992 = vmatprep.subr.mxu0 0.0
      %993 = vmatpush1.msra.mxu0 0.0
      %994 = vmatprep.subr.mxu0 0.0
      %995 = vmatpush1.msra.mxu0 0.0
      %996 = vmatprep.subr.mxu0 0.0
      %997 = vmatpush1.msra.mxu0 0.0
      %998 = vmatprep.subr.mxu0 0.0
      %999 = vmatpush1.msra.mxu0 0.0
      %1000 = vmatprep.subr.mxu0 0.0
      %1001 = vmatpush1.msra.mxu0 0.0
      %1002 = vmatprep.subr.mxu0 0.0
      %1003 = vmatpush1.msra.mxu0 0.0
      %1004 = vmatprep.subr.mxu0 0.0
      %1005 = vmatpush1.msra.mxu0 0.0
      %1006 = vmatprep.subr.mxu0 0.0
      %1007 = vmatpush1.msra.mxu0 0.0
      %1008 = vmatprep.subr.mxu0 0.0
      %1009 = vmatpush1.msra.mxu0 0.0
      %1010 = vmatprep.subr.mxu0 0.0
      %1011 = vmatpush1.msra.mxu0 0.0
      %1012 = vmatprep.subr.mxu0 0.0
      %1013 = vmatpush1.msra.mxu0 %v796
      %1014 = vmatprep.subr.mxu0 0.0
      %1015 = vmatpush1.msra.mxu0 %v795
      %1016 = vmatprep.subr.mxu0 0.0
      %1017 = vmatpush2.msra.mxu0 0.0
      %1018 = vmatprep.subr.mxu0 0.0
      %1019 = vmatpush2.msra.mxu0 0.0
      %1020 = vmatprep.subr.mxu0 0.0
      %1021 = vmatpush2.msra.mxu0 0.0
      %1022 = vmatprep.subr.mxu0 0.0
      %1023 = vmatpush2.msra.mxu0 0.0
      %1024 = vmatprep.subr.mxu0 0.0
      %1025 = vmatpush2.msra.mxu0 0.0
      %1026 = vmatprep.subr.mxu0 0.0
      %1027 = vmatpush2.msra.mxu0 0.0
      %1028 = vmatprep.subr.mxu0 0.0
      %1029 = vmatpush2.msra.mxu0 0.0
      %1030 = vmatprep.subr.mxu0 0.0
      %1031 = vmatpush2.msra.mxu0 0.0
      %1032 = vmatprep.subr.mxu0 0.0
      %1033 = vmatpush2.msra.mxu0 0.0
      %1034 = vmatprep.subr.mxu0 0.0
      %1035 = vmatpush2.msra.mxu0 0.0
      %1036 = vmatprep.subr.mxu0 0.0
      %1037 = vmatpush2.msra.mxu0 0.0
      %1038 = vmatprep.subr.mxu0 0.0
      %1039 = vmatpush2.msra.mxu0 0.0
      %1040 = vmatprep.subr.mxu0 0.0
      %1041 = vmatpush2.msra.mxu0 0.0
      %1042 = vmatprep.subr.mxu0 0.0
      %1043 = vmatpush2.msra.mxu0 0.0
      %1044 = vmatprep.subr.mxu0 0.0
      %1045 = vmatpush2.msra.mxu0 0.0
      %1046 = vmatprep.subr.mxu0 0.0
      %1047 = vmatpush2.msra.mxu0 0.0
      %1048 = vmatprep.mubr.f32.mxu0 0.0
      %1049 = vmatmul.mubr.f32.gmra.mxu0 %v892
      %v1050 = vpop.f32.mrf.mxu0
      %v1051 = vadd.f32 0.0, %v1050
      %v1052 = vpop.f32.mrf.mxu0
      %1053 = vdwg.mxu0
      %1054 = vrot.lane.b32.xlu0 %v233, 48
      %v1055 = vpop.permute.xlu0 %1054
      %v1058 = vsel %vm241, %v983, 0
      %1060 = vmatprep.subr.mxu0 0.0
      %1061 = vmatpush1.msra.mxu0 0.0
      %1062 = vmatprep.subr.mxu0 0.0
      %1063 = vmatpush1.msra.mxu0 0.0
      %1064 = vmatprep.subr.mxu0 0.0
      %1065 = vmatpush1.msra.mxu0 0.0
      %1066 = vmatprep.subr.mxu0 0.0
      %1067 = vmatpush1.msra.mxu0 0.0
      %1068 = vmatprep.subr.mxu0 0.0
      %1069 = vmatpush1.msra.mxu0 0.0
      %1070 = vmatprep.subr.mxu0 0.0
      %1071 = vmatpush1.msra.mxu0 0.0
      %1072 = vmatprep.subr.mxu0 0.0
      %1073 = vmatpush1.msra.mxu0 0.0
      %1074 = vmatprep.subr.mxu0 0.0
      %1075 = vmatpush1.msra.mxu0 0.0
      %1076 = vmatprep.subr.mxu0 0.0
      %1077 = vmatpush1.msra.mxu0 0.0
      %1078 = vmatprep.subr.mxu0 0.0
      %1079 = vmatpush1.msra.mxu0 0.0
      %1080 = vmatprep.subr.mxu0 0.0
      %1081 = vmatpush1.msra.mxu0 0.0
      %1082 = vmatprep.subr.mxu0 0.0
      %1083 = vmatpush1.msra.mxu0 0.0
      %1084 = vmatprep.subr.mxu0 0.0
      %1085 = vmatpush1.msra.mxu0 0.0
      %1086 = vmatprep.subr.mxu0 0.0
      %1087 = vmatpush1.msra.mxu0 0.0
      %1088 = vmatprep.subr.mxu0 0.0
      %1089 = vmatpush1.msra.mxu0 0.0
      %1090 = vmatprep.subr.mxu0 0.0
      %1091 = vmatpush1.msra.mxu0 %v1055
      %1092 = vmatprep.subr.mxu0 0.0
      %1093 = vmatpush2.msra.mxu0 0.0
      %1094 = vmatprep.subr.mxu0 0.0
      %1095 = vmatpush2.msra.mxu0 0.0
      %1096 = vmatprep.subr.mxu0 0.0
      %1097 = vmatpush2.msra.mxu0 0.0
      %1098 = vmatprep.subr.mxu0 0.0
      %1099 = vmatpush2.msra.mxu0 0.0
      %1100 = vmatprep.subr.mxu0 0.0
      %1101 = vmatpush2.msra.mxu0 0.0
      %1102 = vmatprep.subr.mxu0 0.0
      %1103 = vmatpush2.msra.mxu0 0.0
      %1104 = vmatprep.subr.mxu0 0.0
      %1105 = vmatpush2.msra.mxu0 0.0
      %1106 = vmatprep.subr.mxu0 0.0
      %1107 = vmatpush2.msra.mxu0 0.0
      %1108 = vmatprep.subr.mxu0 0.0
      %1109 = vmatpush2.msra.mxu0 0.0
      %1110 = vmatprep.subr.mxu0 0.0
      %1111 = vmatpush2.msra.mxu0 0.0
      %1112 = vmatprep.subr.mxu0 0.0
      %1113 = vmatpush2.msra.mxu0 0.0
      %1114 = vmatprep.subr.mxu0 0.0
      %1115 = vmatpush2.msra.mxu0 0.0
      %1116 = vmatprep.subr.mxu0 0.0
      %1117 = vmatpush2.msra.mxu0 0.0
      %1118 = vmatprep.subr.mxu0 0.0
      %1119 = vmatpush2.msra.mxu0 0.0
      %1120 = vmatprep.subr.mxu0 0.0
      %1121 = vmatpush2.msra.mxu0 0.0
      %1122 = vmatprep.subr.mxu0 0.0
      %1123 = vmatpush2.msra.mxu0 0.0
      %1124 = vmatprep.mubr.f32.mxu0 0.0
      %1125 = vmatmul.mubr.f32.gmra.mxu0 %v1058
      %v1126 = vpop.f32.mrf.mxu0
      %v1127 = vadd.f32 %v1051, %v1126
      %v1128 = vpop.f32.mrf.mxu0
      %1129 = vdwg.mxu0
      %1131 = vrot.lane.b32.xlu0 %v1127, 16
      %v1132 = vpop.permute.xlu0 %1131
      %vm1134 = vcmask 261248
      %1135 = vst.msk [vmem:[%s220] sm:$0xff] %vm1134, %v1132
      %vm1136 = vcmask 1048448
      %v1137 = vsel %vm1136, %v233, 0.0
      %v1138 = vrot.slane %v1137, 4
      %v1139 = vadd.f32 %v1137, %v1138
      %v1140 = vrot.slane %v1139, 2
      %v1141 = vadd.f32 %v1139, %v1140
      %v1142 = vrot.slane %v1141, 1
      %v1143 = vadd.f32 %v1141, %v1142
      %v1144 = vmul.f32 %v1143, 1.442695
      %v1145 = vpow.pop %v1144
      %1147 = vrot.lane.b32.xlu0 %v1145, 64
      %v1148 = vpop.permute.xlu0 %1147
      %v1150 = vmul.f32 %v885, %v1148
      %1151 = vrot.lane.b32.xlu0 %v1145, 16
      %v1152 = vpop.permute.xlu0 %1151
      %v1154 = vsel %vm586, %v1152, 0.0
      %v1155 = vsel %vm587, %v1152, 0.0
      %v1157 = vsel %vm330, %v1154, 0
      %v1160 = vsel %vm330, %v1155, 0
      %1162 = vmatprep.subr.mxu0 0.0
      %1163 = vmatpush1.msra.mxu0 0.0
      %1164 = vmatprep.subr.mxu0 0.0
      %1165 = vmatpush1.msra.mxu0 0.0
      %1166 = vmatprep.subr.mxu0 0.0
      %1167 = vmatpush1.msra.mxu0 0.0
      %1168 = vmatprep.subr.mxu0 0.0
      %1169 = vmatpush1.msra.mxu0 0.0
      %1170 = vmatprep.subr.mxu0 0.0
      %1171 = vmatpush1.msra.mxu0 0.0
      %1172 = vmatprep.subr.mxu0 0.0
      %1173 = vmatpush1.msra.mxu0 0.0
      %1174 = vmatprep.subr.mxu0 0.0
      %1175 = vmatpush1.msra.mxu0 0.0
      %1176 = vmatprep.subr.mxu0 0.0
      %1177 = vmatpush1.msra.mxu0 0.0
      %1178 = vmatprep.subr.mxu0 0.0
      %1179 = vmatpush1.msra.mxu0 0.0
      %1180 = vmatprep.subr.mxu0 0.0
      %1181 = vmatpush1.msra.mxu0 0.0
      %1182 = vmatprep.subr.mxu0 0.0
      %1183 = vmatpush1.msra.mxu0 0.0
      %1184 = vmatprep.subr.mxu0 0.0
      %1185 = vmatpush1.msra.mxu0 0.0
      %1186 = vmatprep.subr.mxu0 0.0
      %1187 = vmatpush1.msra.mxu0 0.0
      %1188 = vmatprep.subr.mxu0 0.0
      %1189 = vmatpush1.msra.mxu0 0.0
      %1190 = vmatprep.subr.mxu0 0.0
      %1191 = vmatpush1.msra.mxu0 %v796
      %1192 = vmatprep.subr.mxu0 0.0
      %1193 = vmatpush1.msra.mxu0 %v795
      %1194 = vmatprep.subr.mxu0 0.0
      %1195 = vmatpush2.msra.mxu0 0.0
      %1196 = vmatprep.subr.mxu0 0.0
      %1197 = vmatpush2.msra.mxu0 0.0
      %1198 = vmatprep.subr.mxu0 0.0
      %1199 = vmatpush2.msra.mxu0 0.0
      %1200 = vmatprep.subr.mxu0 0.0
      %1201 = vmatpush2.msra.mxu0 0.0
      %1202 = vmatprep.subr.mxu0 0.0
      %1203 = vmatpush2.msra.mxu0 0.0
      %1204 = vmatprep.subr.mxu0 0.0
      %1205 = vmatpush2.msra.mxu0 0.0
      %1206 = vmatprep.subr.mxu0 0.0
      %1207 = vmatpush2.msra.mxu0 0.0
      %1208 = vmatprep.subr.mxu0 0.0
      %1209 = vmatpush2.msra.mxu0 0.0
      %1210 = vmatprep.subr.mxu0 0.0
      %1211 = vmatpush2.msra.mxu0 0.0
      %1212 = vmatprep.subr.mxu0 0.0
      %1213 = vmatpush2.msra.mxu0 0.0
      %1214 = vmatprep.subr.mxu0 0.0
      %1215 = vmatpush2.msra.mxu0 0.0
      %1216 = vmatprep.subr.mxu0 0.0
      %1217 = vmatpush2.msra.mxu0 0.0
      %1218 = vmatprep.subr.mxu0 0.0
      %1219 = vmatpush2.msra.mxu0 0.0
      %1220 = vmatprep.subr.mxu0 0.0
      %1221 = vmatpush2.msra.mxu0 0.0
      %1222 = vmatprep.subr.mxu0 0.0
      %1223 = vmatpush2.msra.mxu0 0.0
      %1224 = vmatprep.subr.mxu0 0.0
      %1225 = vmatpush2.msra.mxu0 0.0
      %1226 = vmatprep.mubr.f32.mxu0 0.0
      %1227 = vmatmul.mubr.f32.gmra.mxu0 %v1157
      %v1228 = vpop.f32.mrf.mxu0
      %v1229 = vadd.f32 0.0, %v1228
      %v1230 = vpop.f32.mrf.mxu0
      %1231 = vmatprep.mubr.f32.mxu0 0.0
      %1232 = vmatmul.mubr.f32.gmra.mxu0 %v1160
      %v1233 = vpop.f32.mrf.mxu0
      %v1234 = vadd.f32 0.0, %v1233
      %v1235 = vpop.f32.mrf.mxu0
      %1236 = vdwg.mxu0
      %1238 = vrot.lane.b32.xlu0 %v1150, 80
      %v1239 = vpop.permute.xlu0 %1238
      %1241 = vxpose.xlu0.b32.start [1/16] %v1239, 128
      %1242 = vxpose.xlu0.b32.cont [2/16] 0.0, 128
      %1243 = vxpose.xlu0.b32.cont [3/16] 0.0, 128
      %1244 = vxpose.xlu0.b32.cont [4/16] 0.0, 128
      %1245 = vxpose.xlu0.b32.cont [5/16] 0.0, 128
      %1246 = vxpose.xlu0.b32.cont [6/16] 0.0, 128
      %1247 = vxpose.xlu0.b32.cont [7/16] 0.0, 128
      %1248 = vxpose.xlu0.b32.cont [8/16] 0.0, 128
      %1249 = vxpose.xlu0.b32.cont [9/16] 0.0, 128
      %1250 = vxpose.xlu0.b32.cont [10/16] 0.0, 128
      %1251 = vxpose.xlu0.b32.cont [11/16] 0.0, 128
      %1252 = vxpose.xlu0.b32.cont [12/16] 0.0, 128
      %1253 = vxpose.xlu0.b32.cont [13/16] 0.0, 128
      %1254 = vxpose.xlu0.b32.cont [14/16] 0.0, 128
      %1255 = vxpose.xlu0.b32.cont [15/16] 0.0, 128
      %1256 = vxpose.xlu0.b32.end [16/16] 0.0, 128
      %v1257 = vpop.trf.xlu0
      %v1258 = vpop.trf.xlu0
      %v1259 = vpop.trf.xlu0
      %v1260 = vpop.trf.xlu0
      %v1261 = vpop.trf.xlu0
      %v1262 = vpop.trf.xlu0
      %v1263 = vpop.trf.xlu0
      %v1264 = vpop.trf.xlu0
      %v1265 = vpop.trf.xlu0
      %v1266 = vpop.trf.xlu0
      %v1267 = vpop.trf.xlu0
      %v1268 = vpop.trf.xlu0
      %v1269 = vpop.trf.xlu0
      %v1270 = vpop.trf.xlu0
      %v1271 = vpop.trf.xlu0
      %v1272 = vpop.trf.xlu0
      %v1274 = vsel %vm241, %v1257, 0
      %v1277 = vsel %vm241, %v1258, 0
      %1279 = vmatprep.subr.mxu0 0.0
      %1280 = vmatpush1.msra.mxu0 0.0
      %1281 = vmatprep.subr.mxu0 0.0
      %1282 = vmatpush1.msra.mxu0 0.0
      %1283 = vmatprep.subr.mxu0 0.0
      %1284 = vmatpush1.msra.mxu0 0.0
      %1285 = vmatprep.subr.mxu0 0.0
      %1286 = vmatpush1.msra.mxu0 0.0
      %1287 = vmatprep.subr.mxu0 0.0
      %1288 = vmatpush1.msra.mxu0 0.0
      %1289 = vmatprep.subr.mxu0 0.0
      %1290 = vmatpush1.msra.mxu0 0.0
      %1291 = vmatprep.subr.mxu0 0.0
      %1292 = vmatpush1.msra.mxu0 0.0
      %1293 = vmatprep.subr.mxu0 0.0
      %1294 = vmatpush1.msra.mxu0 0.0
      %1295 = vmatprep.subr.mxu0 0.0
      %1296 = vmatpush1.msra.mxu0 0.0
      %1297 = vmatprep.subr.mxu0 0.0
      %1298 = vmatpush1.msra.mxu0 0.0
      %1299 = vmatprep.subr.mxu0 0.0
      %1300 = vmatpush1.msra.mxu0 0.0
      %1301 = vmatprep.subr.mxu0 0.0
      %1302 = vmatpush1.msra.mxu0 0.0
      %1303 = vmatprep.subr.mxu0 0.0
      %1304 = vmatpush1.msra.mxu0 0.0
      %1305 = vmatprep.subr.mxu0 0.0
      %1306 = vmatpush1.msra.mxu0 0.0
      %1307 = vmatprep.subr.mxu0 0.0
      %1308 = vmatpush1.msra.mxu0 0.0
      %1309 = vmatprep.subr.mxu0 0.0
      %1310 = vmatpush1.msra.mxu0 %v1055
      %1311 = vmatprep.subr.mxu0 0.0
      %1312 = vmatpush2.msra.mxu0 0.0
      %1313 = vmatprep.subr.mxu0 0.0
      %1314 = vmatpush2.msra.mxu0 0.0
      %1315 = vmatprep.subr.mxu0 0.0
      %1316 = vmatpush2.msra.mxu0 0.0
      %1317 = vmatprep.subr.mxu0 0.0
      %1318 = vmatpush2.msra.mxu0 0.0
      %1319 = vmatprep.subr.mxu0 0.0
      %1320 = vmatpush2.msra.mxu0 0.0
      %1321 = vmatprep.subr.mxu0 0.0
      %1322 = vmatpush2.msra.mxu0 0.0
      %1323 = vmatprep.subr.mxu0 0.0
      %1324 = vmatpush2.msra.mxu0 0.0
      %1325 = vmatprep.subr.mxu0 0.0
      %1326 = vmatpush2.msra.mxu0 0.0
      %1327 = vmatprep.subr.mxu0 0.0
      %1328 = vmatpush2.msra.mxu0 0.0
      %1329 = vmatprep.subr.mxu0 0.0
      %1330 = vmatpush2.msra.mxu0 0.0
      %1331 = vmatprep.subr.mxu0 0.0
      %1332 = vmatpush2.msra.mxu0 0.0
      %1333 = vmatprep.subr.mxu0 0.0
      %1334 = vmatpush2.msra.mxu0 0.0
      %1335 = vmatprep.subr.mxu0 0.0
      %1336 = vmatpush2.msra.mxu0 0.0
      %1337 = vmatprep.subr.mxu0 0.0
      %1338 = vmatpush2.msra.mxu0 0.0
      %1339 = vmatprep.subr.mxu0 0.0
      %1340 = vmatpush2.msra.mxu0 0.0
      %1341 = vmatprep.subr.mxu0 0.0
      %1342 = vmatpush2.msra.mxu0 0.0
      %1343 = vmatprep.mubr.f32.mxu0 0.0
      %1344 = vmatmul.mubr.f32.gmra.mxu0 %v1274
      %v1345 = vpop.f32.mrf.mxu0
      %v1346 = vadd.f32 %v1229, %v1345
      %v1347 = vpop.f32.mrf.mxu0
      %1348 = vmatprep.mubr.f32.mxu0 0.0
      %1349 = vmatmul.mubr.f32.gmra.mxu0 %v1277
      %v1350 = vpop.f32.mrf.mxu0
      %v1351 = vadd.f32 %v1234, %v1350
      %v1352 = vpop.f32.mrf.mxu0
      %1353 = vdwg.mxu0
      %s1354 = scalar_lea.vmem %s225, 16
      %1355 = vst.msk [vmem:[%s1354] sm:$0xff] %vm330, %v1346
      %1356 = vst.msk [vmem:[%s1354 + $0x8] sm:$0xff] %vm330, %v1351
      %p1357 = scmp.lt.s32.totalorder %s16, 1
      %s1358 = scalar_select %p1357, %s16, 1
      %s1359 = smul.addr %s1358, 8
      %s1360 = scalar_lea.vmem %s3, %s1359
      %p1361 = scmp.lt.s32.totalorder %s16, 1
      %s1362 = scalar_select %p1361, %s16, 1
      %s1363 = smul.addr %s1362, 4
      %s1364 = smul.addr %s1363, 8
      %s1365 = scalar_lea.vmem %s4, %s1364
      // Predicated region
      $region33: #{_lambda_.4} parent=31 // pred_check
        %p1366 = pneg %p107
      $region34: #{_lambda_.4} parent=31 // pred_check_branch
        %1368 = sbr.rel (%p1366) target = $region36
      $region35: #{_lambda_.4} parent=31 // pred_region
        _
      $region36: #{_lambda_.4} parent=31 // pred_fallthru
        _
      // Predicated region
      $region37: #{_lambda_.4} parent=31 // pred_check
        %p1369 = pneg %p133
      $region38: #{_lambda_.4} parent=31 // pred_check_branch
        %1371 = sbr.rel (%p1369) target = $region40
      $region39: #{_lambda_.4} parent=31 // pred_region
        _
      $region40: #{_lambda_.4} parent=31 // pred_fallthru
        _
    $region32: #{_lambda_.4} parent=5 // pred_fallthru
      _
    %p1372 = scmp.le.s32.totalorder 2, %s11
    // Predicated region
    $region41: #{_lambda_.4} parent=5 // pred_check
      %p1373 = pneg %p1372
    $region42: #{_lambda_.4} parent=5 // pred_check_branch
      %1375 = sbr.rel (%p1373) target = $region44
    $region43: #{_lambda_.4} parent=5 // pred_region
      %s1376 = ssub.s32 %s11, 2
      // Predicated region
      $region45: #{_lambda_.4} parent=43 // pred_check
        %p1377 = pneg %p113
      $region46: #{_lambda_.4} parent=43 // pred_check_branch
        %1379 = sbr.rel (%p1377) target = $region48
      $region47: #{_lambda_.4} parent=43 // pred_region
        %p1380 = scmp.lt.s32.totalorder %s17, 1
        %s1381 = scalar_select %p1380, %s17, 1
        %s1382 = smul.addr %s1381, 8
        %s1383 = scalar_lea.vmem %s3, %s1382
      $region48: #{_lambda_.4} parent=43 // pred_fallthru
        _
      // Predicated region
      $region49: #{_lambda_.4} parent=43 // pred_check
        %p1384 = pneg %p139
      $region50: #{_lambda_.4} parent=43 // pred_check_branch
        %1386 = sbr.rel (%p1384) target = $region52
      $region51: #{_lambda_.4} parent=43 // pred_region
        %p1387 = scmp.lt.s32.totalorder %s17, 1
        %s1388 = scalar_select %p1387, %s17, 1
        %s1389 = smul.addr %s1388, 4
        %s1390 = smul.addr %s1389, 8
        %s1391 = scalar_lea.vmem %s4, %s1390
      $region52: #{_lambda_.4} parent=43 // pred_fallthru
        _
    $region44: #{_lambda_.4} parent=5 // pred_fallthru
      _
  $region6: #{_lambda_.4} parent=0 // loop_footer
    %s15 = sadd.s32 1, %s11
  $region7: #{_lambda_.4} parent=0 // loop_footer_branch
    %10 = sbr.rel target = $region3
  $region8: #{_lambda_.4} parent=0 // loop_exit
    _

// kernel: _lambda_.3
$region0: #{_lambda_.3}
  #allocation0 [shape = 'u32[]', space=smem, size = 0x4, offset = 0x4, fixed_abs, tag = 'smem constant byte address 0x4 - core index']
  #allocation1 [shape = 'u32[144,128]{1,0:T(1,128)}', space=vmem, size = 0x12000, scoped, tag = 'internal scratch']
  %s0 = inlined_call_operand.vmem [shape: f32[16,32], index: 0, kind: input, shape index: {}]
  %s1 = inlined_call_operand.vmem [shape: f32[16,16], index: 1, kind: input, shape index: {}]
  %s2 = inlined_call_operand.vmem [shape: f32[4,32], index: 2, kind: input, shape index: {}]
  %s3 = inlined_call_operand.vmem [shape: f32[6,32], index: 3, kind: input, shape index: {}]
  %s4 = inlined_call_operand.vmem [shape: f32[32,160], index: 4, kind: input, shape index: {}]
  %s5 = inlined_call_operand.vmem [shape: f32[5,32,32], index: 5, kind: input, shape index: {}]
  %s6 = inlined_call_operand.vmem [shape: f32[32,64], index: 6, kind: input, shape index: {}]
  %s7 = inlined_call_operand.vmem [shape: f32[64,32], index: 7, kind: input, shape index: {}]
  %s8 = inlined_call_operand.vmem [shape: f32[1,32], index: 8, kind: input, shape index: {}]
  %s9 = inlined_call_operand.vmem [shape: f32[4,32,32], index: 9, kind: input, shape index: {}]
  %s10 = inlined_call_operand.vmem [shape: f32[16,32], index: 10, kind: output, shape index: {0}]
  %s11 = inlined_call_operand.vmem [shape: f32[16,128], index: 11, kind: output, shape index: {1}]
  %s12 = inlined_call_operand.vmem [shape: f32[16,32], index: 12, kind: output, shape index: {2}]
  %13 = xla_tuple %s10, %s11, %s12
  %s14 = sld [smem:[#allocation0]]
  $region66: #{_lambda_.3} parent=0
    _
  %s16 = ssub.s32 1, %s14
  %s17 = scalar_select 0, %s16, %s14
  // Predicated region
  $region2: #{_lambda_.3} parent=0 // pred_check
    _
  $region3: #{_lambda_.3} parent=0 // pred_check_branch
    %19 = sbr.rel (0) target = $region5
  $region4: #{_lambda_.3} parent=0 // pred_region
    _
  $region5: #{_lambda_.3} parent=0 // pred_fallthru
    _
  // Predicated region
  $region6: #{_lambda_.3} parent=0 // pred_check
    _
  $region7: #{_lambda_.3} parent=0 // pred_check_branch
    %21 = sbr.rel (0) target = $region9
  $region8: #{_lambda_.3} parent=0 // pred_region
    _
  $region9: #{_lambda_.3} parent=0 // pred_fallthru
    _
  // Predicated region
  $region10: #{_lambda_.3} parent=0 // pred_check
    _
  $region11: #{_lambda_.3} parent=0 // pred_check_branch
    %23 = sbr.rel (0) target = $region13
  $region12: #{_lambda_.3} parent=0 // pred_region
    _
  $region13: #{_lambda_.3} parent=0 // pred_fallthru
    _
  // Predicated region
  $region14: #{_lambda_.3} parent=0 // pred_check
    _
  $region15: #{_lambda_.3} parent=0 // pred_check_branch
    %25 = sbr.rel (0) target = $region17
  $region16: #{_lambda_.3} parent=0 // pred_region
    _
  $region17: #{_lambda_.3} parent=0 // pred_fallthru
    _
  // Predicated region
  $region18: #{_lambda_.3} parent=0 // pred_check
    _
  $region19: #{_lambda_.3} parent=0 // pred_check_branch
    %27 = sbr.rel (0) target = $region21
  $region20: #{_lambda_.3} parent=0 // pred_region
    _
  $region21: #{_lambda_.3} parent=0 // pred_fallthru
    _
  // Predicated region
  $region22: #{_lambda_.3} parent=0 // pred_check
    _
  $region23: #{_lambda_.3} parent=0 // pred_check_branch
    %29 = sbr.rel (0) target = $region25
  $region24: #{_lambda_.3} parent=0 // pred_region
    _
  $region25: #{_lambda_.3} parent=0 // pred_fallthru
    _
  // Predicated region
  $region26: #{_lambda_.3} parent=0 // pred_check
    _
  $region27: #{_lambda_.3} parent=0 // pred_check_branch
    %31 = sbr.rel (0) target = $region29
  $region28: #{_lambda_.3} parent=0 // pred_region
    _
  $region29: #{_lambda_.3} parent=0 // pred_fallthru
    _
  // Predicated region
  $region30: #{_lambda_.3} parent=0 // pred_check
    _
  $region31: #{_lambda_.3} parent=0 // pred_check_branch
    %33 = sbr.rel (0) target = $region33
  $region32: #{_lambda_.3} parent=0 // pred_region
    _
  $region33: #{_lambda_.3} parent=0 // pred_fallthru
    _
  // Predicated region
  $region34: #{_lambda_.3} parent=0 // pred_check
    _
  $region35: #{_lambda_.3} parent=0 // pred_check_branch
    %35 = sbr.rel (0) target = $region37
  $region36: #{_lambda_.3} parent=0 // pred_region
    _
  $region37: #{_lambda_.3} parent=0 // pred_fallthru
    _
  // Predicated region
  $region38: #{_lambda_.3} parent=0 // pred_check
    _
  $region39: #{_lambda_.3} parent=0 // pred_check_branch
    %37 = sbr.rel (0) target = $region41
  $region40: #{_lambda_.3} parent=0 // pred_region
    _
  $region41: #{_lambda_.3} parent=0 // pred_fallthru
    _
  %v38 = vld [vmem:[%s0] sm:$0xff]
  %v39 = vld [vmem:[%s0 + $0x8] sm:$0xff]
  %v40 = vld [vmem:[%s2] sm:$0x1]
  %v41 = vld [vmem:[%s2 + $0x1] sm:$0x1]
  %vm42 = vcmask 261120
  %v43 = vsel %vm42, %v38, 0.0
  %44 = vadd.xlane.f32.xlu0 %v43
  %v45 = vpop.xlane.xlu0 %44
  %v46 = vsel %vm42, %v39, 0.0
  %47 = vadd.xlane.f32.xlu0 %v46
  %v48 = vpop.xlane.xlu0 %47
  %v49 = vrcp.pop 32.0
  %v50 = vmul.f32 %v45, %v49
  %v51 = vmul.f32 %v48, %v49
  %v52 = vsub.f32 %v38, %v50
  %v53 = vsub.f32 %v39, %v51
  %v54 = vmul.f32 %v52, %v52
  %v55 = vmul.f32 %v53, %v53
  %v56 = vsel %vm42, %v54, 0.0
  %57 = vadd.xlane.f32.xlu0 %v56
  %v58 = vpop.xlane.xlu0 %57
  %v59 = vsel %vm42, %v55, 0.0
  %60 = vadd.xlane.f32.xlu0 %v59
  %v61 = vpop.xlane.xlu0 %60
  %v62 = vmul.f32 %v58, %v49
  %v63 = vmul.f32 %v61, %v49
  %v64 = vadd.f32 %v62, 1e-05
  %v65 = vadd.f32 %v63, 1e-05
  %v66 = vrsqrt.pop %v64
  %v67 = vrsqrt.pop %v65
  %v68 = vmul.f32 %v52, %v66
  %v69 = vmul.f32 %v53, %v67
  %v70 = vlaneseq
  %v71 = vshrl.u32 %v70, 7
  %v72 = vsub.s32 0, %v71
  %v73 = vrot.slane %v40, %v72
  %v74 = vmul.f32 %v68, %v73
  %v75 = vmul.f32 %v69, %v73
  %v76 = vlaneseq
  %v77 = vshrl.u32 %v76, 7
  %v78 = vsub.s32 0, %v77
  %v79 = vrot.slane %v41, %v78
  %v80 = vadd.f32 %v74, %v79
  %v81 = vadd.f32 %v75, %v79
  %82 = vst.msk [vmem:[%s10] sm:$0xff] %vm42, %v80
  %83 = vst.msk [vmem:[%s10 + $0x8] sm:$0xff] %vm42, %v81
  %v84 = vld [vmem:[%s2 + $0x2] sm:$0x1]
  %v85 = vld [vmem:[%s2 + $0x3] sm:$0x1]
  %v86 = vsel %vm42, %v80, 0.0
  %87 = vadd.xlane.f32.xlu0 %v86
  %v88 = vpop.xlane.xlu0 %87
  %v89 = vsel %vm42, %v81, 0.0
  %90 = vadd.xlane.f32.xlu0 %v89
  %v91 = vpop.xlane.xlu0 %90
  %v92 = vmul.f32 %v88, %v49
  %v93 = vmul.f32 %v91, %v49
  %v94 = vsub.f32 %v80, %v92
  %v95 = vsub.f32 %v81, %v93
  %v96 = vmul.f32 %v94, %v94
  %v97 = vmul.f32 %v95, %v95
  %v98 = vsel %vm42, %v96, 0.0
  %99 = vadd.xlane.f32.xlu0 %v98
  %v100 = vpop.xlane.xlu0 %99
  %v101 = vsel %vm42, %v97, 0.0
  %102 = vadd.xlane.f32.xlu0 %v101
  %v103 = vpop.xlane.xlu0 %102
  %v104 = vmul.f32 %v100, %v49
  %v105 = vmul.f32 %v103, %v49
  %v106 = vadd.f32 %v104, 1e-05
  %v107 = vadd.f32 %v105, 1e-05
  %v108 = vrsqrt.pop %v106
  %v109 = vrsqrt.pop %v107
  %v110 = vmul.f32 %v94, %v108
  %v111 = vmul.f32 %v95, %v109
  %v112 = vlaneseq
  %v113 = vshrl.u32 %v112, 7
  %v114 = vsub.s32 0, %v113
  %v115 = vrot.slane %v84, %v114
  %v116 = vmul.f32 %v110, %v115
  %v117 = vmul.f32 %v111, %v115
  %v118 = vlaneseq
  %v119 = vshrl.u32 %v118, 7
  %v120 = vsub.s32 0, %v119
  %v121 = vrot.slane %v85, %v120
  %v122 = vadd.f32 %v116, %v121
  %v123 = vadd.f32 %v117, %v121
  %v124 = vld [vmem:[%s1] sm:$0xff]
  %v125 = vld [vmem:[%s1 + $0x8] sm:$0xff]
  %vm126 = vcmask 130048
  %v128 = vsel %vm126, %v124, 0
  %v131 = vsel %vm126, %v125, 0
  %133 = vmatprep.subr.mxu0 0.0
  %134 = vmatpush1.msra.mxu0 0.0
  %135 = vmatprep.subr.mxu0 0.0
  %136 = vmatpush1.msra.mxu0 0.0
  %137 = vmatprep.subr.mxu0 0.0
  %138 = vmatpush1.msra.mxu0 0.0
  %139 = vmatprep.subr.mxu0 0.0
  %140 = vmatpush1.msra.mxu0 0.0
  %141 = vmatprep.subr.mxu0 0.0
  %142 = vmatpush1.msra.mxu0 0.0
  %143 = vmatprep.subr.mxu0 0.0
  %144 = vmatpush1.msra.mxu0 0.0
  %145 = vmatprep.subr.mxu0 0.0
  %146 = vmatpush1.msra.mxu0 0.0
  %147 = vmatprep.subr.mxu0 0.0
  %148 = vmatpush1.msra.mxu0 0.0
  %149 = vmatprep.subr.mxu0 0.0
  %150 = vmatpush1.msra.mxu0 0.0
  %151 = vmatprep.subr.mxu0 0.0
  %152 = vmatpush1.msra.mxu0 0.0
  %153 = vmatprep.subr.mxu0 0.0
  %154 = vmatpush1.msra.mxu0 0.0
  %155 = vmatprep.subr.mxu0 0.0
  %156 = vmatpush1.msra.mxu0 0.0
  %157 = vmatprep.subr.mxu0 0.0
  %158 = vmatpush1.msra.mxu0 0.0
  %159 = vmatprep.subr.mxu0 0.0
  %160 = vmatpush1.msra.mxu0 0.0
  %161 = vmatprep.subr.mxu0 0.0
  %162 = vmatpush1.msra.mxu0 %v123
  %163 = vmatprep.subr.mxu0 0.0
  %164 = vmatpush1.msra.mxu0 %v122
  %165 = vmatprep.subr.mxu0 0.0
  %166 = vmatpush2.msra.mxu0 0.0
  %167 = vmatprep.subr.mxu0 0.0
  %168 = vmatpush2.msra.mxu0 0.0
  %169 = vmatprep.subr.mxu0 0.0
  %170 = vmatpush2.msra.mxu0 0.0
  %171 = vmatprep.subr.mxu0 0.0
  %172 = vmatpush2.msra.mxu0 0.0
  %173 = vmatprep.subr.mxu0 0.0
  %174 = vmatpush2.msra.mxu0 0.0
  %175 = vmatprep.subr.mxu0 0.0
  %176 = vmatpush2.msra.mxu0 0.0
  %177 = vmatprep.subr.mxu0 0.0
  %178 = vmatpush2.msra.mxu0 0.0
  %179 = vmatprep.subr.mxu0 0.0
  %180 = vmatpush2.msra.mxu0 0.0
  %181 = vmatprep.subr.mxu0 0.0
  %182 = vmatpush2.msra.mxu0 0.0
  %183 = vmatprep.subr.mxu0 0.0
  %184 = vmatpush2.msra.mxu0 0.0
  %185 = vmatprep.subr.mxu0 0.0
  %186 = vmatpush2.msra.mxu0 0.0
  %187 = vmatprep.subr.mxu0 0.0
  %188 = vmatpush2.msra.mxu0 0.0
  %189 = vmatprep.subr.mxu0 0.0
  %190 = vmatpush2.msra.mxu0 0.0
  %191 = vmatprep.subr.mxu0 0.0
  %192 = vmatpush2.msra.mxu0 0.0
  %193 = vmatprep.subr.mxu0 0.0
  %194 = vmatpush2.msra.mxu0 0.0
  %195 = vmatprep.subr.mxu0 0.0
  %196 = vmatpush2.msra.mxu0 0.0
  %197 = vmatprep.mubr.f32.mxu0 0.0
  %198 = vmatmul.mubr.f32.gmra.mxu0 %v128
  %v199 = vpop.f32.mrf.mxu0
  %v200 = vadd.f32 0.0, %v199
  %v201 = vpop.f32.mrf.mxu0
  %202 = vmatprep.mubr.f32.mxu0 0.0
  %203 = vmatmul.mubr.f32.gmra.mxu0 %v131
  %v204 = vpop.f32.mrf.mxu0
  %v205 = vadd.f32 0.0, %v204
  %v206 = vpop.f32.mrf.mxu0
  %207 = vdwg.mxu0
  %v208 = vsub.f32 %v200, %v122
  %v209 = vsub.f32 %v205, %v123
  %v210 = vld [vmem:[%s3] sm:$0x3f]
  %v211 = vlaneseq
  %v212 = vshrl.u32 %v211, 7
  %v213 = vsub.s32 0, %v212
  %v214 = vrot.slane %v210, %v213
  %v215 = vmul.f32 %v208, %v214
  %v216 = vmul.f32 %v209, %v214
  %v217 = vadd.f32 %v122, %v215
  %v218 = vadd.f32 %v123, %v216
  %v219 = vld [vmem:[%s4] sm:$0xff]
  %v220 = vld [vmem:[%s4 + $0x8] sm:$0xff]
  %v221 = vld [vmem:[%s4 + $0x10] sm:$0xff]
  %v222 = vld [vmem:[%s4 + $0x18] sm:$0xff]
  %v223 = vld [vmem:[%s4 + $0x20] sm:$0xff]
  %v224 = vld [vmem:[%s4 + $0x28] sm:$0xff]
  %v225 = vld [vmem:[%s4 + $0x30] sm:$0xff]
  %v226 = vld [vmem:[%s4 + $0x38] sm:$0xff]
  %v228 = vsel %vm42, %v217, 0
  %v231 = vsel %vm42, %v218, 0
  %233 = vmatprep.subr.mxu0 0.0
  %234 = vmatpush1.msra.mxu0 0.0
  %235 = vmatprep.subr.mxu0 0.0
  %236 = vmatpush1.msra.mxu0 0.0
  %237 = vmatprep.subr.mxu0 0.0
  %238 = vmatpush1.msra.mxu0 0.0
  %239 = vmatprep.subr.mxu0 0.0
  %240 = vmatpush1.msra.mxu0 0.0
  %241 = vmatprep.subr.mxu0 0.0
  %242 = vmatpush1.msra.mxu0 0.0
  %243 = vmatprep.subr.mxu0 0.0
  %244 = vmatpush1.msra.mxu0 0.0
  %245 = vmatprep.subr.mxu0 0.0
  %246 = vmatpush1.msra.mxu0 0.0
  %247 = vmatprep.subr.mxu0 0.0
  %248 = vmatpush1.msra.mxu0 0.0
  %249 = vmatprep.subr.mxu0 0.0
  %250 = vmatpush1.msra.mxu0 0.0
  %251 = vmatprep.subr.mxu0 0.0
  %252 = vmatpush1.msra.mxu0 0.0
  %253 = vmatprep.subr.mxu0 0.0
  %254 = vmatpush1.msra.mxu0 0.0
  %255 = vmatprep.subr.mxu0 0.0
  %256 = vmatpush1.msra.mxu0 0.0
  %257 = vmatprep.subr.mxu0 %v226
  %258 = vmatpush1.msra.mxu0 %v225
  %259 = vmatprep.subr.mxu0 %v224
  %260 = vmatpush1.msra.mxu0 %v223
  %261 = vmatprep.subr.mxu0 %v222
  %262 = vmatpush1.msra.mxu0 %v221
  %263 = vmatprep.subr.mxu0 %v220
  %264 = vmatpush1.msra.mxu0 %v219
  %265 = vmatprep.subr.mxu0 0.0
  %266 = vmatpush2.msra.mxu0 0.0
  %267 = vmatprep.subr.mxu0 0.0
  %268 = vmatpush2.msra.mxu0 0.0
  %269 = vmatprep.subr.mxu0 0.0
  %270 = vmatpush2.msra.mxu0 0.0
  %271 = vmatprep.subr.mxu0 0.0
  %272 = vmatpush2.msra.mxu0 0.0
  %273 = vmatprep.subr.mxu0 0.0
  %274 = vmatpush2.msra.mxu0 0.0
  %275 = vmatprep.subr.mxu0 0.0
  %276 = vmatpush2.msra.mxu0 0.0
  %277 = vmatprep.subr.mxu0 0.0
  %278 = vmatpush2.msra.mxu0 0.0
  %279 = vmatprep.subr.mxu0 0.0
  %280 = vmatpush2.msra.mxu0 0.0
  %281 = vmatprep.subr.mxu0 0.0
  %282 = vmatpush2.msra.mxu0 0.0
  %283 = vmatprep.subr.mxu0 0.0
  %284 = vmatpush2.msra.mxu0 0.0
  %285 = vmatprep.subr.mxu0 0.0
  %286 = vmatpush2.msra.mxu0 0.0
  %287 = vmatprep.subr.mxu0 0.0
  %288 = vmatpush2.msra.mxu0 0.0
  %289 = vmatprep.subr.mxu0 0.0
  %290 = vmatpush2.msra.mxu0 0.0
  %291 = vmatprep.subr.mxu0 0.0
  %292 = vmatpush2.msra.mxu0 0.0
  %293 = vmatprep.subr.mxu0 0.0
  %294 = vmatpush2.msra.mxu0 0.0
  %295 = vmatprep.subr.mxu0 0.0
  %296 = vmatpush2.msra.mxu0 0.0
  %297 = vmatprep.mubr.f32.mxu0 0.0
  %298 = vmatmul.mubr.f32.gmra.mxu0 %v228
  %v299 = vpop.f32.mrf.mxu0
  %v300 = vadd.f32 0.0, %v299
  %v301 = vpop.f32.mrf.mxu0
  %v302 = vadd.f32 0.0, %v301
  %303 = vmatprep.mubr.f32.mxu0 0.0
  %304 = vmatmul.mubr.f32.gmra.mxu0 %v231
  %v305 = vpop.f32.mrf.mxu0
  %v306 = vadd.f32 0.0, %v305
  %v307 = vpop.f32.mrf.mxu0
  %v308 = vadd.f32 0.0, %v307
  %309 = vdwg.mxu0
  %v310 = vtanh.pop %v300
  %v311 = vtanh.pop %v302
  %v312 = vtanh.pop %v306
  %v313 = vtanh.pop %v308
  %v314 = vld [vmem:[%s5] sm:$0xff]
  %v315 = vld [vmem:[%s5 + $0x8] sm:$0xff]
  %v316 = vld [vmem:[%s5 + $0x10] sm:$0xff]
  %v317 = vld [vmem:[%s5 + $0x18] sm:$0xff]
  %v319 = vsel %vm42, %v310, 0
  %v322 = vsel %vm42, %v312, 0
  %324 = vmatprep.subr.mxu0 0.0
  %325 = vmatpush1.msra.mxu0 0.0
  %326 = vmatprep.subr.mxu0 0.0
  %327 = vmatpush1.msra.mxu0 0.0
  %328 = vmatprep.subr.mxu0 0.0
  %329 = vmatpush1.msra.mxu0 0.0
  %330 = vmatprep.subr.mxu0 0.0
  %331 = vmatpush1.msra.mxu0 0.0
  %332 = vmatprep.subr.mxu0 0.0
  %333 = vmatpush1.msra.mxu0 0.0
  %334 = vmatprep.subr.mxu0 0.0
  %335 = vmatpush1.msra.mxu0 0.0
  %336 = vmatprep.subr.mxu0 0.0
  %337 = vmatpush1.msra.mxu0 0.0
  %338 = vmatprep.subr.mxu0 0.0
  %339 = vmatpush1.msra.mxu0 0.0
  %340 = vmatprep.subr.mxu0 0.0
  %341 = vmatpush1.msra.mxu0 0.0
  %342 = vmatprep.subr.mxu0 0.0
  %343 = vmatpush1.msra.mxu0 0.0
  %344 = vmatprep.subr.mxu0 0.0
  %345 = vmatpush1.msra.mxu0 0.0
  %346 = vmatprep.subr.mxu0 0.0
  %347 = vmatpush1.msra.mxu0 0.0
  %348 = vmatprep.subr.mxu0 0.0
  %349 = vmatpush1.msra.mxu0 %v317
  %350 = vmatprep.subr.mxu0 0.0
  %351 = vmatpush1.msra.mxu0 %v316
  %352 = vmatprep.subr.mxu0 0.0
  %353 = vmatpush1.msra.mxu0 %v315
  %354 = vmatprep.subr.mxu0 0.0
  %355 = vmatpush1.msra.mxu0 %v314
  %356 = vmatprep.subr.mxu0 0.0
  %357 = vmatpush2.msra.mxu0 0.0
  %358 = vmatprep.subr.mxu0 0.0
  %359 = vmatpush2.msra.mxu0 0.0
  %360 = vmatprep.subr.mxu0 0.0
  %361 = vmatpush2.msra.mxu0 0.0
  %362 = vmatprep.subr.mxu0 0.0
  %363 = vmatpush2.msra.mxu0 0.0
  %364 = vmatprep.subr.mxu0 0.0
  %365 = vmatpush2.msra.mxu0 0.0
  %366 = vmatprep.subr.mxu0 0.0
  %367 = vmatpush2.msra.mxu0 0.0
  %368 = vmatprep.subr.mxu0 0.0
  %369 = vmatpush2.msra.mxu0 0.0
  %370 = vmatprep.subr.mxu0 0.0
  %371 = vmatpush2.msra.mxu0 0.0
  %372 = vmatprep.subr.mxu0 0.0
  %373 = vmatpush2.msra.mxu0 0.0
  %374 = vmatprep.subr.mxu0 0.0
  %375 = vmatpush2.msra.mxu0 0.0
  %376 = vmatprep.subr.mxu0 0.0
  %377 = vmatpush2.msra.mxu0 0.0
  %378 = vmatprep.subr.mxu0 0.0
  %379 = vmatpush2.msra.mxu0 0.0
  %380 = vmatprep.subr.mxu0 0.0
  %381 = vmatpush2.msra.mxu0 0.0
  %382 = vmatprep.subr.mxu0 0.0
  %383 = vmatpush2.msra.mxu0 0.0
  %384 = vmatprep.subr.mxu0 0.0
  %385 = vmatpush2.msra.mxu0 0.0
  %386 = vmatprep.subr.mxu0 0.0
  %387 = vmatpush2.msra.mxu0 0.0
  %388 = vmatprep.mubr.f32.mxu0 0.0
  %389 = vmatmul.mubr.f32.gmra.mxu0 %v319
  %v390 = vpop.f32.mrf.mxu0
  %v391 = vadd.f32 0.0, %v390
  %v392 = vpop.f32.mrf.mxu0
  %393 = vmatprep.mubr.f32.mxu0 0.0
  %394 = vmatmul.mubr.f32.gmra.mxu0 %v322
  %v395 = vpop.f32.mrf.mxu0
  %v396 = vadd.f32 0.0, %v395
  %v397 = vpop.f32.mrf.mxu0
  %398 = vdwg.mxu0
  %v399 = vlaneseq
  %v400 = vshrl.u32 %v399, 7
  %v401 = vsub.s32 1, %v400
  %v402 = vrot.slane %v210, %v401
  %v403 = vadd.f32 %v402, %v391
  %v404 = vadd.f32 %v402, %v396
  %v405 = vmul.f32 %v208, %v403
  %v406 = vmul.f32 %v209, %v404
  %v407 = vadd.f32 %v122, %v405
  %v408 = vadd.f32 %v123, %v406
  %s409 = scalar_lea.vmem %s5, 32
  %v410 = vld [vmem:[%s409] sm:$0xff]
  %v411 = vld [vmem:[%s409 + $0x8] sm:$0xff]
  %v412 = vld [vmem:[%s409 + $0x10] sm:$0xff]
  %v413 = vld [vmem:[%s409 + $0x18] sm:$0xff]
  %414 = vrot.lane.b32.xlu0 %v310, 96
  %v415 = vpop.permute.xlu0 %414
  %416 = vrot.lane.b32.xlu0 %v312, 96
  %v417 = vpop.permute.xlu0 %416
  %v418 = vsel %vm42, %v415, 0
  %v420 = vsel %vm42, %v417, 0
  %422 = vmatprep.subr.mxu0 0.0
  %423 = vmatpush1.msra.mxu0 0.0
  %424 = vmatprep.subr.mxu0 0.0
  %425 = vmatpush1.msra.mxu0 0.0
  %426 = vmatprep.subr.mxu0 0.0
  %427 = vmatpush1.msra.mxu0 0.0
  %428 = vmatprep.subr.mxu0 0.0
  %429 = vmatpush1.msra.mxu0 0.0
  %430 = vmatprep.subr.mxu0 0.0
  %431 = vmatpush1.msra.mxu0 0.0
  %432 = vmatprep.subr.mxu0 0.0
  %433 = vmatpush1.msra.mxu0 0.0
  %434 = vmatprep.subr.mxu0 0.0
  %435 = vmatpush1.msra.mxu0 0.0
  %436 = vmatprep.subr.mxu0 0.0
  %437 = vmatpush1.msra.mxu0 0.0
  %438 = vmatprep.subr.mxu0 0.0
  %439 = vmatpush1.msra.mxu0 0.0
  %440 = vmatprep.subr.mxu0 0.0
  %441 = vmatpush1.msra.mxu0 0.0
  %442 = vmatprep.subr.mxu0 0.0
  %443 = vmatpush1.msra.mxu0 0.0
  %444 = vmatprep.subr.mxu0 0.0
  %445 = vmatpush1.msra.mxu0 0.0
  %446 = vmatprep.subr.mxu0 0.0
  %447 = vmatpush1.msra.mxu0 %v413
  %448 = vmatprep.subr.mxu0 0.0
  %449 = vmatpush1.msra.mxu0 %v412
  %450 = vmatprep.subr.mxu0 0.0
  %451 = vmatpush1.msra.mxu0 %v411
  %452 = vmatprep.subr.mxu0 0.0
  %453 = vmatpush1.msra.mxu0 %v410
  %454 = vmatprep.subr.mxu0 0.0
  %455 = vmatpush2.msra.mxu0 0.0
  %456 = vmatprep.subr.mxu0 0.0
  %457 = vmatpush2.msra.mxu0 0.0
  %458 = vmatprep.subr.mxu0 0.0
  %459 = vmatpush2.msra.mxu0 0.0
  %460 = vmatprep.subr.mxu0 0.0
  %461 = vmatpush2.msra.mxu0 0.0
  %462 = vmatprep.subr.mxu0 0.0
  %463 = vmatpush2.msra.mxu0 0.0
  %464 = vmatprep.subr.mxu0 0.0
  %465 = vmatpush2.msra.mxu0 0.0
  %466 = vmatprep.subr.mxu0 0.0
  %467 = vmatpush2.msra.mxu0 0.0
  %468 = vmatprep.subr.mxu0 0.0
  %469 = vmatpush2.msra.mxu0 0.0
  %470 = vmatprep.subr.mxu0 0.0
  %471 = vmatpush2.msra.mxu0 0.0
  %472 = vmatprep.subr.mxu0 0.0
  %473 = vmatpush2.msra.mxu0 0.0
  %474 = vmatprep.subr.mxu0 0.0
  %475 = vmatpush2.msra.mxu0 0.0
  %476 = vmatprep.subr.mxu0 0.0
  %477 = vmatpush2.msra.mxu0 0.0
  %478 = vmatprep.subr.mxu0 0.0
  %479 = vmatpush2.msra.mxu0 0.0
  %480 = vmatprep.subr.mxu0 0.0
  %481 = vmatpush2.msra.mxu0 0.0
  %482 = vmatprep.subr.mxu0 0.0
  %483 = vmatpush2.msra.mxu0 0.0
  %484 = vmatprep.subr.mxu0 0.0
  %485 = vmatpush2.msra.mxu0 0.0
  %486 = vmatprep.mubr.f32.mxu0 0.0
  %487 = vmatmul.mubr.f32.gmra.mxu0 %v418
  %v488 = vpop.f32.mrf.mxu0
  %v489 = vadd.f32 0.0, %v488
  %v490 = vpop.f32.mrf.mxu0
  %491 = vmatprep.mubr.f32.mxu0 0.0
  %492 = vmatmul.mubr.f32.gmra.mxu0 %v420
  %v493 = vpop.f32.mrf.mxu0
  %v494 = vadd.f32 0.0, %v493
  %v495 = vpop.f32.mrf.mxu0
  %496 = vdwg.mxu0
  %v497 = vlaneseq
  %v498 = vshrl.u32 %v497, 7
  %v499 = vsub.s32 2, %v498
  %v500 = vrot.slane %v210, %v499
  %v501 = vadd.f32 %v500, %v489
  %v502 = vadd.f32 %v500, %v494
  %v503 = vmul.f32 %v208, %v501
  %v504 = vmul.f32 %v209, %v502
  %v505 = vadd.f32 %v122, %v503
  %v506 = vadd.f32 %v123, %v504
  %s507 = scalar_lea.vmem %s5, 64
  %v508 = vld [vmem:[%s507] sm:$0xff]
  %v509 = vld [vmem:[%s507 + $0x8] sm:$0xff]
  %v510 = vld [vmem:[%s507 + $0x10] sm:$0xff]
  %v511 = vld [vmem:[%s507 + $0x18] sm:$0xff]
  %512 = vrot.lane.b32.xlu0 %v310, 64
  %v513 = vpop.permute.xlu0 %512
  %514 = vrot.lane.b32.xlu0 %v312, 64
  %v515 = vpop.permute.xlu0 %514
  %v516 = vsel %vm42, %v513, 0
  %v518 = vsel %vm42, %v515, 0
  %520 = vmatprep.subr.mxu0 0.0
  %521 = vmatpush1.msra.mxu0 0.0
  %522 = vmatprep.subr.mxu0 0.0
  %523 = vmatpush1.msra.mxu0 0.0
  %524 = vmatprep.subr.mxu0 0.0
  %525 = vmatpush1.msra.mxu0 0.0
  %526 = vmatprep.subr.mxu0 0.0
  %527 = vmatpush1.msra.mxu0 0.0
  %528 = vmatprep.subr.mxu0 0.0
  %529 = vmatpush1.msra.mxu0 0.0
  %530 = vmatprep.subr.mxu0 0.0
  %531 = vmatpush1.msra.mxu0 0.0
  %532 = vmatprep.subr.mxu0 0.0
  %533 = vmatpush1.msra.mxu0 0.0
  %534 = vmatprep.subr.mxu0 0.0
  %535 = vmatpush1.msra.mxu0 0.0
  %536 = vmatprep.subr.mxu0 0.0
  %537 = vmatpush1.msra.mxu0 0.0
  %538 = vmatprep.subr.mxu0 0.0
  %539 = vmatpush1.msra.mxu0 0.0
  %540 = vmatprep.subr.mxu0 0.0
  %541 = vmatpush1.msra.mxu0 0.0
  %542 = vmatprep.subr.mxu0 0.0
  %543 = vmatpush1.msra.mxu0 0.0
  %544 = vmatprep.subr.mxu0 0.0
  %545 = vmatpush1.msra.mxu0 %v511
  %546 = vmatprep.subr.mxu0 0.0
  %547 = vmatpush1.msra.mxu0 %v510
  %548 = vmatprep.subr.mxu0 0.0
  %549 = vmatpush1.msra.mxu0 %v509
  %550 = vmatprep.subr.mxu0 0.0
  %551 = vmatpush1.msra.mxu0 %v508
  %552 = vmatprep.subr.mxu0 0.0
  %553 = vmatpush2.msra.mxu0 0.0
  %554 = vmatprep.subr.mxu0 0.0
  %555 = vmatpush2.msra.mxu0 0.0
  %556 = vmatprep.subr.mxu0 0.0
  %557 = vmatpush2.msra.mxu0 0.0
  %558 = vmatprep.subr.mxu0 0.0
  %559 = vmatpush2.msra.mxu0 0.0
  %560 = vmatprep.subr.mxu0 0.0
  %561 = vmatpush2.msra.mxu0 0.0
  %562 = vmatprep.subr.mxu0 0.0
  %563 = vmatpush2.msra.mxu0 0.0
  %564 = vmatprep.subr.mxu0 0.0
  %565 = vmatpush2.msra.mxu0 0.0
  %566 = vmatprep.subr.mxu0 0.0
  %567 = vmatpush2.msra.mxu0 0.0
  %568 = vmatprep.subr.mxu0 0.0
  %569 = vmatpush2.msra.mxu0 0.0
  %570 = vmatprep.subr.mxu0 0.0
  %571 = vmatpush2.msra.mxu0 0.0
  %572 = vmatprep.subr.mxu0 0.0
  %573 = vmatpush2.msra.mxu0 0.0
  %574 = vmatprep.subr.mxu0 0.0
  %575 = vmatpush2.msra.mxu0 0.0
  %576 = vmatprep.subr.mxu0 0.0
  %577 = vmatpush2.msra.mxu0 0.0
  %578 = vmatprep.subr.mxu0 0.0
  %579 = vmatpush2.msra.mxu0 0.0
  %580 = vmatprep.subr.mxu0 0.0
  %581 = vmatpush2.msra.mxu0 0.0
  %582 = vmatprep.subr.mxu0 0.0
  %583 = vmatpush2.msra.mxu0 0.0
  %584 = vmatprep.mubr.f32.mxu0 0.0
  %585 = vmatmul.mubr.f32.gmra.mxu0 %v516
  %v586 = vpop.f32.mrf.mxu0
  %v587 = vadd.f32 0.0, %v586
  %v588 = vpop.f32.mrf.mxu0
  %589 = vmatprep.mubr.f32.mxu0 0.0
  %590 = vmatmul.mubr.f32.gmra.mxu0 %v518
  %v591 = vpop.f32.mrf.mxu0
  %v592 = vadd.f32 0.0, %v591
  %v593 = vpop.f32.mrf.mxu0
  %594 = vdwg.mxu0
  %v595 = vlaneseq
  %v596 = vshrl.u32 %v595, 7
  %v597 = vsub.s32 3, %v596
  %v598 = vrot.slane %v210, %v597
  %v599 = vadd.f32 %v598, %v587
  %v600 = vadd.f32 %v598, %v592
  %v601 = vmul.f32 %v208, %v599
  %v602 = vmul.f32 %v209, %v600
  %v603 = vadd.f32 %v122, %v601
  %v604 = vadd.f32 %v123, %v602
  %s605 = scalar_lea.vmem %s5, 96
  %v606 = vld [vmem:[%s605] sm:$0xff]
  %v607 = vld [vmem:[%s605 + $0x8] sm:$0xff]
  %v608 = vld [vmem:[%s605 + $0x10] sm:$0xff]
  %v609 = vld [vmem:[%s605 + $0x18] sm:$0xff]
  %610 = vrot.lane.b32.xlu0 %v310, 32
  %v611 = vpop.permute.xlu0 %610
  %612 = vrot.lane.b32.xlu0 %v312, 32
  %v613 = vpop.permute.xlu0 %612
  %v614 = vsel %vm42, %v611, 0
  %v616 = vsel %vm42, %v613, 0
  %618 = vmatprep.subr.mxu0 0.0
  %619 = vmatpush1.msra.mxu0 0.0
  %620 = vmatprep.subr.mxu0 0.0
  %621 = vmatpush1.msra.mxu0 0.0
  %622 = vmatprep.subr.mxu0 0.0
  %623 = vmatpush1.msra.mxu0 0.0
  %624 = vmatprep.subr.mxu0 0.0
  %625 = vmatpush1.msra.mxu0 0.0
  %626 = vmatprep.subr.mxu0 0.0
  %627 = vmatpush1.msra.mxu0 0.0
  %628 = vmatprep.subr.mxu0 0.0
  %629 = vmatpush1.msra.mxu0 0.0
  %630 = vmatprep.subr.mxu0 0.0
  %631 = vmatpush1.msra.mxu0 0.0
  %632 = vmatprep.subr.mxu0 0.0
  %633 = vmatpush1.msra.mxu0 0.0
  %634 = vmatprep.subr.mxu0 0.0
  %635 = vmatpush1.msra.mxu0 0.0
  %636 = vmatprep.subr.mxu0 0.0
  %637 = vmatpush1.msra.mxu0 0.0
  %638 = vmatprep.subr.mxu0 0.0
  %639 = vmatpush1.msra.mxu0 0.0
  %640 = vmatprep.subr.mxu0 0.0
  %641 = vmatpush1.msra.mxu0 0.0
  %642 = vmatprep.subr.mxu0 0.0
  %643 = vmatpush1.msra.mxu0 %v609
  %644 = vmatprep.subr.mxu0 0.0
  %645 = vmatpush1.msra.mxu0 %v608
  %646 = vmatprep.subr.mxu0 0.0
  %647 = vmatpush1.msra.mxu0 %v607
  %648 = vmatprep.subr.mxu0 0.0
  %649 = vmatpush1.msra.mxu0 %v606
  %650 = vmatprep.subr.mxu0 0.0
  %651 = vmatpush2.msra.mxu0 0.0
  %652 = vmatprep.subr.mxu0 0.0
  %653 = vmatpush2.msra.mxu0 0.0
  %654 = vmatprep.subr.mxu0 0.0
  %655 = vmatpush2.msra.mxu0 0.0
  %656 = vmatprep.subr.mxu0 0.0
  %657 = vmatpush2.msra.mxu0 0.0
  %658 = vmatprep.subr.mxu0 0.0
  %659 = vmatpush2.msra.mxu0 0.0
  %660 = vmatprep.subr.mxu0 0.0
  %661 = vmatpush2.msra.mxu0 0.0
  %662 = vmatprep.subr.mxu0 0.0
  %663 = vmatpush2.msra.mxu0 0.0
  %664 = vmatprep.subr.mxu0 0.0
  %665 = vmatpush2.msra.mxu0 0.0
  %666 = vmatprep.subr.mxu0 0.0
  %667 = vmatpush2.msra.mxu0 0.0
  %668 = vmatprep.subr.mxu0 0.0
  %669 = vmatpush2.msra.mxu0 0.0
  %670 = vmatprep.subr.mxu0 0.0
  %671 = vmatpush2.msra.mxu0 0.0
  %672 = vmatprep.subr.mxu0 0.0
  %673 = vmatpush2.msra.mxu0 0.0
  %674 = vmatprep.subr.mxu0 0.0
  %675 = vmatpush2.msra.mxu0 0.0
  %676 = vmatprep.subr.mxu0 0.0
  %677 = vmatpush2.msra.mxu0 0.0
  %678 = vmatprep.subr.mxu0 0.0
  %679 = vmatpush2.msra.mxu0 0.0
  %680 = vmatprep.subr.mxu0 0.0
  %681 = vmatpush2.msra.mxu0 0.0
  %682 = vmatprep.mubr.f32.mxu0 0.0
  %683 = vmatmul.mubr.f32.gmra.mxu0 %v614
  %v684 = vpop.f32.mrf.mxu0
  %v685 = vadd.f32 0.0, %v684
  %v686 = vpop.f32.mrf.mxu0
  %687 = vmatprep.mubr.f32.mxu0 0.0
  %688 = vmatmul.mubr.f32.gmra.mxu0 %v616
  %v689 = vpop.f32.mrf.mxu0
  %v690 = vadd.f32 0.0, %v689
  %v691 = vpop.f32.mrf.mxu0
  %692 = vdwg.mxu0
  %v693 = vlaneseq
  %v694 = vshrl.u32 %v693, 7
  %v695 = vsub.s32 4, %v694
  %v696 = vrot.slane %v210, %v695
  %v697 = vadd.f32 %v696, %v685
  %v698 = vadd.f32 %v696, %v690
  %v699 = vmul.f32 %v208, %v697
  %v700 = vmul.f32 %v209, %v698
  %v701 = vadd.f32 %v122, %v699
  %v702 = vadd.f32 %v123, %v700
  %s703 = scalar_lea.vmem %s5, 128
  %v704 = vld [vmem:[%s703] sm:$0xff]
  %v705 = vld [vmem:[%s703 + $0x8] sm:$0xff]
  %v706 = vld [vmem:[%s703 + $0x10] sm:$0xff]
  %v707 = vld [vmem:[%s703 + $0x18] sm:$0xff]
  %v709 = vsel %vm42, %v311, 0
  %v712 = vsel %vm42, %v313, 0
  %714 = vmatprep.subr.mxu0 0.0
  %715 = vmatpush1.msra.mxu0 0.0
  %716 = vmatprep.subr.mxu0 0.0
  %717 = vmatpush1.msra.mxu0 0.0
  %718 = vmatprep.subr.mxu0 0.0
  %719 = vmatpush1.msra.mxu0 0.0
  %720 = vmatprep.subr.mxu0 0.0
  %721 = vmatpush1.msra.mxu0 0.0
  %722 = vmatprep.subr.mxu0 0.0
  %723 = vmatpush1.msra.mxu0 0.0
  %724 = vmatprep.subr.mxu0 0.0
  %725 = vmatpush1.msra.mxu0 0.0
  %726 = vmatprep.subr.mxu0 0.0
  %727 = vmatpush1.msra.mxu0 0.0
  %728 = vmatprep.subr.mxu0 0.0
  %729 = vmatpush1.msra.mxu0 0.0
  %730 = vmatprep.subr.mxu0 0.0
  %731 = vmatpush1.msra.mxu0 0.0
  %732 = vmatprep.subr.mxu0 0.0
  %733 = vmatpush1.msra.mxu0 0.0
  %734 = vmatprep.subr.mxu0 0.0
  %735 = vmatpush1.msra.mxu0 0.0
  %736 = vmatprep.subr.mxu0 0.0
  %737 = vmatpush1.msra.mxu0 0.0
  %738 = vmatprep.subr.mxu0 0.0
  %739 = vmatpush1.msra.mxu0 %v707
  %740 = vmatprep.subr.mxu0 0.0
  %741 = vmatpush1.msra.mxu0 %v706
  %742 = vmatprep.subr.mxu0 0.0
  %743 = vmatpush1.msra.mxu0 %v705
  %744 = vmatprep.subr.mxu0 0.0
  %745 = vmatpush1.msra.mxu0 %v704
  %746 = vmatprep.subr.mxu0 0.0
  %747 = vmatpush2.msra.mxu0 0.0
  %748 = vmatprep.subr.mxu0 0.0
  %749 = vmatpush2.msra.mxu0 0.0
  %750 = vmatprep.subr.mxu0 0.0
  %751 = vmatpush2.msra.mxu0 0.0
  %752 = vmatprep.subr.mxu0 0.0
  %753 = vmatpush2.msra.mxu0 0.0
  %754 = vmatprep.subr.mxu0 0.0
  %755 = vmatpush2.msra.mxu0 0.0
  %756 = vmatprep.subr.mxu0 0.0
  %757 = vmatpush2.msra.mxu0 0.0
  %758 = vmatprep.subr.mxu0 0.0
  %759 = vmatpush2.msra.mxu0 0.0
  %760 = vmatprep.subr.mxu0 0.0
  %761 = vmatpush2.msra.mxu0 0.0
  %762 = vmatprep.subr.mxu0 0.0
  %763 = vmatpush2.msra.mxu0 0.0
  %764 = vmatprep.subr.mxu0 0.0
  %765 = vmatpush2.msra.mxu0 0.0
  %766 = vmatprep.subr.mxu0 0.0
  %767 = vmatpush2.msra.mxu0 0.0
  %768 = vmatprep.subr.mxu0 0.0
  %769 = vmatpush2.msra.mxu0 0.0
  %770 = vmatprep.subr.mxu0 0.0
  %771 = vmatpush2.msra.mxu0 0.0
  %772 = vmatprep.subr.mxu0 0.0
  %773 = vmatpush2.msra.mxu0 0.0
  %774 = vmatprep.subr.mxu0 0.0
  %775 = vmatpush2.msra.mxu0 0.0
  %776 = vmatprep.subr.mxu0 0.0
  %777 = vmatpush2.msra.mxu0 0.0
  %778 = vmatprep.mubr.f32.mxu0 0.0
  %779 = vmatmul.mubr.f32.gmra.mxu0 %v709
  %v780 = vpop.f32.mrf.mxu0
  %v781 = vadd.f32 0.0, %v780
  %v782 = vpop.f32.mrf.mxu0
  %783 = vmatprep.mubr.f32.mxu0 0.0
  %784 = vmatmul.mubr.f32.gmra.mxu0 %v712
  %v785 = vpop.f32.mrf.mxu0
  %v786 = vadd.f32 0.0, %v785
  %v787 = vpop.f32.mrf.mxu0
  %788 = vdwg.mxu0
  %v789 = vlaneseq
  %v790 = vshrl.u32 %v789, 7
  %v791 = vsub.s32 5, %v790
  %v792 = vrot.slane %v210, %v791
  %v793 = vadd.f32 %v792, %v781
  %v794 = vadd.f32 %v792, %v786
  %v795 = vmul.f32 %v208, %v793
  %v796 = vmul.f32 %v209, %v794
  %v797 = vadd.f32 %v122, %v795
  %v798 = vadd.f32 %v123, %v796
  %v799 = vld [vmem:[%s9] sm:$0xff]
  %v800 = vld [vmem:[%s9 + $0x8] sm:$0xff]
  %v801 = vld [vmem:[%s9 + $0x10] sm:$0xff]
  %v802 = vld [vmem:[%s9 + $0x18] sm:$0xff]
  %v804 = vsel %vm42, %v701, 0
  %v807 = vsel %vm42, %v702, 0
  %809 = vmatprep.subr.mxu0 0.0
  %810 = vmatpush1.msra.mxu0 0.0
  %811 = vmatprep.subr.mxu0 0.0
  %812 = vmatpush1.msra.mxu0 0.0
  %813 = vmatprep.subr.mxu0 0.0
  %814 = vmatpush1.msra.mxu0 0.0
  %815 = vmatprep.subr.mxu0 0.0
  %816 = vmatpush1.msra.mxu0 0.0
  %817 = vmatprep.subr.mxu0 0.0
  %818 = vmatpush1.msra.mxu0 0.0
  %819 = vmatprep.subr.mxu0 0.0
  %820 = vmatpush1.msra.mxu0 0.0
  %821 = vmatprep.subr.mxu0 0.0
  %822 = vmatpush1.msra.mxu0 0.0
  %823 = vmatprep.subr.mxu0 0.0
  %824 = vmatpush1.msra.mxu0 0.0
  %825 = vmatprep.subr.mxu0 0.0
  %826 = vmatpush1.msra.mxu0 0.0
  %827 = vmatprep.subr.mxu0 0.0
  %828 = vmatpush1.msra.mxu0 0.0
  %829 = vmatprep.subr.mxu0 0.0
  %830 = vmatpush1.msra.mxu0 0.0
  %831 = vmatprep.subr.mxu0 0.0
  %832 = vmatpush1.msra.mxu0 0.0
  %833 = vmatprep.subr.mxu0 0.0
  %834 = vmatpush1.msra.mxu0 %v802
  %835 = vmatprep.subr.mxu0 0.0
  %836 = vmatpush1.msra.mxu0 %v801
  %837 = vmatprep.subr.mxu0 0.0
  %838 = vmatpush1.msra.mxu0 %v800
  %839 = vmatprep.subr.mxu0 0.0
  %840 = vmatpush1.msra.mxu0 %v799
  %841 = vmatprep.subr.mxu0 0.0
  %842 = vmatpush2.msra.mxu0 0.0
  %843 = vmatprep.subr.mxu0 0.0
  %844 = vmatpush2.msra.mxu0 0.0
  %845 = vmatprep.subr.mxu0 0.0
  %846 = vmatpush2.msra.mxu0 0.0
  %847 = vmatprep.subr.mxu0 0.0
  %848 = vmatpush2.msra.mxu0 0.0
  %849 = vmatprep.subr.mxu0 0.0
  %850 = vmatpush2.msra.mxu0 0.0
  %851 = vmatprep.subr.mxu0 0.0
  %852 = vmatpush2.msra.mxu0 0.0
  %853 = vmatprep.subr.mxu0 0.0
  %854 = vmatpush2.msra.mxu0 0.0
  %855 = vmatprep.subr.mxu0 0.0
  %856 = vmatpush2.msra.mxu0 0.0
  %857 = vmatprep.subr.mxu0 0.0
  %858 = vmatpush2.msra.mxu0 0.0
  %859 = vmatprep.subr.mxu0 0.0
  %860 = vmatpush2.msra.mxu0 0.0
  %861 = vmatprep.subr.mxu0 0.0
  %862 = vmatpush2.msra.mxu0 0.0
  %863 = vmatprep.subr.mxu0 0.0
  %864 = vmatpush2.msra.mxu0 0.0
  %865 = vmatprep.subr.mxu0 0.0
  %866 = vmatpush2.msra.mxu0 0.0
  %867 = vmatprep.subr.mxu0 0.0
  %868 = vmatpush2.msra.mxu0 0.0
  %869 = vmatprep.subr.mxu0 0.0
  %870 = vmatpush2.msra.mxu0 0.0
  %871 = vmatprep.subr.mxu0 0.0
  %872 = vmatpush2.msra.mxu0 0.0
  %873 = vmatprep.mubr.f32.mxu0 0.0
  %874 = vmatmul.mubr.f32.gmra.mxu0 %v804
  %v875 = vpop.f32.mrf.mxu0
  %v876 = vadd.f32 0.0, %v875
  %v877 = vpop.f32.mrf.mxu0
  %878 = vmatprep.mubr.f32.mxu0 0.0
  %879 = vmatmul.mubr.f32.gmra.mxu0 %v807
  %v880 = vpop.f32.mrf.mxu0
  %v881 = vadd.f32 0.0, %v880
  %v882 = vpop.f32.mrf.mxu0
  %883 = vdwg.mxu0
  %s884 = scalar_lea.vmem %s9, 32
  %v885 = vld [vmem:[%s884] sm:$0xff]
  %v886 = vld [vmem:[%s884 + $0x8] sm:$0xff]
  %v887 = vld [vmem:[%s884 + $0x10] sm:$0xff]
  %v888 = vld [vmem:[%s884 + $0x18] sm:$0xff]
  %v890 = vsel %vm42, %v505, 0
  %v893 = vsel %vm42, %v506, 0
  %895 = vmatprep.subr.mxu0 0.0
  %896 = vmatpush1.msra.mxu0 0.0
  %897 = vmatprep.subr.mxu0 0.0
  %898 = vmatpush1.msra.mxu0 0.0
  %899 = vmatprep.subr.mxu0 0.0
  %900 = vmatpush1.msra.mxu0 0.0
  %901 = vmatprep.subr.mxu0 0.0
  %902 = vmatpush1.msra.mxu0 0.0
  %903 = vmatprep.subr.mxu0 0.0
  %904 = vmatpush1.msra.mxu0 0.0
  %905 = vmatprep.subr.mxu0 0.0
  %906 = vmatpush1.msra.mxu0 0.0
  %907 = vmatprep.subr.mxu0 0.0
  %908 = vmatpush1.msra.mxu0 0.0
  %909 = vmatprep.subr.mxu0 0.0
  %910 = vmatpush1.msra.mxu0 0.0
  %911 = vmatprep.subr.mxu0 0.0
  %912 = vmatpush1.msra.mxu0 0.0
  %913 = vmatprep.subr.mxu0 0.0
  %914 = vmatpush1.msra.mxu0 0.0
  %915 = vmatprep.subr.mxu0 0.0
  %916 = vmatpush1.msra.mxu0 0.0
  %917 = vmatprep.subr.mxu0 0.0
  %918 = vmatpush1.msra.mxu0 0.0
  %919 = vmatprep.subr.mxu0 0.0
  %920 = vmatpush1.msra.mxu0 %v888
  %921 = vmatprep.subr.mxu0 0.0
  %922 = vmatpush1.msra.mxu0 %v887
  %923 = vmatprep.subr.mxu0 0.0
  %924 = vmatpush1.msra.mxu0 %v886
  %925 = vmatprep.subr.mxu0 0.0
  %926 = vmatpush1.msra.mxu0 %v885
  %927 = vmatprep.subr.mxu0 0.0
  %928 = vmatpush2.msra.mxu0 0.0
  %929 = vmatprep.subr.mxu0 0.0
  %930 = vmatpush2.msra.mxu0 0.0
  %931 = vmatprep.subr.mxu0 0.0
  %932 = vmatpush2.msra.mxu0 0.0
  %933 = vmatprep.subr.mxu0 0.0
  %934 = vmatpush2.msra.mxu0 0.0
  %935 = vmatprep.subr.mxu0 0.0
  %936 = vmatpush2.msra.mxu0 0.0
  %937 = vmatprep.subr.mxu0 0.0
  %938 = vmatpush2.msra.mxu0 0.0
  %939 = vmatprep.subr.mxu0 0.0
  %940 = vmatpush2.msra.mxu0 0.0
  %941 = vmatprep.subr.mxu0 0.0
  %942 = vmatpush2.msra.mxu0 0.0
  %943 = vmatprep.subr.mxu0 0.0
  %944 = vmatpush2.msra.mxu0 0.0
  %945 = vmatprep.subr.mxu0 0.0
  %946 = vmatpush2.msra.mxu0 0.0
  %947 = vmatprep.subr.mxu0 0.0
  %948 = vmatpush2.msra.mxu0 0.0
  %949 = vmatprep.subr.mxu0 0.0
  %950 = vmatpush2.msra.mxu0 0.0
  %951 = vmatprep.subr.mxu0 0.0
  %952 = vmatpush2.msra.mxu0 0.0
  %953 = vmatprep.subr.mxu0 0.0
  %954 = vmatpush2.msra.mxu0 0.0
  %955 = vmatprep.subr.mxu0 0.0
  %956 = vmatpush2.msra.mxu0 0.0
  %957 = vmatprep.subr.mxu0 0.0
  %958 = vmatpush2.msra.mxu0 0.0
  %959 = vmatprep.mubr.f32.mxu0 0.0
  %960 = vmatmul.mubr.f32.gmra.mxu0 %v890
  %v961 = vpop.f32.mrf.mxu0
  %v962 = vadd.f32 0.0, %v961
  %v963 = vpop.f32.mrf.mxu0
  %964 = vmatprep.mubr.f32.mxu0 0.0
  %965 = vmatmul.mubr.f32.gmra.mxu0 %v893
  %v966 = vpop.f32.mrf.mxu0
  %v967 = vadd.f32 0.0, %v966
  %v968 = vpop.f32.mrf.mxu0
  %969 = vdwg.mxu0
  %s970 = scalar_lea.vmem %s9, 64
  %v971 = vld [vmem:[%s970] sm:$0xff]
  %v972 = vld [vmem:[%s970 + $0x8] sm:$0xff]
  %v973 = vld [vmem:[%s970 + $0x10] sm:$0xff]
  %v974 = vld [vmem:[%s970 + $0x18] sm:$0xff]
  %v976 = vsel %vm42, %v603, 0
  %v979 = vsel %vm42, %v604, 0
  %981 = vmatprep.subr.mxu0 0.0
  %982 = vmatpush1.msra.mxu0 0.0
  %983 = vmatprep.subr.mxu0 0.0
  %984 = vmatpush1.msra.mxu0 0.0
  %985 = vmatprep.subr.mxu0 0.0
  %986 = vmatpush1.msra.mxu0 0.0
  %987 = vmatprep.subr.mxu0 0.0
  %988 = vmatpush1.msra.mxu0 0.0
  %989 = vmatprep.subr.mxu0 0.0
  %990 = vmatpush1.msra.mxu0 0.0
  %991 = vmatprep.subr.mxu0 0.0
  %992 = vmatpush1.msra.mxu0 0.0
  %993 = vmatprep.subr.mxu0 0.0
  %994 = vmatpush1.msra.mxu0 0.0
  %995 = vmatprep.subr.mxu0 0.0
  %996 = vmatpush1.msra.mxu0 0.0
  %997 = vmatprep.subr.mxu0 0.0
  %998 = vmatpush1.msra.mxu0 0.0
  %999 = vmatprep.subr.mxu0 0.0
  %1000 = vmatpush1.msra.mxu0 0.0
  %1001 = vmatprep.subr.mxu0 0.0
  %1002 = vmatpush1.msra.mxu0 0.0
  %1003 = vmatprep.subr.mxu0 0.0
  %1004 = vmatpush1.msra.mxu0 0.0
  %1005 = vmatprep.subr.mxu0 0.0
  %1006 = vmatpush1.msra.mxu0 %v974
  %1007 = vmatprep.subr.mxu0 0.0
  %1008 = vmatpush1.msra.mxu0 %v973
  %1009 = vmatprep.subr.mxu0 0.0
  %1010 = vmatpush1.msra.mxu0 %v972
  %1011 = vmatprep.subr.mxu0 0.0
  %1012 = vmatpush1.msra.mxu0 %v971
  %1013 = vmatprep.subr.mxu0 0.0
  %1014 = vmatpush2.msra.mxu0 0.0
  %1015 = vmatprep.subr.mxu0 0.0
  %1016 = vmatpush2.msra.mxu0 0.0
  %1017 = vmatprep.subr.mxu0 0.0
  %1018 = vmatpush2.msra.mxu0 0.0
  %1019 = vmatprep.subr.mxu0 0.0
  %1020 = vmatpush2.msra.mxu0 0.0
  %1021 = vmatprep.subr.mxu0 0.0
  %1022 = vmatpush2.msra.mxu0 0.0
  %1023 = vmatprep.subr.mxu0 0.0
  %1024 = vmatpush2.msra.mxu0 0.0
  %1025 = vmatprep.subr.mxu0 0.0
  %1026 = vmatpush2.msra.mxu0 0.0
  %1027 = vmatprep.subr.mxu0 0.0
  %1028 = vmatpush2.msra.mxu0 0.0
  %1029 = vmatprep.subr.mxu0 0.0
  %1030 = vmatpush2.msra.mxu0 0.0
  %1031 = vmatprep.subr.mxu0 0.0
  %1032 = vmatpush2.msra.mxu0 0.0
  %1033 = vmatprep.subr.mxu0 0.0
  %1034 = vmatpush2.msra.mxu0 0.0
  %1035 = vmatprep.subr.mxu0 0.0
  %1036 = vmatpush2.msra.mxu0 0.0
  %1037 = vmatprep.subr.mxu0 0.0
  %1038 = vmatpush2.msra.mxu0 0.0
  %1039 = vmatprep.subr.mxu0 0.0
  %1040 = vmatpush2.msra.mxu0 0.0
  %1041 = vmatprep.subr.mxu0 0.0
  %1042 = vmatpush2.msra.mxu0 0.0
  %1043 = vmatprep.subr.mxu0 0.0
  %1044 = vmatpush2.msra.mxu0 0.0
  %1045 = vmatprep.mubr.f32.mxu0 0.0
  %1046 = vmatmul.mubr.f32.gmra.mxu0 %v976
  %v1047 = vpop.f32.mrf.mxu0
  %v1048 = vadd.f32 0.0, %v1047
  %v1049 = vpop.f32.mrf.mxu0
  %1050 = vmatprep.mubr.f32.mxu0 0.0
  %1051 = vmatmul.mubr.f32.gmra.mxu0 %v979
  %v1052 = vpop.f32.mrf.mxu0
  %v1053 = vadd.f32 0.0, %v1052
  %v1054 = vpop.f32.mrf.mxu0
  %1055 = vdwg.mxu0
  %s1056 = scalar_lea.vmem %s9, 96
  %v1057 = vld [vmem:[%s1056] sm:$0xff]
  %v1058 = vld [vmem:[%s1056 + $0x8] sm:$0xff]
  %v1059 = vld [vmem:[%s1056 + $0x10] sm:$0xff]
  %v1060 = vld [vmem:[%s1056 + $0x18] sm:$0xff]
  %v1062 = vsel %vm42, %v797, 0
  %v1065 = vsel %vm42, %v798, 0
  %1067 = vmatprep.subr.mxu0 0.0
  %1068 = vmatpush1.msra.mxu0 0.0
  %1069 = vmatprep.subr.mxu0 0.0
  %1070 = vmatpush1.msra.mxu0 0.0
  %1071 = vmatprep.subr.mxu0 0.0
  %1072 = vmatpush1.msra.mxu0 0.0
  %1073 = vmatprep.subr.mxu0 0.0
  %1074 = vmatpush1.msra.mxu0 0.0
  %1075 = vmatprep.subr.mxu0 0.0
  %1076 = vmatpush1.msra.mxu0 0.0
  %1077 = vmatprep.subr.mxu0 0.0
  %1078 = vmatpush1.msra.mxu0 0.0
  %1079 = vmatprep.subr.mxu0 0.0
  %1080 = vmatpush1.msra.mxu0 0.0
  %1081 = vmatprep.subr.mxu0 0.0
  %1082 = vmatpush1.msra.mxu0 0.0
  %1083 = vmatprep.subr.mxu0 0.0
  %1084 = vmatpush1.msra.mxu0 0.0
  %1085 = vmatprep.subr.mxu0 0.0
  %1086 = vmatpush1.msra.mxu0 0.0
  %1087 = vmatprep.subr.mxu0 0.0
  %1088 = vmatpush1.msra.mxu0 0.0
  %1089 = vmatprep.subr.mxu0 0.0
  %1090 = vmatpush1.msra.mxu0 0.0
  %1091 = vmatprep.subr.mxu0 0.0
  %1092 = vmatpush1.msra.mxu0 %v1060
  %1093 = vmatprep.subr.mxu0 0.0
  %1094 = vmatpush1.msra.mxu0 %v1059
  %1095 = vmatprep.subr.mxu0 0.0
  %1096 = vmatpush1.msra.mxu0 %v1058
  %1097 = vmatprep.subr.mxu0 0.0
  %1098 = vmatpush1.msra.mxu0 %v1057
  %1099 = vmatprep.subr.mxu0 0.0
  %1100 = vmatpush2.msra.mxu0 0.0
  %1101 = vmatprep.subr.mxu0 0.0
  %1102 = vmatpush2.msra.mxu0 0.0
  %1103 = vmatprep.subr.mxu0 0.0
  %1104 = vmatpush2.msra.mxu0 0.0
  %1105 = vmatprep.subr.mxu0 0.0
  %1106 = vmatpush2.msra.mxu0 0.0
  %1107 = vmatprep.subr.mxu0 0.0
  %1108 = vmatpush2.msra.mxu0 0.0
  %1109 = vmatprep.subr.mxu0 0.0
  %1110 = vmatpush2.msra.mxu0 0.0
  %1111 = vmatprep.subr.mxu0 0.0
  %1112 = vmatpush2.msra.mxu0 0.0
  %1113 = vmatprep.subr.mxu0 0.0
  %1114 = vmatpush2.msra.mxu0 0.0
  %1115 = vmatprep.subr.mxu0 0.0
  %1116 = vmatpush2.msra.mxu0 0.0
  %1117 = vmatprep.subr.mxu0 0.0
  %1118 = vmatpush2.msra.mxu0 0.0
  %1119 = vmatprep.subr.mxu0 0.0
  %1120 = vmatpush2.msra.mxu0 0.0
  %1121 = vmatprep.subr.mxu0 0.0
  %1122 = vmatpush2.msra.mxu0 0.0
  %1123 = vmatprep.subr.mxu0 0.0
  %1124 = vmatpush2.msra.mxu0 0.0
  %1125 = vmatprep.subr.mxu0 0.0
  %1126 = vmatpush2.msra.mxu0 0.0
  %1127 = vmatprep.subr.mxu0 0.0
  %1128 = vmatpush2.msra.mxu0 0.0
  %1129 = vmatprep.subr.mxu0 0.0
  %1130 = vmatpush2.msra.mxu0 0.0
  %1131 = vmatprep.mubr.f32.mxu0 0.0
  %1132 = vmatmul.mubr.f32.gmra.mxu0 %v1062
  %v1133 = vpop.f32.mrf.mxu0
  %v1134 = vadd.f32 0.0, %v1133
  %v1135 = vpop.f32.mrf.mxu0
  %1136 = vmatprep.mubr.f32.mxu0 0.0
  %1137 = vmatmul.mubr.f32.gmra.mxu0 %v1065
  %v1138 = vpop.f32.mrf.mxu0
  %v1139 = vadd.f32 0.0, %v1138
  %v1140 = vpop.f32.mrf.mxu0
  %1141 = vdwg.mxu0
  %v1142 = vsub.f32 0.0, %v1134
  %v1143 = vsub.f32 0.0, %v1139
  %v1144 = vmul.f32 %v1142, 1.442695
  %v1145 = vpow.pop %v1144
  %v1146 = vmul.f32 %v1143, 1.442695
  %v1147 = vpow.pop %v1146
  %v1148 = vadd.f32 %v1145, 1.0
  %v1149 = vadd.f32 %v1147, 1.0
  %v1150 = vrcp.pop %v1148
  %v1151 = vmul.f32 1.0, %v1150
  %v1152 = vrcp.pop %v1149
  %v1153 = vmul.f32 1.0, %v1152
  %v1154 = vmul.f32 %v1134, %v1151
  %v1155 = vmul.f32 %v1139, %v1153
  %1156 = vst.msk [vmem:[%s12] sm:$0xff] %vm42, %v1154
  %1157 = vst.msk [vmem:[%s12 + $0x8] sm:$0xff] %vm42, %v1155
  %v1158 = vld [vmem:[%s6] sm:$0xff]
  %v1159 = vld [vmem:[%s6 + $0x8] sm:$0xff]
  %v1160 = vld [vmem:[%s6 + $0x10] sm:$0xff]
  %v1161 = vld [vmem:[%s6 + $0x18] sm:$0xff]
  %v1163 = vsel %vm42, %v407, 0
  %v1166 = vsel %vm42, %v408, 0
  %1168 = vmatprep.subr.mxu0 0.0
  %1169 = vmatpush1.msra.mxu0 0.0
  %1170 = vmatprep.subr.mxu0 0.0
  %1171 = vmatpush1.msra.mxu0 0.0
  %1172 = vmatprep.subr.mxu0 0.0
  %1173 = vmatpush1.msra.mxu0 0.0
  %1174 = vmatprep.subr.mxu0 0.0
  %1175 = vmatpush1.msra.mxu0 0.0
  %1176 = vmatprep.subr.mxu0 0.0
  %1177 = vmatpush1.msra.mxu0 0.0
  %1178 = vmatprep.subr.mxu0 0.0
  %1179 = vmatpush1.msra.mxu0 0.0
  %1180 = vmatprep.subr.mxu0 0.0
  %1181 = vmatpush1.msra.mxu0 0.0
  %1182 = vmatprep.subr.mxu0 0.0
  %1183 = vmatpush1.msra.mxu0 0.0
  %1184 = vmatprep.subr.mxu0 0.0
  %1185 = vmatpush1.msra.mxu0 0.0
  %1186 = vmatprep.subr.mxu0 0.0
  %1187 = vmatpush1.msra.mxu0 0.0
  %1188 = vmatprep.subr.mxu0 0.0
  %1189 = vmatpush1.msra.mxu0 0.0
  %1190 = vmatprep.subr.mxu0 0.0
  %1191 = vmatpush1.msra.mxu0 0.0
  %1192 = vmatprep.subr.mxu0 0.0
  %1193 = vmatpush1.msra.mxu0 %v1161
  %1194 = vmatprep.subr.mxu0 0.0
  %1195 = vmatpush1.msra.mxu0 %v1160
  %1196 = vmatprep.subr.mxu0 0.0
  %1197 = vmatpush1.msra.mxu0 %v1159
  %1198 = vmatprep.subr.mxu0 0.0
  %1199 = vmatpush1.msra.mxu0 %v1158
  %1200 = vmatprep.subr.mxu0 0.0
  %1201 = vmatpush2.msra.mxu0 0.0
  %1202 = vmatprep.subr.mxu0 0.0
  %1203 = vmatpush2.msra.mxu0 0.0
  %1204 = vmatprep.subr.mxu0 0.0
  %1205 = vmatpush2.msra.mxu0 0.0
  %1206 = vmatprep.subr.mxu0 0.0
  %1207 = vmatpush2.msra.mxu0 0.0
  %1208 = vmatprep.subr.mxu0 0.0
  %1209 = vmatpush2.msra.mxu0 0.0
  %1210 = vmatprep.subr.mxu0 0.0
  %1211 = vmatpush2.msra.mxu0 0.0
  %1212 = vmatprep.subr.mxu0 0.0
  %1213 = vmatpush2.msra.mxu0 0.0
  %1214 = vmatprep.subr.mxu0 0.0
  %1215 = vmatpush2.msra.mxu0 0.0
  %1216 = vmatprep.subr.mxu0 0.0
  %1217 = vmatpush2.msra.mxu0 0.0
  %1218 = vmatprep.subr.mxu0 0.0
  %1219 = vmatpush2.msra.mxu0 0.0
  %1220 = vmatprep.subr.mxu0 0.0
  %1221 = vmatpush2.msra.mxu0 0.0
  %1222 = vmatprep.subr.mxu0 0.0
  %1223 = vmatpush2.msra.mxu0 0.0
  %1224 = vmatprep.subr.mxu0 0.0
  %1225 = vmatpush2.msra.mxu0 0.0
  %1226 = vmatprep.subr.mxu0 0.0
  %1227 = vmatpush2.msra.mxu0 0.0
  %1228 = vmatprep.subr.mxu0 0.0
  %1229 = vmatpush2.msra.mxu0 0.0
  %1230 = vmatprep.subr.mxu0 0.0
  %1231 = vmatpush2.msra.mxu0 0.0
  %1232 = vmatprep.mubr.f32.mxu0 0.0
  %1233 = vmatmul.mubr.f32.gmra.mxu0 %v1163
  %v1234 = vpop.f32.mrf.mxu0
  %v1235 = vadd.f32 0.0, %v1234
  %v1236 = vpop.f32.mrf.mxu0
  %1237 = vmatprep.mubr.f32.mxu0 0.0
  %1238 = vmatmul.mubr.f32.gmra.mxu0 %v1166
  %v1239 = vpop.f32.mrf.mxu0
  %v1240 = vadd.f32 0.0, %v1239
  %v1241 = vpop.f32.mrf.mxu0
  %1242 = vdwg.mxu0
  %v1243 = vtanh.pop %v1235
  %v1244 = vtanh.pop %v1240
  %v1245 = vld [vmem:[%s7] sm:$0xff]
  %v1246 = vld [vmem:[%s7 + $0x8] sm:$0xff]
  %v1247 = vld [vmem:[%s7 + $0x10] sm:$0xff]
  %v1248 = vld [vmem:[%s7 + $0x18] sm:$0xff]
  %v1249 = vld [vmem:[%s7 + $0x20] sm:$0xff]
  %v1250 = vld [vmem:[%s7 + $0x28] sm:$0xff]
  %v1251 = vld [vmem:[%s7 + $0x30] sm:$0xff]
  %v1252 = vld [vmem:[%s7 + $0x38] sm:$0xff]
  %vm1253 = vcmask 523264
  %v1255 = vsel %vm1253, %v1243, 0
  %v1258 = vsel %vm1253, %v1244, 0
  %1260 = vmatprep.subr.mxu0 0.0
  %1261 = vmatpush1.msra.mxu0 0.0
  %1262 = vmatprep.subr.mxu0 0.0
  %1263 = vmatpush1.msra.mxu0 0.0
  %1264 = vmatprep.subr.mxu0 0.0
  %1265 = vmatpush1.msra.mxu0 0.0
  %1266 = vmatprep.subr.mxu0 0.0
  %1267 = vmatpush1.msra.mxu0 0.0
  %1268 = vmatprep.subr.mxu0 0.0
  %1269 = vmatpush1.msra.mxu0 0.0
  %1270 = vmatprep.subr.mxu0 0.0
  %1271 = vmatpush1.msra.mxu0 0.0
  %1272 = vmatprep.subr.mxu0 0.0
  %1273 = vmatpush1.msra.mxu0 0.0
  %1274 = vmatprep.subr.mxu0 0.0
  %1275 = vmatpush1.msra.mxu0 0.0
  %1276 = vmatprep.subr.mxu0 0.0
  %1277 = vmatpush1.msra.mxu0 %v1252
  %1278 = vmatprep.subr.mxu0 0.0
  %1279 = vmatpush1.msra.mxu0 %v1251
  %1280 = vmatprep.subr.mxu0 0.0
  %1281 = vmatpush1.msra.mxu0 %v1250
  %1282 = vmatprep.subr.mxu0 0.0
  %1283 = vmatpush1.msra.mxu0 %v1249
  %1284 = vmatprep.subr.mxu0 0.0
  %1285 = vmatpush1.msra.mxu0 %v1248
  %1286 = vmatprep.subr.mxu0 0.0
  %1287 = vmatpush1.msra.mxu0 %v1247
  %1288 = vmatprep.subr.mxu0 0.0
  %1289 = vmatpush1.msra.mxu0 %v1246
  %1290 = vmatprep.subr.mxu0 0.0
  %1291 = vmatpush1.msra.mxu0 %v1245
  %1292 = vmatprep.subr.mxu0 0.0
  %1293 = vmatpush2.msra.mxu0 0.0
  %1294 = vmatprep.subr.mxu0 0.0
  %1295 = vmatpush2.msra.mxu0 0.0
  %1296 = vmatprep.subr.mxu0 0.0
  %1297 = vmatpush2.msra.mxu0 0.0
  %1298 = vmatprep.subr.mxu0 0.0
  %1299 = vmatpush2.msra.mxu0 0.0
  %1300 = vmatprep.subr.mxu0 0.0
  %1301 = vmatpush2.msra.mxu0 0.0
  %1302 = vmatprep.subr.mxu0 0.0
  %1303 = vmatpush2.msra.mxu0 0.0
  %1304 = vmatprep.subr.mxu0 0.0
  %1305 = vmatpush2.msra.mxu0 0.0
  %1306 = vmatprep.subr.mxu0 0.0
  %1307 = vmatpush2.msra.mxu0 0.0
  %1308 = vmatprep.subr.mxu0 0.0
  %1309 = vmatpush2.msra.mxu0 0.0
  %1310 = vmatprep.subr.mxu0 0.0
  %1311 = vmatpush2.msra.mxu0 0.0
  %1312 = vmatprep.subr.mxu0 0.0
  %1313 = vmatpush2.msra.mxu0 0.0
  %1314 = vmatprep.subr.mxu0 0.0
  %1315 = vmatpush2.msra.mxu0 0.0
  %1316 = vmatprep.subr.mxu0 0.0
  %1317 = vmatpush2.msra.mxu0 0.0
  %1318 = vmatprep.subr.mxu0 0.0
  %1319 = vmatpush2.msra.mxu0 0.0
  %1320 = vmatprep.subr.mxu0 0.0
  %1321 = vmatpush2.msra.mxu0 0.0
  %1322 = vmatprep.subr.mxu0 0.0
  %1323 = vmatpush2.msra.mxu0 0.0
  %1324 = vmatprep.mubr.f32.mxu0 0.0
  %1325 = vmatmul.mubr.f32.gmra.mxu0 %v1255
  %v1326 = vpop.f32.mrf.mxu0
  %v1327 = vadd.f32 0.0, %v1326
  %v1328 = vpop.f32.mrf.mxu0
  %1329 = vmatprep.mubr.f32.mxu0 0.0
  %1330 = vmatmul.mubr.f32.gmra.mxu0 %v1258
  %v1331 = vpop.f32.mrf.mxu0
  %v1332 = vadd.f32 0.0, %v1331
  %v1333 = vpop.f32.mrf.mxu0
  %1334 = vdwg.mxu0
  %v1335 = vld [vmem:[%s8] sm:$0x1]
  %v1337 = vlaneseq
  %v1338 = vshrl.u32 %v1337, 7
  %v1339 = vsub.s32 0, %v1338
  %v1340 = vrot.slane %v1335, %v1339
  %v1342 = vadd.f32 %v1340, %v1327
  %v1343 = vadd.f32 %v1340, %v1332
  %v1344 = vmul.f32 %v1342, 1.442695
  %v1345 = vpow.pop %v1344
  %v1346 = vmul.f32 %v1343, 1.442695
  %v1347 = vpow.pop %v1346
  %v1348 = vsub.f32 0.0, %v1345
  %v1349 = vsub.f32 0.0, %v1347
  %1350 = vst.msk [vmem:[%s11] sm:$0xff] %vm42, %v876
  %1351 = vst.msk [vmem:[%s11 + $0x8] sm:$0xff] %vm42, %v881
  %1354 = vrot.lane.b32.xlu0 %v962, 32
  %v1355 = vpop.permute.xlu0 %1354
  %1356 = vrot.lane.b32.xlu0 %v967, 32
  %v1357 = vpop.permute.xlu0 %1356
  %vm1360 = vcmask 523520
  %1361 = vst.msk [vmem:[%s11] sm:$0xff] %vm1360, %v1355
  %1362 = vst.msk [vmem:[%s11 + $0x8] sm:$0xff] %vm1360, %v1357
  %1365 = vrot.lane.b32.xlu0 %v1048, 64
  %v1366 = vpop.permute.xlu0 %1365
  %1367 = vrot.lane.b32.xlu0 %v1053, 64
  %v1368 = vpop.permute.xlu0 %1367
  %vm1371 = vcmask 785920
  %1372 = vst.msk [vmem:[%s11] sm:$0xff] %vm1371, %v1366
  %1373 = vst.msk [vmem:[%s11 + $0x8] sm:$0xff] %vm1371, %v1368
  %1376 = vrot.lane.b32.xlu0 %v1348, 96
  %v1377 = vpop.permute.xlu0 %1376
  %1378 = vrot.lane.b32.xlu0 %v1349, 96
  %v1379 = vpop.permute.xlu0 %1378
  %vm1382 = vcmask 1048320
  %1383 = vst.msk [vmem:[%s11] sm:$0xff] %vm1382, %v1377
  %1384 = vst.msk [vmem:[%s11 + $0x8] sm:$0xff] %vm1382, %v1379
  // Predicated region
  $region42: #{_lambda_.3} parent=0 // pred_check
    _
  $region43: #{_lambda_.3} parent=0 // pred_check_branch
    %1386 = sbr.rel (0) target = $region45
  $region44: #{_lambda_.3} parent=0 // pred_region
    _
  $region45: #{_lambda_.3} parent=0 // pred_fallthru
    _
  // Predicated region
  $region46: #{_lambda_.3} parent=0 // pred_check
    _
  $region47: #{_lambda_.3} parent=0 // pred_check_branch
    %1388 = sbr.rel (0) target = $region49
  $region48: #{_lambda_.3} parent=0 // pred_region
    _
  $region49: #{_lambda_.3} parent=0 // pred_fallthru
    _
  // Predicated region
  $region50: #{_lambda_.3} parent=0 // pred_check
    _
  $region51: #{_lambda_.3} parent=0 // pred_check_branch
    %1390 = sbr.rel (0) target = $region53
  $region52: #{_lambda_.3} parent=0 // pred_region
    _
  $region53: #{_lambda_.3} parent=0 // pred_fallthru
    _
  // Predicated region
  $region54: #{_lambda_.3} parent=0 // pred_check
    _
  $region55: #{_lambda_.3} parent=0 // pred_check_branch
    %1392 = sbr.rel (0) target = $region57
  $region56: #{_lambda_.3} parent=0 // pred_region
    _
  $region57: #{_lambda_.3} parent=0 // pred_fallthru
    _
  // Predicated region
  $region58: #{_lambda_.3} parent=0 // pred_check
    _
  $region59: #{_lambda_.3} parent=0 // pred_check_branch
    %1394 = sbr.rel (0) target = $region61
  $region60: #{_lambda_.3} parent=0 // pred_region
    _
  $region61: #{_lambda_.3} parent=0 // pred_fallthru
    _
  // Predicated region
  $region62: #{_lambda_.3} parent=0 // pred_check
    _
  $region63: #{_lambda_.3} parent=0 // pred_check_branch
    %1396 = sbr.rel (0) target = $region65
  $region64: #{_lambda_.3} parent=0 // pred_region
    _
  $region65: #{_lambda_.3} parent=0 // pred_fallthru
    _

</llo_original>
